<compile_context>
chip_gen: v7x
topology: tpu7x:2x2x1
jax: 0.10.0
libtpu: 0.0.40
codegen_flags: <defaults>
</compile_context>

<pallas_src>
import math
import functools

import jax
import jax.numpy as jnp
from jax import lax
from jax.experimental import pallas as pl
from jax.experimental.pallas import tpu as pltpu


def _pick_tile(n, cap, align=128):
    """Largest multiple of `align` that divides n, capped at `cap`; else n."""
    if n % align != 0 or n < align:
        return n
    c = min(cap, n)
    c -= c % align
    while c >= align:
        if n % c == 0:
            return c
        c -= align
    return n


def _vmem_limit_bytes():
    """~3/4 of physical VMEM for this generation (96 MiB v5e/v6e, 48 MiB v7x)."""
    try:
        cap = int(pltpu.get_tpu_info().vmem_capacity_bytes)
    except Exception:
        cap = 64 * 1024 * 1024   # conservative fallback (v7x per-core size)
    return (cap * 3) // 4


def _mha_kernel(x_ref, wq_ref, bq_ref, wkv_ref, bkv_ref, wo_ref, bo_ref,
                out_ref, kv_ref, q_ref, ctx_ref, *,
                num_heads, head_dim, tq, kv_chunk, exp_dtype):
    N, D = x_ref.shape
    f32 = jnp.float32
    qi = pl.program_id(1)
    num_kv = N // kv_chunk
    scale = 1.0 / math.sqrt(head_dim)

    # ---- K/V projection for the FULL sequence, once per batch element. ------
    # kv_ref persists across the Q-tile grid axis; recomputed when the batch
    # block changes (qi == 0).  Row-chunked so the f32 intermediate is a
    # bounded (kv_chunk, 2D) tile, never (N, 2D).
    @pl.when(qi == 0)
    def _():
        def row_step(r, carry):
            rs = pl.multiple_of(r * kv_chunk, kv_chunk)
            xr = x_ref[pl.ds(rs, kv_chunk), :]
            kvr = jnp.dot(xr, wkv_ref[...], preferred_element_type=f32)
            kv_ref[pl.ds(rs, kv_chunk), :] = (kvr + bkv_ref[...]).astype(kv_ref.dtype)
            return carry
        lax.fori_loop(0, num_kv, row_step, 0)

    # ---- Q projection for this Q tile only; park in VMEM in compute dtype. --
    qs = pl.multiple_of(qi * tq, tq)
    xq = x_ref[pl.ds(qs, tq), :]
    q = jnp.dot(xq, wq_ref[...], preferred_element_type=f32) + bq_ref[...]
    q_ref[...] = q.astype(q_ref.dtype)

    # ---- Per-head flash attention over K/V chunks. ---------------------------
    # Normalized per-head context goes into ctx_ref[:, h*hd:(h+1)*hd]; the
    # output projection is a single full-width matmul after the head loop.
    for h in range(num_heads):
        lo = h * head_dim
        q_h = q_ref[:, pl.ds(lo, head_dim)]                         # (tq, hd)

        def kv_step(j, carry):
            m_prev, l_prev, o_prev = carry
            ks = pl.multiple_of(j * kv_chunk, kv_chunk)
            k_h = kv_ref[pl.ds(ks, kv_chunk), pl.ds(lo, head_dim)]
            v_h = kv_ref[pl.ds(ks, kv_chunk), pl.ds(D + lo, head_dim)]
            # Contract feature dim vs feature dim: no materialized K^T.
            s = lax.dot_general(q_h, k_h, (((1,), (1,)), ((), ())),
                                preferred_element_type=f32) * scale
            # rel_bias_k is torch.zeros in the reference forward -> no-op.
            m_new = jnp.maximum(m_prev, jnp.max(s, axis=-1, keepdims=True))
            alpha = jnp.exp(m_prev - m_new)
            # exp in bf16 on the bf16 path (EUP relief, v6e/v7x); f32 otherwise.
            p = jnp.exp((s - m_new).astype(exp_dtype))
            l_new = alpha * l_prev + jnp.sum(p.astype(f32), axis=-1, keepdims=True)
            o_new = alpha * o_prev + jnp.dot(p.astype(v_h.dtype), v_h,
                                             preferred_element_type=f32)
            return m_new, l_new, o_new

        carry0 = (jnp.full((tq, 1), -jnp.inf, f32),
                  jnp.zeros((tq, 1), f32),
                  jnp.zeros((tq, head_dim), f32))
        _, l_h, o_h = lax.fori_loop(0, num_kv, kv_step, carry0)

        # Exact softmax normalization (approx reciprocal removed per review).
        # Dropout on attention weights: identity in eval mode.
        o_h = o_h * pl.reciprocal(l_h, approx=False)
        ctx_ref[:, pl.ds(lo, head_dim)] = o_h.astype(ctx_ref.dtype)

    # ---- Single output projection: full MXU contraction K = D. --------------
    out = jnp.dot(ctx_ref[...], wo_ref[...], preferred_element_type=f32)
    out_ref[...] = (out + bo_ref[...]).astype(out_ref.dtype)


def relative_mha_pallas(x, params, num_heads):
    """x: [B, N, D]. params: wq/wk/wv/wo as (D_in, D_out), biases as (1, D).

    Matmuls run in x.dtype on the MXU (pass bf16 x for the native fast path);
    softmax state and all matmul accumulation stay in f32.
    """
    B, N, D = x.shape
    assert D % num_heads == 0, "embed_dim must be divisible by num_heads"
    head_dim = D // num_heads
    dtype = x.dtype
    f32 = jnp.float32

    wq = params["wq"].astype(dtype)
    bq = params["bq"].astype(f32)
    # Fuse K/V weights -> one (D, 2D) matmul operand; biases -> (1, 2D).
    wkv = jnp.concatenate([params["wk"], params["wv"]], axis=1).astype(dtype)
    bkv = jnp.concatenate([params["bk"], params["bv"]], axis=1).astype(f32)
    wo = params["wo"].astype(dtype)
    bo = params["bo"].astype(f32)

    # 128-aligned divisors of N (caps chosen for MXU alignment / vreg budget).
    kv_chunk = _pick_tile(N, cap=512, align=128)
    tq = _pick_tile(N, cap=256, align=128)
    nq = N // tq

    exp_dtype = jnp.bfloat16 if dtype == jnp.bfloat16 else jnp.float32

    kernel = functools.partial(
        _mha_kernel, num_heads=num_heads, head_dim=head_dim,
        tq=tq, kv_chunk=kv_chunk, exp_dtype=exp_dtype)

    def build(single_buffer_weights):
        if single_buffer_weights:
            def wspec(shape):
                # Grid-constant operand: double buffering buys nothing, just VMEM.
                return pl.BlockSpec(shape, lambda b, qi: (0, 0),
                                    pipeline_mode=pl.Buffered(1))
        else:
            def wspec(shape):
                return pl.BlockSpec(shape, lambda b, qi: (0, 0))

        return pl.pallas_call(
            kernel,
            out_shape=jax.ShapeDtypeStruct((B, N, D), dtype),
            grid=(B, nq),
            in_specs=[
                # Full sequence per batch element; block index is constant
                # across the Q-tile axis so it is fetched once per batch.
                pl.BlockSpec((pl.Squeezed(), N, D), lambda b, qi: (b, 0, 0)),
                wspec((D, D)),          # Wq
                wspec((1, D)),          # bq
                wspec((D, 2 * D)),      # Wkv (K|V fused)
                wspec((1, 2 * D)),      # bkv
                wspec((D, D)),          # Wo
                wspec((1, D)),          # bo
            ],
            out_specs=pl.BlockSpec((pl.Squeezed(), tq, D),
                                   lambda b, qi: (b, qi, 0)),
            scratch_shapes=[
                pltpu.VMEM((N, 2 * D), dtype),   # K/V projections (per batch)
                pltpu.VMEM((tq, D), dtype),      # Q-tile projection
                pltpu.VMEM((tq, D), dtype),      # normalized attention context
            ],
            compiler_params=pltpu.CompilerParams(
                dimension_semantics=("parallel", "arbitrary"),
                vmem_limit_bytes=_vmem_limit_bytes(),
            ),
        )

    args = (x, wq, bq, wkv, bkv, wo, bo)
    try:
        out = build(True)(*args)
        return jax.block_until_ready(out)
    except Exception:
        # pipeline_mode=pl.Buffered(1) not supported by this JAX/Mosaic build:
        # fall back to default (double-buffered) weight blocks.
        out = build(False)(*args)
        return jax.block_until_ready(out)


def _xavier_uniform(key, shape, gain):
    fan_in, fan_out = shape[1], shape[0]
    bound = gain * math.sqrt(6.0 / (fan_in + fan_out))
    return jax.random.uniform(key, shape, jnp.float32, -bound, bound)


def init_params(key, embed_dim, num_layers=15):
    """Mirrors RelativeMultiheadAttention._init_parameters (deterministic)."""
    gain = math.pow(2.0 * num_layers, 0.25)
    keys = jax.random.split(key, 4)
    # torch weights are (out, in); store transposed (in, out) for x @ W.
    wq = _xavier_uniform(keys[0], (embed_dim, embed_dim), gain).T
    wk = _xavier_uniform(keys[1], (embed_dim, embed_dim), gain).T
    wv = _xavier_uniform(keys[2], (embed_dim, embed_dim), gain).T
    wo = _xavier_uniform(keys[3], (embed_dim, embed_dim), gain).T
    zero_bias = jnp.zeros((1, embed_dim), jnp.float32)
    return {"wq": wq, "bq": zero_bias, "wk": wk, "bk": zero_bias,
            "wv": wv, "bv": zero_bias, "wo": wo, "bo": zero_bias}


def reference_mha(x, params, num_heads, compute_dtype=jnp.float32):
    """Pure-JAX reference of the PyTorch forward (eval mode).

    `compute_dtype` mirrors the kernel's cast points (matmul operands) so bf16
    runs can be checked; with f32 it is exactly the PyTorch math.
    """
    B, N, D = x.shape
    hd = D // num_heads
    cd, f32 = compute_dtype, jnp.float32
    xc = x.astype(cd)

    def proj(w, b):
        y = jnp.einsum("bnd,de->bne", xc, w.astype(cd),
                       preferred_element_type=f32)
        return (y + b.astype(f32)).astype(cd)

    q = proj(params["wq"], params["bq"]).reshape(B, N, num_heads, hd).transpose(0, 2, 1, 3)
    k = proj(params["wk"], params["bk"]).reshape(B, N, num_heads, hd).transpose(0, 2, 1, 3)
    v = proj(params["wv"], params["bv"]).reshape(B, N, num_heads, hd).transpose(0, 2, 1, 3)

    logits = jnp.einsum("bhqd,bhkd->bhqk", q, k,
                        preferred_element_type=f32) / math.sqrt(hd)
    # rel_bias_k is torch.zeros in the reference forward -> no-op.
    m = jnp.max(logits, axis=-1, keepdims=True)
    p = jnp.exp(logits - m)
    l = jnp.sum(p, axis=-1, keepdims=True)
    o = jnp.einsum("bhqk,bhkd->bhqd", p.astype(cd), v,
                   preferred_element_type=f32) / l
    o = o.transpose(0, 2, 1, 3).reshape(B, N, D).astype(cd)
    out = jnp.einsum("bnd,de->bne", o, params["wo"].astype(cd),
                     preferred_element_type=f32)
    return out + params["bo"].astype(f32)


if __name__ == "__main__":
    B, N, D, H = 2, 8, 32, 4   # batch, seq, embed_dim, num_heads (head_dim = 8)

    key = jax.random.PRNGKey(0)
    k_x, k_p = jax.random.split(key)
    x = jax.random.normal(k_x, (B, N, D), jnp.float32)
    params = init_params(k_p, D)

    # f32 path: exact softmax normalization -> tight tolerance.
    out = jax.block_until_ready(relative_mha_pallas(x, params, num_heads=H))
    ref = reference_mha(x, params, H)
    assert out.shape == (B, N, D) and out.dtype == jnp.float32
    assert jnp.allclose(out, ref, atol=1e-4, rtol=1e-4), "f32 mismatch vs reference"

    # bf16 MXU-native path: bf16 activations/weights + bf16 exp, f32 accumulation.
    out_bf16 = jax.block_until_ready(
        relative_mha_pallas(x.astype(jnp.bfloat16), params, num_heads=H))
    ref_bf16 = reference_mha(x, params, H, compute_dtype=jnp.bfloat16)
    assert out_bf16.shape == (B, N, D) and out_bf16.dtype == jnp.bfloat16
    assert jnp.allclose(out_bf16.astype(jnp.float32), ref_bf16,
                        atol=2e-1, rtol=1e-1), "bf16 mismatch vs reference"

    print("KERNEL_OK")
</pallas_src>

<mosaic_0001>
module attributes {stable_mosaic.version = 11 : i64} {
  func.func @_mha_kernel(%arg0: i32, %arg1: i32, %arg2: memref<1x8x32xf32, #tpu.memory_space<vmem>>, %arg3: memref<32x32xf32, #tpu.memory_space<vmem>>, %arg4: memref<1x32xf32, #tpu.memory_space<vmem>>, %arg5: memref<32x64xf32, #tpu.memory_space<vmem>>, %arg6: memref<1x64xf32, #tpu.memory_space<vmem>>, %arg7: memref<32x32xf32, #tpu.memory_space<vmem>>, %arg8: memref<1x32xf32, #tpu.memory_space<vmem>>, %arg9: memref<1x8x32xf32, #tpu.memory_space<vmem>>, %arg10: memref<8x64xf32, #tpu.memory_space<vmem>>, %arg11: memref<8x32xf32, #tpu.memory_space<vmem>>, %arg12: memref<8x32xf32, #tpu.memory_space<vmem>>) attributes {dimension_semantics = [#tpu.dimension_semantics<parallel>, #tpu.dimension_semantics<arbitrary>], iteration_bounds = array<i64: 2, 1>, scalar_prefetch = 0 : i64, scratch_operands = 3 : i64, tpu.core_type = #tpu.core_type<tc>, window_params = [{transform_indices = @transform_0, window_bounds = array<i64: 1, 8, 32>}, {pipeline_mode = #tpu.pipeline_mode<synchronous>, transform_indices = @transform_1, window_bounds = array<i64: 32, 32>}, {pipeline_mode = #tpu.pipeline_mode<synchronous>, transform_indices = @transform_2, window_bounds = array<i64: 1, 32>}, {pipeline_mode = #tpu.pipeline_mode<synchronous>, transform_indices = @transform_3, window_bounds = array<i64: 32, 64>}, {pipeline_mode = #tpu.pipeline_mode<synchronous>, transform_indices = @transform_4, window_bounds = array<i64: 1, 64>}, {pipeline_mode = #tpu.pipeline_mode<synchronous>, transform_indices = @transform_5, window_bounds = array<i64: 32, 32>}, {pipeline_mode = #tpu.pipeline_mode<synchronous>, transform_indices = @transform_6, window_bounds = array<i64: 1, 32>}, {transform_indices = @transform_7, window_bounds = array<i64: 1, 8, 32>}]} {
    %c0_i32 = arith.constant 0 : i32
    %0 = arith.cmpi eq, %arg1, %c0_i32 : i32
    %1 = arith.extui %0 : i1 to i32
    %c0_i32_0 = arith.constant 0 : i32
    %2 = arith.cmpi ne, %1, %c0_i32_0 : i32
    scf.if %2 {
      %c0_i32_78 = arith.constant 0 : i32
      %c8_i32_79 = arith.constant 8 : i32
      %155 = arith.muli %c0_i32_78, %c8_i32_79 : i32
      %156 = tpu.assume_multiple %155, 8 : i32
      %c0_80 = arith.constant 0 : index
      %157 = arith.index_cast %156 : i32 to index
      %c0_81 = arith.constant 0 : index
      %158 = vector.load %arg2[%c0_80, %157, %c0_81] : memref<1x8x32xf32, #tpu.memory_space<vmem>>, vector<1x8x32xf32>
      %159 = vector.shape_cast %158 : vector<1x8x32xf32> to vector<8x32xf32>
      %c0_82 = arith.constant 0 : index
      %c0_83 = arith.constant 0 : index
      %160 = vector.load %arg5[%c0_82, %c0_83] : memref<32x64xf32, #tpu.memory_space<vmem>>, vector<32x64xf32>
      %cst_84 = arith.constant dense<0.000000e+00> : vector<8x64xf32>
      %161 = tpu.matmul %159, %160, %cst_84 {dimension_numbers = #tpu.dot_dimension_numbers<[1], [0], [0], [1], [0, 0, 1, 1], [], []>} : vector<8x32xf32>, vector<32x64xf32>, vector<8x64xf32> -> vector<8x64xf32>
      %c0_85 = arith.constant 0 : index
      %c0_86 = arith.constant 0 : index
      %162 = vector.load %arg6[%c0_85, %c0_86] : memref<1x64xf32, #tpu.memory_space<vmem>>, vector<1x64xf32>
      %163 = vector.broadcast %162 : vector<1x64xf32> to vector<8x64xf32>
      %164 = arith.addf %161, %163 : vector<8x64xf32>
      %165 = arith.index_cast %156 : i32 to index
      %c0_87 = arith.constant 0 : index
      %166 = vector.load %arg10[%165, %c0_87] : memref<8x64xf32, #tpu.memory_space<vmem>>, vector<8x64xf32>
      tpu.vector_store %arg10[%165, %c0_87], %164 {strides = array<i32>} : memref<8x64xf32, #tpu.memory_space<vmem>>, vector<8x64xf32>,
      %c1_i32_88 = arith.constant 1 : i32
    } else {
    }
    %c8_i32 = arith.constant 8 : i32
    %3 = arith.muli %arg1, %c8_i32 : i32
    %4 = tpu.assume_multiple %3, 8 : i32
    %c0 = arith.constant 0 : index
    %5 = arith.index_cast %4 : i32 to index
    %c0_1 = arith.constant 0 : index
    %6 = vector.load %arg2[%c0, %5, %c0_1] : memref<1x8x32xf32, #tpu.memory_space<vmem>>, vector<1x8x32xf32>
    %7 = vector.shape_cast %6 : vector<1x8x32xf32> to vector<8x32xf32>
    %c0_2 = arith.constant 0 : index
    %c0_3 = arith.constant 0 : index
    %8 = vector.load %arg3[%c0_2, %c0_3] : memref<32x32xf32, #tpu.memory_space<vmem>>, vector<32x32xf32>
    %cst = arith.constant dense<0.000000e+00> : vector<8x32xf32>
    %9 = tpu.matmul %7, %8, %cst {dimension_numbers = #tpu.dot_dimension_numbers<[1], [0], [0], [1], [0, 0, 1, 1], [], []>} : vector<8x32xf32>, vector<32x32xf32>, vector<8x32xf32> -> vector<8x32xf32>
    %c0_4 = arith.constant 0 : index
    %c0_5 = arith.constant 0 : index
    %10 = vector.load %arg4[%c0_4, %c0_5] : memref<1x32xf32, #tpu.memory_space<vmem>>, vector<1x32xf32>
    %11 = vector.broadcast %10 : vector<1x32xf32> to vector<8x32xf32>
    %12 = arith.addf %9, %11 : vector<8x32xf32>
    %c0_6 = arith.constant 0 : index
    %c0_7 = arith.constant 0 : index
    %13 = vector.load %arg11[%c0_6, %c0_7] : memref<8x32xf32, #tpu.memory_space<vmem>>, vector<8x32xf32>
    tpu.vector_store %arg11[%c0_6, %c0_7], %12 {strides = array<i32>} : memref<8x32xf32, #tpu.memory_space<vmem>>, vector<8x32xf32>,
    %c0_8 = arith.constant 0 : index
    %c0_9 = arith.constant 0 : index
    %14 = vector.load %arg11[%c0_8, %c0_9] : memref<8x32xf32, #tpu.memory_space<vmem>>, vector<8x8xf32>
    %cst_10 = arith.constant 0xFF800000 : f32
    %15 = vector.broadcast %cst_10 : f32 to vector<8x1xf32>
    %cst_11 = arith.constant 0.000000e+00 : f32
    %16 = vector.broadcast %cst_11 : f32 to vector<8x1xf32>
    %cst_12 = arith.constant 0.000000e+00 : f32
    %17 = vector.broadcast %cst_12 : f32 to vector<8x8xf32>
    %c0_i32_13 = arith.constant 0 : i32
    %c8_i32_14 = arith.constant 8 : i32
    %18 = arith.muli %c0_i32_13, %c8_i32_14 : i32
    %19 = tpu.assume_multiple %18, 8 : i32
    %20 = arith.index_cast %19 : i32 to index
    %c0_15 = arith.constant 0 : index
    %21 = vector.load %arg10[%20, %c0_15] : memref<8x64xf32, #tpu.memory_space<vmem>>, vector<8x8xf32>
    %22 = arith.index_cast %19 : i32 to index
    %c32 = arith.constant 32 : index
    %23 = vector.load %arg10[%22, %c32] : memref<8x64xf32, #tpu.memory_space<vmem>>, vector<8x8xf32>
    %cst_16 = arith.constant dense<0.000000e+00> : vector<8x8xf32>
    %24 = tpu.matmul %14, %21, %cst_16 {dimension_numbers = #tpu.dot_dimension_numbers<[1], [1], [0], [0], [0, 0, 1, 0], [], []>} : vector<8x8xf32>, vector<8x8xf32>, vector<8x8xf32> -> vector<8x8xf32>
    %cst_17 = arith.constant 0.353553385 : f32
    %25 = vector.broadcast %cst_17 : f32 to vector<8x8xf32>
    %26 = arith.mulf %24, %25 : vector<8x8xf32>
    %cst_18 = arith.constant dense<0xFF800000> : vector<8xf32>
    %27 = vector.multi_reduction <maximumf>, %26, %cst_18 [1] : vector<8x8xf32> to vector<8xf32>
    %28 = vector.shape_cast %27 : vector<8xf32> to vector<8x1xf32>
    %29 = arith.maximumf %15, %28 : vector<8x1xf32>
    %30 = arith.subf %15, %29 : vector<8x1xf32>
    %31 = math.exp %30 : vector<8x1xf32>
    %32 = vector.broadcast %29 : vector<8x1xf32> to vector<8x8xf32>
    %33 = arith.subf %26, %32 : vector<8x8xf32>
    %34 = math.exp %33 : vector<8x8xf32>
    %35 = arith.mulf %31, %16 : vector<8x1xf32>
    %cst_19 = arith.constant dense<0.000000e+00> : vector<8xf32>
    %36 = vector.multi_reduction <add>, %34, %cst_19 [1] : vector<8x8xf32> to vector<8xf32>
    %37 = vector.shape_cast %36 : vector<8xf32> to vector<8x1xf32>
    %38 = arith.addf %35, %37 : vector<8x1xf32>
    %39 = vector.broadcast %31 : vector<8x1xf32> to vector<8x8xf32>
    %40 = arith.mulf %39, %17 : vector<8x8xf32>
    %cst_20 = arith.constant dense<0.000000e+00> : vector<8x8xf32>
    %41 = tpu.matmul %34, %23, %cst_20 {dimension_numbers = #tpu.dot_dimension_numbers<[1], [0], [0], [1], [0, 0, 1, 1], [], []>} : vector<8x8xf32>, vector<8x8xf32>, vector<8x8xf32> -> vector<8x8xf32>
    %42 = arith.addf %40, %41 : vector<8x8xf32>
    %c1_i32 = arith.constant 1 : i32
    %43 = tpu.reciprocal %38 : vector<8x1xf32> -> vector<8x1xf32>
    %44 = vector.broadcast %43 : vector<8x1xf32> to vector<8x8xf32>
    %45 = arith.mulf %42, %44 : vector<8x8xf32>
    %c0_21 = arith.constant 0 : index
    %c0_22 = arith.constant 0 : index
    %46 = vector.load %arg12[%c0_21, %c0_22] : memref<8x32xf32, #tpu.memory_space<vmem>>, vector<8x8xf32>
    tpu.vector_store %arg12[%c0_21, %c0_22], %45 {strides = array<i32>} : memref<8x32xf32, #tpu.memory_space<vmem>>, vector<8x8xf32>,
    %c0_23 = arith.constant 0 : index
    %c8 = arith.constant 8 : index
    %47 = vector.load %arg11[%c0_23, %c8] : memref<8x32xf32, #tpu.memory_space<vmem>>, vector<8x8xf32>
    %cst_24 = arith.constant 0xFF800000 : f32
    %48 = vector.broadcast %cst_24 : f32 to vector<8x1xf32>
    %cst_25 = arith.constant 0.000000e+00 : f32
    %49 = vector.broadcast %cst_25 : f32 to vector<8x1xf32>
    %cst_26 = arith.constant 0.000000e+00 : f32
    %50 = vector.broadcast %cst_26 : f32 to vector<8x8xf32>
    %c0_i32_27 = arith.constant 0 : i32
    %c8_i32_28 = arith.constant 8 : i32
    %51 = arith.muli %c0_i32_27, %c8_i32_28 : i32
    %52 = tpu.assume_multiple %51, 8 : i32
    %53 = arith.index_cast %52 : i32 to index
    %c8_29 = arith.constant 8 : index
    %54 = vector.load %arg10[%53, %c8_29] : memref<8x64xf32, #tpu.memory_space<vmem>>, vector<8x8xf32>
    %55 = arith.index_cast %52 : i32 to index
    %c40 = arith.constant 40 : index
    %56 = vector.load %arg10[%55, %c40] : memref<8x64xf32, #tpu.memory_space<vmem>>, vector<8x8xf32>
    %cst_30 = arith.constant dense<0.000000e+00> : vector<8x8xf32>
    %57 = tpu.matmul %47, %54, %cst_30 {dimension_numbers = #tpu.dot_dimension_numbers<[1], [1], [0], [0], [0, 0, 1, 0], [], []>} : vector<8x8xf32>, vector<8x8xf32>, vector<8x8xf32> -> vector<8x8xf32>
    %cst_31 = arith.constant 0.353553385 : f32
    %58 = vector.broadcast %cst_31 : f32 to vector<8x8xf32>
    %59 = arith.mulf %57, %58 : vector<8x8xf32>
    %cst_32 = arith.constant dense<0xFF800000> : vector<8xf32>
    %60 = vector.multi_reduction <maximumf>, %59, %cst_32 [1] : vector<8x8xf32> to vector<8xf32>
    %61 = vector.shape_cast %60 : vector<8xf32> to vector<8x1xf32>
    %62 = arith.maximumf %48, %61 : vector<8x1xf32>
    %63 = arith.subf %48, %62 : vector<8x1xf32>
    %64 = math.exp %63 : vector<8x1xf32>
    %65 = vector.broadcast %62 : vector<8x1xf32> to vector<8x8xf32>
    %66 = arith.subf %59, %65 : vector<8x8xf32>
    %67 = math.exp %66 : vector<8x8xf32>
    %68 = arith.mulf %64, %49 : vector<8x1xf32>
    %cst_33 = arith.constant dense<0.000000e+00> : vector<8xf32>
    %69 = vector.multi_reduction <add>, %67, %cst_33 [1] : vector<8x8xf32> to vector<8xf32>
    %70 = vector.shape_cast %69 : vector<8xf32> to vector<8x1xf32>
    %71 = arith.addf %68, %70 : vector<8x1xf32>
    %72 = vector.broadcast %64 : vector<8x1xf32> to vector<8x8xf32>
    %73 = arith.mulf %72, %50 : vector<8x8xf32>
    %cst_34 = arith.constant dense<0.000000e+00> : vector<8x8xf32>
    %74 = tpu.matmul %67, %56, %cst_34 {dimension_numbers = #tpu.dot_dimension_numbers<[1], [0], [0], [1], [0, 0, 1, 1], [], []>} : vector<8x8xf32>, vector<8x8xf32>, vector<8x8xf32> -> vector<8x8xf32>
    %75 = arith.addf %73, %74 : vector<8x8xf32>
    %c1_i32_35 = arith.constant 1 : i32
    %76 = tpu.reciprocal %71 : vector<8x1xf32> -> vector<8x1xf32>
    %77 = vector.broadcast %76 : vector<8x1xf32> to vector<8x8xf32>
    %78 = arith.mulf %75, %77 : vector<8x8xf32>
    %c0_36 = arith.constant 0 : index
    %c8_37 = arith.constant 8 : index
    %79 = vector.load %arg12[%c0_36, %c8_37] : memref<8x32xf32, #tpu.memory_space<vmem>>, vector<8x8xf32>
    tpu.vector_store %arg12[%c0_36, %c8_37], %78 {strides = array<i32>} : memref<8x32xf32, #tpu.memory_space<vmem>>, vector<8x8xf32>,
    %c0_38 = arith.constant 0 : index
    %c16 = arith.constant 16 : index
    %80 = vector.load %arg11[%c0_38, %c16] : memref<8x32xf32, #tpu.memory_space<vmem>>, vector<8x8xf32>
    %cst_39 = arith.constant 0xFF800000 : f32
    %81 = vector.broadcast %cst_39 : f32 to vector<8x1xf32>
    %cst_40 = arith.constant 0.000000e+00 : f32
    %82 = vector.broadcast %cst_40 : f32 to vector<8x1xf32>
    %cst_41 = arith.constant 0.000000e+00 : f32
    %83 = vector.broadcast %cst_41 : f32 to vector<8x8xf32>
    %c0_i32_42 = arith.constant 0 : i32
    %c8_i32_43 = arith.constant 8 : i32
    %84 = arith.muli %c0_i32_42, %c8_i32_43 : i32
    %85 = tpu.assume_multiple %84, 8 : i32
    %86 = arith.index_cast %85 : i32 to index
    %c16_44 = arith.constant 16 : index
    %87 = vector.load %arg10[%86, %c16_44] : memref<8x64xf32, #tpu.memory_space<vmem>>, vector<8x8xf32>
    %88 = arith.index_cast %85 : i32 to index
    %c48 = arith.constant 48 : index
    %89 = vector.load %arg10[%88, %c48] : memref<8x64xf32, #tpu.memory_space<vmem>>, vector<8x8xf32>
    %cst_45 = arith.constant dense<0.000000e+00> : vector<8x8xf32>
    %90 = tpu.matmul %80, %87, %cst_45 {dimension_numbers = #tpu.dot_dimension_numbers<[1], [1], [0], [0], [0, 0, 1, 0], [], []>} : vector<8x8xf32>, vector<8x8xf32>, vector<8x8xf32> -> vector<8x8xf32>
    %cst_46 = arith.constant 0.353553385 : f32
    %91 = vector.broadcast %cst_46 : f32 to vector<8x8xf32>
    %92 = arith.mulf %90, %91 : vector<8x8xf32>
    %cst_47 = arith.constant dense<0xFF800000> : vector<8xf32>
    %93 = vector.multi_reduction <maximumf>, %92, %cst_47 [1] : vector<8x8xf32> to vector<8xf32>
    %94 = vector.shape_cast %93 : vector<8xf32> to vector<8x1xf32>
    %95 = arith.maximumf %81, %94 : vector<8x1xf32>
    %96 = arith.subf %81, %95 : vector<8x1xf32>
    %97 = math.exp %96 : vector<8x1xf32>
    %98 = vector.broadcast %95 : vector<8x1xf32> to vector<8x8xf32>
    %99 = arith.subf %92, %98 : vector<8x8xf32>
    %100 = math.exp %99 : vector<8x8xf32>
    %101 = arith.mulf %97, %82 : vector<8x1xf32>
    %cst_48 = arith.constant dense<0.000000e+00> : vector<8xf32>
    %102 = vector.multi_reduction <add>, %100, %cst_48 [1] : vector<8x8xf32> to vector<8xf32>
    %103 = vector.shape_cast %102 : vector<8xf32> to vector<8x1xf32>
    %104 = arith.addf %101, %103 : vector<8x1xf32>
    %105 = vector.broadcast %97 : vector<8x1xf32> to vector<8x8xf32>
    %106 = arith.mulf %105, %83 : vector<8x8xf32>
    %cst_49 = arith.constant dense<0.000000e+00> : vector<8x8xf32>
    %107 = tpu.matmul %100, %89, %cst_49 {dimension_numbers = #tpu.dot_dimension_numbers<[1], [0], [0], [1], [0, 0, 1, 1], [], []>} : vector<8x8xf32>, vector<8x8xf32>, vector<8x8xf32> -> vector<8x8xf32>
    %108 = arith.addf %106, %107 : vector<8x8xf32>
    %c1_i32_50 = arith.constant 1 : i32
    %109 = tpu.reciprocal %104 : vector<8x1xf32> -> vector<8x1xf32>
    %110 = vector.broadcast %109 : vector<8x1xf32> to vector<8x8xf32>
    %111 = arith.mulf %108, %110 : vector<8x8xf32>
    %c0_51 = arith.constant 0 : index
    %c16_52 = arith.constant 16 : index
    %112 = vector.load %arg12[%c0_51, %c16_52] : memref<8x32xf32, #tpu.memory_space<vmem>>, vector<8x8xf32>
    tpu.vector_store %arg12[%c0_51, %c16_52], %111 {strides = array<i32>} : memref<8x32xf32, #tpu.memory_space<vmem>>, vector<8x8xf32>,
    %c0_53 = arith.constant 0 : index
    %c24 = arith.constant 24 : index
    %113 = vector.load %arg11[%c0_53, %c24] : memref<8x32xf32, #tpu.memory_space<vmem>>, vector<8x8xf32>
    %cst_54 = arith.constant 0xFF800000 : f32
    %114 = vector.broadcast %cst_54 : f32 to vector<8x1xf32>
    %cst_55 = arith.constant 0.000000e+00 : f32
    %115 = vector.broadcast %cst_55 : f32 to vector<8x1xf32>
    %cst_56 = arith.constant 0.000000e+00 : f32
    %116 = vector.broadcast %cst_56 : f32 to vector<8x8xf32>
    %c0_i32_57 = arith.constant 0 : i32
    %c8_i32_58 = arith.constant 8 : i32
    %117 = arith.muli %c0_i32_57, %c8_i32_58 : i32
    %118 = tpu.assume_multiple %117, 8 : i32
    %119 = arith.index_cast %118 : i32 to index
    %c24_59 = arith.constant 24 : index
    %120 = vector.load %arg10[%119, %c24_59] : memref<8x64xf32, #tpu.memory_space<vmem>>, vector<8x8xf32>
    %121 = arith.index_cast %118 : i32 to index
    %c56 = arith.constant 56 : index
    %122 = vector.load %arg10[%121, %c56] : memref<8x64xf32, #tpu.memory_space<vmem>>, vector<8x8xf32>
    %cst_60 = arith.constant dense<0.000000e+00> : vector<8x8xf32>
    %123 = tpu.matmul %113, %120, %cst_60 {dimension_numbers = #tpu.dot_dimension_numbers<[1], [1], [0], [0], [0, 0, 1, 0], [], []>} : vector<8x8xf32>, vector<8x8xf32>, vector<8x8xf32> -> vector<8x8xf32>
    %cst_61 = arith.constant 0.353553385 : f32
    %124 = vector.broadcast %cst_61 : f32 to vector<8x8xf32>
    %125 = arith.mulf %123, %124 : vector<8x8xf32>
    %cst_62 = arith.constant dense<0xFF800000> : vector<8xf32>
    %126 = vector.multi_reduction <maximumf>, %125, %cst_62 [1] : vector<8x8xf32> to vector<8xf32>
    %127 = vector.shape_cast %126 : vector<8xf32> to vector<8x1xf32>
    %128 = arith.maximumf %114, %127 : vector<8x1xf32>
    %129 = arith.subf %114, %128 : vector<8x1xf32>
    %130 = math.exp %129 : vector<8x1xf32>
    %131 = vector.broadcast %128 : vector<8x1xf32> to vector<8x8xf32>
    %132 = arith.subf %125, %131 : vector<8x8xf32>
    %133 = math.exp %132 : vector<8x8xf32>
    %134 = arith.mulf %130, %115 : vector<8x1xf32>
    %cst_63 = arith.constant dense<0.000000e+00> : vector<8xf32>
    %135 = vector.multi_reduction <add>, %133, %cst_63 [1] : vector<8x8xf32> to vector<8xf32>
    %136 = vector.shape_cast %135 : vector<8xf32> to vector<8x1xf32>
    %137 = arith.addf %134, %136 : vector<8x1xf32>
    %138 = vector.broadcast %130 : vector<8x1xf32> to vector<8x8xf32>
    %139 = arith.mulf %138, %116 : vector<8x8xf32>
    %cst_64 = arith.constant dense<0.000000e+00> : vector<8x8xf32>
    %140 = tpu.matmul %133, %122, %cst_64 {dimension_numbers = #tpu.dot_dimension_numbers<[1], [0], [0], [1], [0, 0, 1, 1], [], []>} : vector<8x8xf32>, vector<8x8xf32>, vector<8x8xf32> -> vector<8x8xf32>
    %141 = arith.addf %139, %140 : vector<8x8xf32>
    %c1_i32_65 = arith.constant 1 : i32
    %142 = tpu.reciprocal %137 : vector<8x1xf32> -> vector<8x1xf32>
    %143 = vector.broadcast %142 : vector<8x1xf32> to vector<8x8xf32>
    %144 = arith.mulf %141, %143 : vector<8x8xf32>
    %c0_66 = arith.constant 0 : index
    %c24_67 = arith.constant 24 : index
    %145 = vector.load %arg12[%c0_66, %c24_67] : memref<8x32xf32, #tpu.memory_space<vmem>>, vector<8x8xf32>
    tpu.vector_store %arg12[%c0_66, %c24_67], %144 {strides = array<i32>} : memref<8x32xf32, #tpu.memory_space<vmem>>, vector<8x8xf32>,
    %c0_68 = arith.constant 0 : index
    %c0_69 = arith.constant 0 : index
    %146 = vector.load %arg12[%c0_68, %c0_69] : memref<8x32xf32, #tpu.memory_space<vmem>>, vector<8x32xf32>
    %c0_70 = arith.constant 0 : index
    %c0_71 = arith.constant 0 : index
    %147 = vector.load %arg7[%c0_70, %c0_71] : memref<32x32xf32, #tpu.memory_space<vmem>>, vector<32x32xf32>
    %cst_72 = arith.constant dense<0.000000e+00> : vector<8x32xf32>
    %148 = tpu.matmul %146, %147, %cst_72 {dimension_numbers = #tpu.dot_dimension_numbers<[1], [0], [0], [1], [0, 0, 1, 1], [], []>} : vector<8x32xf32>, vector<32x32xf32>, vector<8x32xf32> -> vector<8x32xf32>
    %c0_73 = arith.constant 0 : index
    %c0_74 = arith.constant 0 : index
    %149 = vector.load %arg8[%c0_73, %c0_74] : memref<1x32xf32, #tpu.memory_space<vmem>>, vector<1x32xf32>
    %150 = vector.broadcast %149 : vector<1x32xf32> to vector<8x32xf32>
    %151 = arith.addf %148, %150 : vector<8x32xf32>
    %c0_75 = arith.constant 0 : index
    %c0_76 = arith.constant 0 : index
    %c0_77 = arith.constant 0 : index
    %152 = vector.load %arg9[%c0_75, %c0_76, %c0_77] : memref<1x8x32xf32, #tpu.memory_space<vmem>>, vector<1x8x32xf32>
    %153 = vector.shape_cast %152 : vector<1x8x32xf32> to vector<8x32xf32>
    %154 = vector.shape_cast %151 : vector<8x32xf32> to vector<1x8x32xf32>
    tpu.vector_store %arg9[%c0_75, %c0_76, %c0_77], %154 {strides = array<i32>} : memref<1x8x32xf32, #tpu.memory_space<vmem>>, vector<1x8x32xf32>,
    return
  }
  func.func @transform_0(%arg0: i32, %arg1: i32) -> (i32, i32, i32) {
    %c0_i32 = arith.constant 0 : i32
    %c0_i32_0 = arith.constant 0 : i32
    %c0_i32_1 = arith.constant 0 : i32
    return %arg0, %c0_i32, %c0_i32_0 : i32, i32, i32
  }
  func.func @transform_1(%arg0: i32, %arg1: i32) -> (i32, i32) {
    %c0_i32 = arith.constant 0 : i32
    %c0_i32_0 = arith.constant 0 : i32
    %c0_i32_1 = arith.constant 0 : i32
    return %c0_i32, %c0_i32_0 : i32, i32
  }
  func.func @transform_2(%arg0: i32, %arg1: i32) -> (i32, i32) {
    %c0_i32 = arith.constant 0 : i32
    %c0_i32_0 = arith.constant 0 : i32
    %c0_i32_1 = arith.constant 0 : i32
    return %c0_i32, %c0_i32_0 : i32, i32
  }
  func.func @transform_3(%arg0: i32, %arg1: i32) -> (i32, i32) {
    %c0_i32 = arith.constant 0 : i32
    %c0_i32_0 = arith.constant 0 : i32
    %c0_i32_1 = arith.constant 0 : i32
    return %c0_i32, %c0_i32_0 : i32, i32
  }
  func.func @transform_4(%arg0: i32, %arg1: i32) -> (i32, i32) {
    %c0_i32 = arith.constant 0 : i32
    %c0_i32_0 = arith.constant 0 : i32
    %c0_i32_1 = arith.constant 0 : i32
    return %c0_i32, %c0_i32_0 : i32, i32
  }
  func.func @transform_5(%arg0: i32, %arg1: i32) -> (i32, i32) {
    %c0_i32 = arith.constant 0 : i32
    %c0_i32_0 = arith.constant 0 : i32
    %c0_i32_1 = arith.constant 0 : i32
    return %c0_i32, %c0_i32_0 : i32, i32
  }
  func.func @transform_6(%arg0: i32, %arg1: i32) -> (i32, i32) {
    %c0_i32 = arith.constant 0 : i32
    %c0_i32_0 = arith.constant 0 : i32
    %c0_i32_1 = arith.constant 0 : i32
    return %c0_i32, %c0_i32_0 : i32, i32
  }
  func.func @transform_7(%arg0: i32, %arg1: i32) -> (i32, i32, i32) {
    %c0_i32 = arith.constant 0 : i32
    %c0_i32_0 = arith.constant 0 : i32
    return %arg0, %arg1, %c0_i32 : i32, i32, i32
  }
}

module attributes {stable_mosaic.version = 11 : i64} {
  func.func @_mha_kernel(%arg0: i32, %arg1: i32, %arg2: memref<1x8x32xf32, #tpu.memory_space<vmem>>, %arg3: memref<32x32xf32, #tpu.memory_space<vmem>>, %arg4: memref<1x32xf32, #tpu.memory_space<vmem>>, %arg5: memref<32x64xf32, #tpu.memory_space<vmem>>, %arg6: memref<1x64xf32, #tpu.memory_space<vmem>>, %arg7: memref<32x32xf32, #tpu.memory_space<vmem>>, %arg8: memref<1x32xf32, #tpu.memory_space<vmem>>, %arg9: memref<1x8x32xf32, #tpu.memory_space<vmem>>, %arg10: memref<8x64xf32, #tpu.memory_space<vmem>>, %arg11: memref<8x32xf32, #tpu.memory_space<vmem>>, %arg12: memref<8x32xf32, #tpu.memory_space<vmem>>) attributes {dimension_semantics = [#tpu.dimension_semantics<parallel>, #tpu.dimension_semantics<arbitrary>], iteration_bounds = array<i64: 2, 1>, scalar_prefetch = 0 : i64, scratch_operands = 3 : i64, tpu.core_type = #tpu.core_type<tc>, window_params = [{transform_indices = @transform_0, window_bounds = array<i64: 1, 8, 32>}, {pipeline_mode = #tpu.pipeline_mode<synchronous>, transform_indices = @transform_1, window_bounds = array<i64: 32, 32>}, {pipeline_mode = #tpu.pipeline_mode<synchronous>, transform_indices = @transform_2, window_bounds = array<i64: 1, 32>}, {pipeline_mode = #tpu.pipeline_mode<synchronous>, transform_indices = @transform_3, window_bounds = array<i64: 32, 64>}, {pipeline_mode = #tpu.pipeline_mode<synchronous>, transform_indices = @transform_4, window_bounds = array<i64: 1, 64>}, {pipeline_mode = #tpu.pipeline_mode<synchronous>, transform_indices = @transform_5, window_bounds = array<i64: 32, 32>}, {pipeline_mode = #tpu.pipeline_mode<synchronous>, transform_indices = @transform_6, window_bounds = array<i64: 1, 32>}, {transform_indices = @transform_7, window_bounds = array<i64: 1, 8, 32>}]} {
    %c0_i32 = arith.constant 0 : i32
    %0 = arith.cmpi eq, %arg1, %c0_i32 : i32
    %1 = arith.extui %0 : i1 to i32
    %c0_i32_0 = arith.constant 0 : i32
    %2 = arith.cmpi ne, %1, %c0_i32_0 : i32
    scf.if %2 {
      %c0_i32_78 = arith.constant 0 : i32
      %c8_i32_79 = arith.constant 8 : i32
      %155 = arith.muli %c0_i32_78, %c8_i32_79 : i32
      %156 = tpu.assume_multiple %155, 8 : i32
      %c0_80 = arith.constant 0 : index
      %157 = arith.index_cast %156 : i32 to index
      %c0_81 = arith.constant 0 : index
      %158 = vector.load %arg2[%c0_80, %157, %c0_81] : memref<1x8x32xf32, #tpu.memory_space<vmem>>, vector<1x8x32xf32>
      %159 = vector.shape_cast %158 : vector<1x8x32xf32> to vector<8x32xf32>
      %c0_82 = arith.constant 0 : index
      %c0_83 = arith.constant 0 : index
      %160 = vector.load %arg5[%c0_82, %c0_83] : memref<32x64xf32, #tpu.memory_space<vmem>>, vector<32x64xf32>
      %cst_84 = arith.constant dense<0.000000e+00> : vector<8x64xf32>
      %161 = tpu.matmul %159, %160, %cst_84 {dimension_numbers = #tpu.dot_dimension_numbers<[1], [0], [0], [1], [0, 0, 1, 1], [], []>} : vector<8x32xf32>, vector<32x64xf32>, vector<8x64xf32> -> vector<8x64xf32>
      %c0_85 = arith.constant 0 : index
      %c0_86 = arith.constant 0 : index
      %162 = vector.load %arg6[%c0_85, %c0_86] : memref<1x64xf32, #tpu.memory_space<vmem>>, vector<1x64xf32>
      %163 = vector.broadcast %162 : vector<1x64xf32> to vector<8x64xf32>
      %164 = arith.addf %161, %163 : vector<8x64xf32>
      %165 = arith.index_cast %156 : i32 to index
      %c0_87 = arith.constant 0 : index
      %166 = vector.load %arg10[%165, %c0_87] : memref<8x64xf32, #tpu.memory_space<vmem>>, vector<8x64xf32>
      tpu.vector_store %arg10[%165, %c0_87], %164 {strides = array<i32>} : memref<8x64xf32, #tpu.memory_space<vmem>>, vector<8x64xf32>,
      %c1_i32_88 = arith.constant 1 : i32
    } else {
    }
    %c8_i32 = arith.constant 8 : i32
    %3 = arith.muli %arg1, %c8_i32 : i32
    %4 = tpu.assume_multiple %3, 8 : i32
    %c0 = arith.constant 0 : index
    %5 = arith.index_cast %4 : i32 to index
    %c0_1 = arith.constant 0 : index
    %6 = vector.load %arg2[%c0, %5, %c0_1] : memref<1x8x32xf32, #tpu.memory_space<vmem>>, vector<1x8x32xf32>
    %7 = vector.shape_cast %6 : vector<1x8x32xf32> to vector<8x32xf32>
    %c0_2 = arith.constant 0 : index
    %c0_3 = arith.constant 0 : index
    %8 = vector.load %arg3[%c0_2, %c0_3] : memref<32x32xf32, #tpu.memory_space<vmem>>, vector<32x32xf32>
    %cst = arith.constant dense<0.000000e+00> : vector<8x32xf32>
    %9 = tpu.matmul %7, %8, %cst {dimension_numbers = #tpu.dot_dimension_numbers<[1], [0], [0], [1], [0, 0, 1, 1], [], []>} : vector<8x32xf32>, vector<32x32xf32>, vector<8x32xf32> -> vector<8x32xf32>
    %c0_4 = arith.constant 0 : index
    %c0_5 = arith.constant 0 : index
    %10 = vector.load %arg4[%c0_4, %c0_5] : memref<1x32xf32, #tpu.memory_space<vmem>>, vector<1x32xf32>
    %11 = vector.broadcast %10 : vector<1x32xf32> to vector<8x32xf32>
    %12 = arith.addf %9, %11 : vector<8x32xf32>
    %c0_6 = arith.constant 0 : index
    %c0_7 = arith.constant 0 : index
    %13 = vector.load %arg11[%c0_6, %c0_7] : memref<8x32xf32, #tpu.memory_space<vmem>>, vector<8x32xf32>
    tpu.vector_store %arg11[%c0_6, %c0_7], %12 {strides = array<i32>} : memref<8x32xf32, #tpu.memory_space<vmem>>, vector<8x32xf32>,
    %c0_8 = arith.constant 0 : index
    %c0_9 = arith.constant 0 : index
    %14 = vector.load %arg11[%c0_8, %c0_9] : memref<8x32xf32, #tpu.memory_space<vmem>>, vector<8x8xf32>
    %cst_10 = arith.constant 0xFF800000 : f32
    %15 = vector.broadcast %cst_10 : f32 to vector<8x1xf32>
    %cst_11 = arith.constant 0.000000e+00 : f32
    %16 = vector.broadcast %cst_11 : f32 to vector<8x1xf32>
    %cst_12 = arith.constant 0.000000e+00 : f32
    %17 = vector.broadcast %cst_12 : f32 to vector<8x8xf32>
    %c0_i32_13 = arith.constant 0 : i32
    %c8_i32_14 = arith.constant 8 : i32
    %18 = arith.muli %c0_i32_13, %c8_i32_14 : i32
    %19 = tpu.assume_multiple %18, 8 : i32
    %20 = arith.index_cast %19 : i32 to index
    %c0_15 = arith.constant 0 : index
    %21 = vector.load %arg10[%20, %c0_15] : memref<8x64xf32, #tpu.memory_space<vmem>>, vector<8x8xf32>
    %22 = arith.index_cast %19 : i32 to index
    %c32 = arith.constant 32 : index
    %23 = vector.load %arg10[%22, %c32] : memref<8x64xf32, #tpu.memory_space<vmem>>, vector<8x8xf32>
    %cst_16 = arith.constant dense<0.000000e+00> : vector<8x8xf32>
    %24 = tpu.matmul %14, %21, %cst_16 {dimension_numbers = #tpu.dot_dimension_numbers<[1], [1], [0], [0], [0, 0, 1, 0], [], []>} : vector<8x8xf32>, vector<8x8xf32>, vector<8x8xf32> -> vector<8x8xf32>
    %cst_17 = arith.constant 0.353553385 : f32
    %25 = vector.broadcast %cst_17 : f32 to vector<8x8xf32>
    %26 = arith.mulf %24, %25 : vector<8x8xf32>
    %cst_18 = arith.constant dense<0xFF800000> : vector<8xf32>
    %27 = vector.multi_reduction <maximumf>, %26, %cst_18 [1] : vector<8x8xf32> to vector<8xf32>
    %28 = vector.shape_cast %27 : vector<8xf32> to vector<8x1xf32>
    %29 = arith.maximumf %15, %28 : vector<8x1xf32>
    %30 = arith.subf %15, %29 : vector<8x1xf32>
    %31 = math.exp %30 : vector<8x1xf32>
    %32 = vector.broadcast %29 : vector<8x1xf32> to vector<8x8xf32>
    %33 = arith.subf %26, %32 : vector<8x8xf32>
    %34 = math.exp %33 : vector<8x8xf32>
    %35 = arith.mulf %31, %16 : vector<8x1xf32>
    %cst_19 = arith.constant dense<0.000000e+00> : vector<8xf32>
    %36 = vector.multi_reduction <add>, %34, %cst_19 [1] : vector<8x8xf32> to vector<8xf32>
    %37 = vector.shape_cast %36 : vector<8xf32> to vector<8x1xf32>
    %38 = arith.addf %35, %37 : vector<8x1xf32>
    %39 = vector.broadcast %31 : vector<8x1xf32> to vector<8x8xf32>
    %40 = arith.mulf %39, %17 : vector<8x8xf32>
    %cst_20 = arith.constant dense<0.000000e+00> : vector<8x8xf32>
    %41 = tpu.matmul %34, %23, %cst_20 {dimension_numbers = #tpu.dot_dimension_numbers<[1], [0], [0], [1], [0, 0, 1, 1], [], []>} : vector<8x8xf32>, vector<8x8xf32>, vector<8x8xf32> -> vector<8x8xf32>
    %42 = arith.addf %40, %41 : vector<8x8xf32>
    %c1_i32 = arith.constant 1 : i32
    %43 = tpu.reciprocal %38 : vector<8x1xf32> -> vector<8x1xf32>
    %44 = vector.broadcast %43 : vector<8x1xf32> to vector<8x8xf32>
    %45 = arith.mulf %42, %44 : vector<8x8xf32>
    %c0_21 = arith.constant 0 : index
    %c0_22 = arith.constant 0 : index
    %46 = vector.load %arg12[%c0_21, %c0_22] : memref<8x32xf32, #tpu.memory_space<vmem>>, vector<8x8xf32>
    tpu.vector_store %arg12[%c0_21, %c0_22], %45 {strides = array<i32>} : memref<8x32xf32, #tpu.memory_space<vmem>>, vector<8x8xf32>,
    %c0_23 = arith.constant 0 : index
    %c8 = arith.constant 8 : index
    %47 = vector.load %arg11[%c0_23, %c8] : memref<8x32xf32, #tpu.memory_space<vmem>>, vector<8x8xf32>
    %cst_24 = arith.constant 0xFF800000 : f32
    %48 = vector.broadcast %cst_24 : f32 to vector<8x1xf32>
    %cst_25 = arith.constant 0.000000e+00 : f32
    %49 = vector.broadcast %cst_25 : f32 to vector<8x1xf32>
    %cst_26 = arith.constant 0.000000e+00 : f32
    %50 = vector.broadcast %cst_26 : f32 to vector<8x8xf32>
    %c0_i32_27 = arith.constant 0 : i32
    %c8_i32_28 = arith.constant 8 : i32
    %51 = arith.muli %c0_i32_27, %c8_i32_28 : i32
    %52 = tpu.assume_multiple %51, 8 : i32
    %53 = arith.index_cast %52 : i32 to index
    %c8_29 = arith.constant 8 : index
    %54 = vector.load %arg10[%53, %c8_29] : memref<8x64xf32, #tpu.memory_space<vmem>>, vector<8x8xf32>
    %55 = arith.index_cast %52 : i32 to index
    %c40 = arith.constant 40 : index
    %56 = vector.load %arg10[%55, %c40] : memref<8x64xf32, #tpu.memory_space<vmem>>, vector<8x8xf32>
    %cst_30 = arith.constant dense<0.000000e+00> : vector<8x8xf32>
    %57 = tpu.matmul %47, %54, %cst_30 {dimension_numbers = #tpu.dot_dimension_numbers<[1], [1], [0], [0], [0, 0, 1, 0], [], []>} : vector<8x8xf32>, vector<8x8xf32>, vector<8x8xf32> -> vector<8x8xf32>
    %cst_31 = arith.constant 0.353553385 : f32
    %58 = vector.broadcast %cst_31 : f32 to vector<8x8xf32>
    %59 = arith.mulf %57, %58 : vector<8x8xf32>
    %cst_32 = arith.constant dense<0xFF800000> : vector<8xf32>
    %60 = vector.multi_reduction <maximumf>, %59, %cst_32 [1] : vector<8x8xf32> to vector<8xf32>
    %61 = vector.shape_cast %60 : vector<8xf32> to vector<8x1xf32>
    %62 = arith.maximumf %48, %61 : vector<8x1xf32>
    %63 = arith.subf %48, %62 : vector<8x1xf32>
    %64 = math.exp %63 : vector<8x1xf32>
    %65 = vector.broadcast %62 : vector<8x1xf32> to vector<8x8xf32>
    %66 = arith.subf %59, %65 : vector<8x8xf32>
    %67 = math.exp %66 : vector<8x8xf32>
    %68 = arith.mulf %64, %49 : vector<8x1xf32>
    %cst_33 = arith.constant dense<0.000000e+00> : vector<8xf32>
    %69 = vector.multi_reduction <add>, %67, %cst_33 [1] : vector<8x8xf32> to vector<8xf32>
    %70 = vector.shape_cast %69 : vector<8xf32> to vector<8x1xf32>
    %71 = arith.addf %68, %70 : vector<8x1xf32>
    %72 = vector.broadcast %64 : vector<8x1xf32> to vector<8x8xf32>
    %73 = arith.mulf %72, %50 : vector<8x8xf32>
    %cst_34 = arith.constant dense<0.000000e+00> : vector<8x8xf32>
    %74 = tpu.matmul %67, %56, %cst_34 {dimension_numbers = #tpu.dot_dimension_numbers<[1], [0], [0], [1], [0, 0, 1, 1], [], []>} : vector<8x8xf32>, vector<8x8xf32>, vector<8x8xf32> -> vector<8x8xf32>
    %75 = arith.addf %73, %74 : vector<8x8xf32>
    %c1_i32_35 = arith.constant 1 : i32
    %76 = tpu.reciprocal %71 : vector<8x1xf32> -> vector<8x1xf32>
    %77 = vector.broadcast %76 : vector<8x1xf32> to vector<8x8xf32>
    %78 = arith.mulf %75, %77 : vector<8x8xf32>
    %c0_36 = arith.constant 0 : index
    %c8_37 = arith.constant 8 : index
    %79 = vector.load %arg12[%c0_36, %c8_37] : memref<8x32xf32, #tpu.memory_space<vmem>>, vector<8x8xf32>
    tpu.vector_store %arg12[%c0_36, %c8_37], %78 {strides = array<i32>} : memref<8x32xf32, #tpu.memory_space<vmem>>, vector<8x8xf32>,
    %c0_38 = arith.constant 0 : index
    %c16 = arith.constant 16 : index
    %80 = vector.load %arg11[%c0_38, %c16] : memref<8x32xf32, #tpu.memory_space<vmem>>, vector<8x8xf32>
    %cst_39 = arith.constant 0xFF800000 : f32
    %81 = vector.broadcast %cst_39 : f32 to vector<8x1xf32>
    %cst_40 = arith.constant 0.000000e+00 : f32
    %82 = vector.broadcast %cst_40 : f32 to vector<8x1xf32>
    %cst_41 = arith.constant 0.000000e+00 : f32
    %83 = vector.broadcast %cst_41 : f32 to vector<8x8xf32>
    %c0_i32_42 = arith.constant 0 : i32
    %c8_i32_43 = arith.constant 8 : i32
    %84 = arith.muli %c0_i32_42, %c8_i32_43 : i32
    %85 = tpu.assume_multiple %84, 8 : i32
    %86 = arith.index_cast %85 : i32 to index
    %c16_44 = arith.constant 16 : index
    %87 = vector.load %arg10[%86, %c16_44] : memref<8x64xf32, #tpu.memory_space<vmem>>, vector<8x8xf32>
    %88 = arith.index_cast %85 : i32 to index
    %c48 = arith.constant 48 : index
    %89 = vector.load %arg10[%88, %c48] : memref<8x64xf32, #tpu.memory_space<vmem>>, vector<8x8xf32>
    %cst_45 = arith.constant dense<0.000000e+00> : vector<8x8xf32>
    %90 = tpu.matmul %80, %87, %cst_45 {dimension_numbers = #tpu.dot_dimension_numbers<[1], [1], [0], [0], [0, 0, 1, 0], [], []>} : vector<8x8xf32>, vector<8x8xf32>, vector<8x8xf32> -> vector<8x8xf32>
    %cst_46 = arith.constant 0.353553385 : f32
    %91 = vector.broadcast %cst_46 : f32 to vector<8x8xf32>
    %92 = arith.mulf %90, %91 : vector<8x8xf32>
    %cst_47 = arith.constant dense<0xFF800000> : vector<8xf32>
    %93 = vector.multi_reduction <maximumf>, %92, %cst_47 [1] : vector<8x8xf32> to vector<8xf32>
    %94 = vector.shape_cast %93 : vector<8xf32> to vector<8x1xf32>
    %95 = arith.maximumf %81, %94 : vector<8x1xf32>
    %96 = arith.subf %81, %95 : vector<8x1xf32>
    %97 = math.exp %96 : vector<8x1xf32>
    %98 = vector.broadcast %95 : vector<8x1xf32> to vector<8x8xf32>
    %99 = arith.subf %92, %98 : vector<8x8xf32>
    %100 = math.exp %99 : vector<8x8xf32>
    %101 = arith.mulf %97, %82 : vector<8x1xf32>
    %cst_48 = arith.constant dense<0.000000e+00> : vector<8xf32>
    %102 = vector.multi_reduction <add>, %100, %cst_48 [1] : vector<8x8xf32> to vector<8xf32>
    %103 = vector.shape_cast %102 : vector<8xf32> to vector<8x1xf32>
    %104 = arith.addf %101, %103 : vector<8x1xf32>
    %105 = vector.broadcast %97 : vector<8x1xf32> to vector<8x8xf32>
    %106 = arith.mulf %105, %83 : vector<8x8xf32>
    %cst_49 = arith.constant dense<0.000000e+00> : vector<8x8xf32>
    %107 = tpu.matmul %100, %89, %cst_49 {dimension_numbers = #tpu.dot_dimension_numbers<[1], [0], [0], [1], [0, 0, 1, 1], [], []>} : vector<8x8xf32>, vector<8x8xf32>, vector<8x8xf32> -> vector<8x8xf32>
    %108 = arith.addf %106, %107 : vector<8x8xf32>
    %c1_i32_50 = arith.constant 1 : i32
    %109 = tpu.reciprocal %104 : vector<8x1xf32> -> vector<8x1xf32>
    %110 = vector.broadcast %109 : vector<8x1xf32> to vector<8x8xf32>
    %111 = arith.mulf %108, %110 : vector<8x8xf32>
    %c0_51 = arith.constant 0 : index
    %c16_52 = arith.constant 16 : index
    %112 = vector.load %arg12[%c0_51, %c16_52] : memref<8x32xf32, #tpu.memory_space<vmem>>, vector<8x8xf32>
    tpu.vector_store %arg12[%c0_51, %c16_52], %111 {strides = array<i32>} : memref<8x32xf32, #tpu.memory_space<vmem>>, vector<8x8xf32>,
    %c0_53 = arith.constant 0 : index
    %c24 = arith.constant 24 : index
    %113 = vector.load %arg11[%c0_53, %c24] : memref<8x32xf32, #tpu.memory_space<vmem>>, vector<8x8xf32>
    %cst_54 = arith.constant 0xFF800000 : f32
    %114 = vector.broadcast %cst_54 : f32 to vector<8x1xf32>
    %cst_55 = arith.constant 0.000000e+00 : f32
    %115 = vector.broadcast %cst_55 : f32 to vector<8x1xf32>
    %cst_56 = arith.constant 0.000000e+00 : f32
    %116 = vector.broadcast %cst_56 : f32 to vector<8x8xf32>
    %c0_i32_57 = arith.constant 0 : i32
    %c8_i32_58 = arith.constant 8 : i32
    %117 = arith.muli %c0_i32_57, %c8_i32_58 : i32
    %118 = tpu.assume_multiple %117, 8 : i32
    %119 = arith.index_cast %118 : i32 to index
    %c24_59 = arith.constant 24 : index
    %120 = vector.load %arg10[%119, %c24_59] : memref<8x64xf32, #tpu.memory_space<vmem>>, vector<8x8xf32>
    %121 = arith.index_cast %118 : i32 to index
    %c56 = arith.constant 56 : index
    %122 = vector.load %arg10[%121, %c56] : memref<8x64xf32, #tpu.memory_space<vmem>>, vector<8x8xf32>
    %cst_60 = arith.constant dense<0.000000e+00> : vector<8x8xf32>
    %123 = tpu.matmul %113, %120, %cst_60 {dimension_numbers = #tpu.dot_dimension_numbers<[1], [1], [0], [0], [0, 0, 1, 0], [], []>} : vector<8x8xf32>, vector<8x8xf32>, vector<8x8xf32> -> vector<8x8xf32>
    %cst_61 = arith.constant 0.353553385 : f32
    %124 = vector.broadcast %cst_61 : f32 to vector<8x8xf32>
    %125 = arith.mulf %123, %124 : vector<8x8xf32>
    %cst_62 = arith.constant dense<0xFF800000> : vector<8xf32>
    %126 = vector.multi_reduction <maximumf>, %125, %cst_62 [1] : vector<8x8xf32> to vector<8xf32>
    %127 = vector.shape_cast %126 : vector<8xf32> to vector<8x1xf32>
    %128 = arith.maximumf %114, %127 : vector<8x1xf32>
    %129 = arith.subf %114, %128 : vector<8x1xf32>
    %130 = math.exp %129 : vector<8x1xf32>
    %131 = vector.broadcast %128 : vector<8x1xf32> to vector<8x8xf32>
    %132 = arith.subf %125, %131 : vector<8x8xf32>
    %133 = math.exp %132 : vector<8x8xf32>
    %134 = arith.mulf %130, %115 : vector<8x1xf32>
    %cst_63 = arith.constant dense<0.000000e+00> : vector<8xf32>
    %135 = vector.multi_reduction <add>, %133, %cst_63 [1] : vector<8x8xf32> to vector<8xf32>
    %136 = vector.shape_cast %135 : vector<8xf32> to vector<8x1xf32>
    %137 = arith.addf %134, %136 : vector<8x1xf32>
    %138 = vector.broadcast %130 : vector<8x1xf32> to vector<8x8xf32>
    %139 = arith.mulf %138, %116 : vector<8x8xf32>
    %cst_64 = arith.constant dense<0.000000e+00> : vector<8x8xf32>
    %140 = tpu.matmul %133, %122, %cst_64 {dimension_numbers = #tpu.dot_dimension_numbers<[1], [0], [0], [1], [0, 0, 1, 1], [], []>} : vector<8x8xf32>, vector<8x8xf32>, vector<8x8xf32> -> vector<8x8xf32>
    %141 = arith.addf %139, %140 : vector<8x8xf32>
    %c1_i32_65 = arith.constant 1 : i32
    %142 = tpu.reciprocal %137 : vector<8x1xf32> -> vector<8x1xf32>
    %143 = vector.broadcast %142 : vector<8x1xf32> to vector<8x8xf32>
    %144 = arith.mulf %141, %143 : vector<8x8xf32>
    %c0_66 = arith.constant 0 : index
    %c24_67 = arith.constant 24 : index
    %145 = vector.load %arg12[%c0_66, %c24_67] : memref<8x32xf32, #tpu.memory_space<vmem>>, vector<8x8xf32>
    tpu.vector_store %arg12[%c0_66, %c24_67], %144 {strides = array<i32>} : memref<8x32xf32, #tpu.memory_space<vmem>>, vector<8x8xf32>,
    %c0_68 = arith.constant 0 : index
    %c0_69 = arith.constant 0 : index
    %146 = vector.load %arg12[%c0_68, %c0_69] : memref<8x32xf32, #tpu.memory_space<vmem>>, vector<8x32xf32>
    %c0_70 = arith.constant 0 : index
    %c0_71 = arith.constant 0 : index
    %147 = vector.load %arg7[%c0_70, %c0_71] : memref<32x32xf32, #tpu.memory_space<vmem>>, vector<32x32xf32>
    %cst_72 = arith.constant dense<0.000000e+00> : vector<8x32xf32>
    %148 = tpu.matmul %146, %147, %cst_72 {dimension_numbers = #tpu.dot_dimension_numbers<[1], [0], [0], [1], [0, 0, 1, 1], [], []>} : vector<8x32xf32>, vector<32x32xf32>, vector<8x32xf32> -> vector<8x32xf32>
    %c0_73 = arith.constant 0 : index
    %c0_74 = arith.constant 0 : index
    %149 = vector.load %arg8[%c0_73, %c0_74] : memref<1x32xf32, #tpu.memory_space<vmem>>, vector<1x32xf32>
    %150 = vector.broadcast %149 : vector<1x32xf32> to vector<8x32xf32>
    %151 = arith.addf %148, %150 : vector<8x32xf32>
    %c0_75 = arith.constant 0 : index
    %c0_76 = arith.constant 0 : index
    %c0_77 = arith.constant 0 : index
    %152 = vector.load %arg9[%c0_75, %c0_76, %c0_77] : memref<1x8x32xf32, #tpu.memory_space<vmem>>, vector<1x8x32xf32>
    %153 = vector.shape_cast %152 : vector<1x8x32xf32> to vector<8x32xf32>
    %154 = vector.shape_cast %151 : vector<8x32xf32> to vector<1x8x32xf32>
    tpu.vector_store %arg9[%c0_75, %c0_76, %c0_77], %154 {strides = array<i32>} : memref<1x8x32xf32, #tpu.memory_space<vmem>>, vector<1x8x32xf32>,
    return
  }
  func.func @transform_0(%arg0: i32, %arg1: i32) -> (i32, i32, i32) {
    %c0_i32 = arith.constant 0 : i32
    %c0_i32_0 = arith.constant 0 : i32
    %c0_i32_1 = arith.constant 0 : i32
    return %arg0, %c0_i32, %c0_i32_0 : i32, i32, i32
  }
  func.func @transform_1(%arg0: i32, %arg1: i32) -> (i32, i32) {
    %c0_i32 = arith.constant 0 : i32
    %c0_i32_0 = arith.constant 0 : i32
    %c0_i32_1 = arith.constant 0 : i32
    return %c0_i32, %c0_i32_0 : i32, i32
  }
  func.func @transform_2(%arg0: i32, %arg1: i32) -> (i32, i32) {
    %c0_i32 = arith.constant 0 : i32
    %c0_i32_0 = arith.constant 0 : i32
    %c0_i32_1 = arith.constant 0 : i32
    return %c0_i32, %c0_i32_0 : i32, i32
  }
  func.func @transform_3(%arg0: i32, %arg1: i32) -> (i32, i32) {
    %c0_i32 = arith.constant 0 : i32
    %c0_i32_0 = arith.constant 0 : i32
    %c0_i32_1 = arith.constant 0 : i32
    return %c0_i32, %c0_i32_0 : i32, i32
  }
  func.func @transform_4(%arg0: i32, %arg1: i32) -> (i32, i32) {
    %c0_i32 = arith.constant 0 : i32
    %c0_i32_0 = arith.constant 0 : i32
    %c0_i32_1 = arith.constant 0 : i32
    return %c0_i32, %c0_i32_0 : i32, i32
  }
  func.func @transform_5(%arg0: i32, %arg1: i32) -> (i32, i32) {
    %c0_i32 = arith.constant 0 : i32
    %c0_i32_0 = arith.constant 0 : i32
    %c0_i32_1 = arith.constant 0 : i32
    return %c0_i32, %c0_i32_0 : i32, i32
  }
  func.func @transform_6(%arg0: i32, %arg1: i32) -> (i32, i32) {
    %c0_i32 = arith.constant 0 : i32
    %c0_i32_0 = arith.constant 0 : i32
    %c0_i32_1 = arith.constant 0 : i32
    return %c0_i32, %c0_i32_0 : i32, i32
  }
  func.func @transform_7(%arg0: i32, %arg1: i32) -> (i32, i32, i32) {
    %c0_i32 = arith.constant 0 : i32
    %c0_i32_0 = arith.constant 0 : i32
    return %arg0, %arg1, %c0_i32 : i32, i32, i32
  }
}

</mosaic_0001>

<llo_original>
// kernel: tpu_custom_call.1
$region0: #{tpu_custom_call.1}
  #allocation0 [shape = 'u32[]', space=smem, size = 0x4, offset = 0x4, fixed_abs, tag = 'smem constant byte address 0x4 - core index']
  #allocation1 [shape = 'u32[144,128]{1,0:T(1,128)}', space=vmem, size = 0x12000, scoped, tag = 'internal scratch']
  #allocation2 [shape = 'f32[8,64]{1,0:T(8,128)}', space=vmem, size = 0x1000, scoped, tag = 'scratch operand']
  #allocation3 [shape = 'f32[8,32]{1,0:T(8,128)}', space=vmem, size = 0x1000, scoped, tag = 'scratch operand']
  #allocation4 [shape = 'f32[8,32]{1,0:T(8,128)}', space=vmem, size = 0x1000, scoped, tag = 'scratch operand']
  %s0 = inlined_call_operand.hbm [shape: f32[2,8,32], index: 0, kind: input, shape index: {}]
  %s1 = inlined_call_operand.hbm [shape: f32[32,32], index: 1, kind: input, shape index: {}]
  %s2 = inlined_call_operand.vmem [shape: f32[1,32], index: 2, kind: input, shape index: {}]
  %s3 = inlined_call_operand.hbm [shape: f32[32,64], index: 3, kind: input, shape index: {}]
  %s4 = inlined_call_operand.vmem [shape: f32[1,64], index: 4, kind: input, shape index: {}]
  %s5 = inlined_call_operand.hbm [shape: f32[32,32], index: 5, kind: input, shape index: {}]
  %s6 = inlined_call_operand.vmem [shape: f32[1,32], index: 6, kind: input, shape index: {}]
  %s7 = inlined_call_operand.hbm [shape: f32[2,8,32], index: 7, kind: output, shape index: {}]
  %s8 = sld [smem:[#allocation0]]
  $region81: #{tpu_custom_call.1} parent=0
    _
  %s10 = ssub.s32 1, %s8
  %s11 = scalar_select 0, %s10, %s8
  $region1: #{tpu_custom_call.1} parent=0
    #allocation5 [shape = 'u8[8192]{0}', space=vmem, size = 0x2000, scoped, tag = 'input window, operand 0']
    #allocation6 [shape = 's32[2]{0}', space=sflag, size = 0x8, scoped, tag = 'scoped memory for tpu_custom_call.1']
    #allocation7 [shape = 's32[2]{0}', space=sflag, size = 0x8, scoped, tag = 'scoped memory for tpu_custom_call.1']
    #allocation8 [shape = 'u8[16384]{0}', space=vmem, size = 0x4000, scoped, tag = 'input window, operand 1, single buffered']
    #allocation9 [shape = 's32[1]{0}', space=sflag, size = 0x4, scoped, tag = 'scoped memory for tpu_custom_call.1']
    #allocation10 [shape = 'u8[16384]{0}', space=vmem, size = 0x4000, scoped, tag = 'input window, operand 3, single buffered']
    #allocation11 [shape = 'u8[16384]{0}', space=vmem, size = 0x4000, scoped, tag = 'input window, operand 5, single buffered']
    #allocation12 [shape = 's32[1]{0}', space=sflag, size = 0x4, scoped, tag = 'scoped memory for tpu_custom_call.1']
    #allocation13 [shape = 'u8[8192]{0}', space=vmem, size = 0x2000, scoped, tag = 'output window, operand 0']
    %12 = vsyncpa [#allocation6], 0
    %s13 = scalar_lea.sflag [#allocation6], 1
    %14 = vsyncpa %s13, 0
    %15 = vsyncpa [#allocation9], 0
    %16 = vsyncpa [#allocation12], 0
    %17 = vsyncpa [#allocation7], 0
    %s18 = scalar_lea.sflag [#allocation7], 1
    %19 = vsyncpa %s18, 0
    loop: start=0, step=1, limit=4
    $region2: #{tpu_custom_call.1} parent=1 // loop_pre_header
      _
    $region3: #{tpu_custom_call.1} parent=1 // loop_header
      %s21 = sphi 0, %s25
      %p22 = scmp.ge.s32.totalorder %s21, 4
      %s28 = sphi 0, %s40
      %s29 = sphi 0, %s36
      %s30 = sphi 0, %s28
      %s31 = sphi 0, %s29
      %s32 = sphi 0, %s30
      %s33 = sphi 0, %s31
      %s43 = sphi 0, %s45
      %s46 = sphi 0, %s43
      %s47 = sphi 0, %s46
      %s63 = sphi 0, %s47
      %s67 = sphi 0, %s67
      %s69 = sphi 0, %s67
      %s70 = sphi 0, %s69
      %s84 = sphi 0, %s70
      %s88 = sphi 0, %s88
      %s90 = sphi 0, %s88
      %s91 = sphi 0, %s90
      %s105 = sphi 0, %s91
      %s109 = sphi 0, %s109
      %s111 = sphi 0, %s109
      %s112 = sphi 0, %s111
      %s126 = sphi 0, %s112
      %s130 = sphi 0, %s130
      %s132 = sphi 0, %s130
      %s133 = sphi 0, %s132
      %s147 = sphi 0, %s133
      %s151 = sphi 0, %s151
      %s153 = sphi 0, %s151
      %s154 = sphi 0, %s153
      %s168 = sphi 0, %s154
      %s172 = sphi 0, %s172
      %s174 = sphi 0, %s172
      %s175 = sphi 0, %s174
      %s189 = sphi 0, %s175
      %s197 = sphi 0, %s199
      %s200 = sphi 0, %s197
      %s201 = sphi 0, %s200
      %s217 = sphi 0, %s201
    $region4: #{tpu_custom_call.1} parent=1 // loop_header_branch
      %24 = sbr.rel (%p22) target = $region8
    $region5: #{tpu_custom_call.1} parent=1 // loop_body
      %s26 = ssub.s32 %s21, 1
      %s27 = ssub.s32 %s21, 2
      %s34 = sadd.s32 1, %s29
      %p35 = scmp.ge.s32.totalorder %s34, 1
      %s36 = scalar_select %p35, 0, %s34
      %s37 = sadd.s32 1, %s28
      %s38 = scalar_select %p35, %s37, %s28
      %p39 = scmp.ge.s32.totalorder %s38, 2
      %s40 = scalar_select %p39, 0, %s38
      %s41 = ssub.s32 %s28, %s40
      %p42 = scmp.eq.s32.totalorder %s41, 0
      %s44 = sadd.s32 %s43, 1
      %s45 = scalar_select %p42, %s43, %s44
      %p48 = pneg %p42
      %p49 = scmp.eq.s32.totalorder %s21, 1
      %p50 = por %p48, %p49
      %p51 = scmp.ne.s32.totalorder %s43, %s46
      %p52 = scmp.eq.s32.totalorder %s21, 0
      %p53 = por %p51, %p52
      %p54 = scmp.ne.s32.totalorder %s43, %s46
      %p55 = scmp.eq.s32.totalorder %s26, 1
      %p56 = por %p54, %p55
      %p57 = scmp.ne.s32.totalorder %s46, %s47
      %p58 = scmp.eq.s32.totalorder %s26, 0
      %p59 = por %p57, %p58
      %p60 = scmp.ne.s32.totalorder %s46, %s47
      %p61 = scmp.eq.s32.totalorder %s27, 1
      %p62 = por %p60, %p61
      %p64 = scmp.ne.s32.totalorder %s47, %s63
      %p65 = scmp.eq.s32.totalorder %s27, 0
      %p66 = por %p64, %p65
      %s68 = sadd.s32 %s67, 1
      %p71 = scmp.eq.s32.totalorder %s21, 1
      %p72 = scmp.ne.s32.totalorder %s67, %s69
      %p73 = scmp.eq.s32.totalorder %s21, 0
      %p74 = por %p72, %p73
      %p75 = scmp.ne.s32.totalorder %s67, %s69
      %p76 = scmp.eq.s32.totalorder %s26, 1
      %p77 = por %p75, %p76
      %p78 = scmp.ne.s32.totalorder %s69, %s70
      %p79 = scmp.eq.s32.totalorder %s26, 0
      %p80 = por %p78, %p79
      %p81 = scmp.ne.s32.totalorder %s69, %s70
      %p82 = scmp.eq.s32.totalorder %s27, 1
      %p83 = por %p81, %p82
      %p85 = scmp.ne.s32.totalorder %s70, %s84
      %p86 = scmp.eq.s32.totalorder %s27, 0
      %p87 = por %p85, %p86
      %s89 = sadd.s32 %s88, 1
      %p92 = scmp.eq.s32.totalorder %s21, 1
      %p93 = scmp.ne.s32.totalorder %s88, %s90
      %p94 = scmp.eq.s32.totalorder %s21, 0
      %p95 = por %p93, %p94
      %p96 = scmp.ne.s32.totalorder %s88, %s90
      %p97 = scmp.eq.s32.totalorder %s26, 1
      %p98 = por %p96, %p97
      %p99 = scmp.ne.s32.totalorder %s90, %s91
      %p100 = scmp.eq.s32.totalorder %s26, 0
      %p101 = por %p99, %p100
      %p102 = scmp.ne.s32.totalorder %s90, %s91
      %p103 = scmp.eq.s32.totalorder %s27, 1
      %p104 = por %p102, %p103
      %p106 = scmp.ne.s32.totalorder %s91, %s105
      %p107 = scmp.eq.s32.totalorder %s27, 0
      %p108 = por %p106, %p107
      %s110 = sadd.s32 %s109, 1
      %p113 = scmp.eq.s32.totalorder %s21, 1
      %p114 = scmp.ne.s32.totalorder %s109, %s111
      %p115 = scmp.eq.s32.totalorder %s21, 0
      %p116 = por %p114, %p115
      %p117 = scmp.ne.s32.totalorder %s109, %s111
      %p118 = scmp.eq.s32.totalorder %s26, 1
      %p119 = por %p117, %p118
      %p120 = scmp.ne.s32.totalorder %s111, %s112
      %p121 = scmp.eq.s32.totalorder %s26, 0
      %p122 = por %p120, %p121
      %p123 = scmp.ne.s32.totalorder %s111, %s112
      %p124 = scmp.eq.s32.totalorder %s27, 1
      %p125 = por %p123, %p124
      %p127 = scmp.ne.s32.totalorder %s112, %s126
      %p128 = scmp.eq.s32.totalorder %s27, 0
      %p129 = por %p127, %p128
      %s131 = sadd.s32 %s130, 1
      %p134 = scmp.eq.s32.totalorder %s21, 1
      %p135 = scmp.ne.s32.totalorder %s130, %s132
      %p136 = scmp.eq.s32.totalorder %s21, 0
      %p137 = por %p135, %p136
      %p138 = scmp.ne.s32.totalorder %s130, %s132
      %p139 = scmp.eq.s32.totalorder %s26, 1
      %p140 = por %p138, %p139
      %p141 = scmp.ne.s32.totalorder %s132, %s133
      %p142 = scmp.eq.s32.totalorder %s26, 0
      %p143 = por %p141, %p142
      %p144 = scmp.ne.s32.totalorder %s132, %s133
      %p145 = scmp.eq.s32.totalorder %s27, 1
      %p146 = por %p144, %p145
      %p148 = scmp.ne.s32.totalorder %s133, %s147
      %p149 = scmp.eq.s32.totalorder %s27, 0
      %p150 = por %p148, %p149
      %s152 = sadd.s32 %s151, 1
      %p155 = scmp.eq.s32.totalorder %s21, 1
      %p156 = scmp.ne.s32.totalorder %s151, %s153
      %p157 = scmp.eq.s32.totalorder %s21, 0
      %p158 = por %p156, %p157
      %p159 = scmp.ne.s32.totalorder %s151, %s153
      %p160 = scmp.eq.s32.totalorder %s26, 1
      %p161 = por %p159, %p160
      %p162 = scmp.ne.s32.totalorder %s153, %s154
      %p163 = scmp.eq.s32.totalorder %s26, 0
      %p164 = por %p162, %p163
      %p165 = scmp.ne.s32.totalorder %s153, %s154
      %p166 = scmp.eq.s32.totalorder %s27, 1
      %p167 = por %p165, %p166
      %p169 = scmp.ne.s32.totalorder %s154, %s168
      %p170 = scmp.eq.s32.totalorder %s27, 0
      %p171 = por %p169, %p170
      %s173 = sadd.s32 %s172, 1
      %p176 = scmp.eq.s32.totalorder %s21, 1
      %p177 = scmp.ne.s32.totalorder %s172, %s174
      %p178 = scmp.eq.s32.totalorder %s21, 0
      %p179 = por %p177, %p178
      %p180 = scmp.ne.s32.totalorder %s172, %s174
      %p181 = scmp.eq.s32.totalorder %s26, 1
      %p182 = por %p180, %p181
      %p183 = scmp.ne.s32.totalorder %s174, %s175
      %p184 = scmp.eq.s32.totalorder %s26, 0
      %p185 = por %p183, %p184
      %p186 = scmp.ne.s32.totalorder %s174, %s175
      %p187 = scmp.eq.s32.totalorder %s27, 1
      %p188 = por %p186, %p187
      %p190 = scmp.ne.s32.totalorder %s175, %s189
      %p191 = scmp.eq.s32.totalorder %s27, 0
      %p192 = por %p190, %p191
      %s193 = ssub.s32 %s28, %s40
      %s194 = ssub.s32 %s29, %s36
      %s195 = sor.u32 %s193, %s194
      %p196 = scmp.eq.s32.totalorder %s195, 0
      %s198 = sadd.s32 %s197, 1
      %s199 = scalar_select %p196, %s197, %s198
      %p202 = pneg %p196
      %p203 = scmp.eq.s32.totalorder %s21, 1
      %p204 = por %p202, %p203
      %p205 = scmp.ne.s32.totalorder %s197, %s200
      %p206 = scmp.eq.s32.totalorder %s21, 0
      %p207 = por %p205, %p206
      %p208 = scmp.ne.s32.totalorder %s197, %s200
      %p209 = scmp.eq.s32.totalorder %s26, 1
      %p210 = por %p208, %p209
      %p211 = scmp.ne.s32.totalorder %s200, %s201
      %p212 = scmp.eq.s32.totalorder %s26, 0
      %p213 = por %p211, %p212
      %p214 = scmp.ne.s32.totalorder %s200, %s201
      %p215 = scmp.eq.s32.totalorder %s27, 1
      %p216 = por %p214, %p215
      %p218 = scmp.ne.s32.totalorder %s201, %s217
      %p219 = scmp.eq.s32.totalorder %s27, 0
      %p220 = por %p218, %p219
      %p221 = scmp.le.s32.totalorder 1, %s21
      %p222 = scmp.lt.s32.totalorder %s21, 3
      %p223 = pnand %p221, %p222
      %p224 = pneg %p223
      // Predicated region
      $region9: #{tpu_custom_call.1} parent=5 // pred_check
        _
      $region10: #{tpu_custom_call.1} parent=5 // pred_check_branch
        %226 = sbr.rel (%p223) target = $region12
      $region11: #{tpu_custom_call.1} parent=5 // pred_region
        %s227 = ssub.s32 %s21, 1
        // Predicated region
        $region13: #{tpu_custom_call.1} parent=11 // pred_check
          %p228 = pneg %p80
        $region14: #{tpu_custom_call.1} parent=11 // pred_check_branch
          %230 = sbr.rel (%p228) target = $region16
        $region15: #{tpu_custom_call.1} parent=11 // pred_region
          %s232 = ssub.s32 512, 512
          %233 = vsyncadd [#allocation9], %s232
          %s234 = sshll.u32 [#allocation8], 4
          %s235 = int_to_ptr.vmem [resolvable:$true] %s234
          %240 = dma.hbm_to_vmem [thread:$0]  %s1, 512, %s235, [#allocation9], 128, 128, 8
        $region16: #{tpu_custom_call.1} parent=11 // pred_fallthru
          _
        // Predicated region
        $region17: #{tpu_custom_call.1} parent=11 // pred_check
          %p241 = pneg %p101
        $region18: #{tpu_custom_call.1} parent=11 // pred_check_branch
          %243 = sbr.rel (%p241) target = $region20
        $region19: #{tpu_custom_call.1} parent=11 // pred_region
          _
        $region20: #{tpu_custom_call.1} parent=11 // pred_fallthru
          _
        // Predicated region
        $region21: #{tpu_custom_call.1} parent=11 // pred_check
          %p244 = pneg %p122
        $region22: #{tpu_custom_call.1} parent=11 // pred_check_branch
          %246 = sbr.rel (%p244) target = $region24
        $region23: #{tpu_custom_call.1} parent=11 // pred_region
          %s248 = ssub.s32 512, 512
          %249 = vsyncadd [#allocation9], %s248
          %s250 = sshll.u32 [#allocation10], 4
          %s251 = int_to_ptr.vmem [resolvable:$true] %s250
          %256 = dma.hbm_to_vmem [thread:$0]  %s3, 512, %s251, [#allocation9], 128, 128, 8
        $region24: #{tpu_custom_call.1} parent=11 // pred_fallthru
          _
        // Predicated region
        $region25: #{tpu_custom_call.1} parent=11 // pred_check
          %p257 = pneg %p143
        $region26: #{tpu_custom_call.1} parent=11 // pred_check_branch
          %259 = sbr.rel (%p257) target = $region28
        $region27: #{tpu_custom_call.1} parent=11 // pred_region
          _
        $region28: #{tpu_custom_call.1} parent=11 // pred_fallthru
          _
        // Predicated region
        $region29: #{tpu_custom_call.1} parent=11 // pred_check
          %p260 = pneg %p164
        $region30: #{tpu_custom_call.1} parent=11 // pred_check_branch
          %262 = sbr.rel (%p260) target = $region32
        $region31: #{tpu_custom_call.1} parent=11 // pred_region
          %s264 = ssub.s32 512, 512
          %265 = vsyncadd [#allocation12], %s264
          %s266 = sshll.u32 [#allocation11], 4
          %s267 = int_to_ptr.vmem [resolvable:$true] %s266
          %272 = dma.hbm_to_vmem [thread:$0]  %s5, 512, %s267, [#allocation12], 128, 128, 8
        $region32: #{tpu_custom_call.1} parent=11 // pred_fallthru
          _
        // Predicated region
        $region33: #{tpu_custom_call.1} parent=11 // pred_check
          %p273 = pneg %p185
        $region34: #{tpu_custom_call.1} parent=11 // pred_check_branch
          %275 = sbr.rel (%p273) target = $region36
        $region35: #{tpu_custom_call.1} parent=11 // pred_region
          _
        $region36: #{tpu_custom_call.1} parent=11 // pred_fallthru
          _
      $region12: #{tpu_custom_call.1} parent=5 // pred_fallthru
        _
      %p276 = scmp.lt.s32.totalorder %s21, 2
      // Predicated region
      $region37: #{tpu_custom_call.1} parent=5 // pred_check
        %p277 = pneg %p276
      $region38: #{tpu_custom_call.1} parent=5 // pred_check_branch
        %279 = sbr.rel (%p277) target = $region40
      $region39: #{tpu_custom_call.1} parent=5 // pred_region
        // Predicated region
        $region41: #{tpu_custom_call.1} parent=39 // pred_check
          %p280 = pneg %p53
        $region42: #{tpu_custom_call.1} parent=39 // pred_check_branch
          %282 = sbr.rel (%p280) target = $region44
        $region43: #{tpu_custom_call.1} parent=39 // pred_region
          %s283 = sand.u32 %s43, 1
          %s284 = scalar_lea.sflag [#allocation6], %s283
          %s285 = sand.u32 %s43, 1
          %s286 = smul.addr %s285, 8
          %s287 = scalar_lea.vmem [#allocation5], %s286
          %s289 = ssub.s32 128, 128
          %290 = vsyncadd %s284, %s289
          %s291 = smul.addr %s28, 128
          %s292 = scalar_lea.hbm %s0, %s291
          %s294 = sshll.u32 %s287, 4
          %s295 = int_to_ptr.vmem [resolvable:$true] %s294
          %297 = dma.hbm_to_vmem [thread:$0]  %s292, 128, %s295, %s284
        $region44: #{tpu_custom_call.1} parent=39 // pred_fallthru
          _
      $region40: #{tpu_custom_call.1} parent=5 // pred_fallthru
        _
      %p298 = scmp.le.s32.totalorder 1, %s21
      %p299 = scmp.lt.s32.totalorder %s21, 3
      %p300 = pnand %p298, %p299
      %p301 = pneg %p300
      // Predicated region
      $region45: #{tpu_custom_call.1} parent=5 // pred_check
        _
      $region46: #{tpu_custom_call.1} parent=5 // pred_check_branch
        %303 = sbr.rel (%p300) target = $region48
      $region47: #{tpu_custom_call.1} parent=5 // pred_region
        %s304 = ssub.s32 %s21, 1
        %s305 = sand.u32 %s46, 1
        %s306 = scalar_lea.sflag [#allocation6], %s305
        %s307 = sand.u32 %s46, 1
        %s308 = smul.addr %s307, 8
        %s309 = scalar_lea.vmem [#allocation5], %s308
        // Predicated region
        $region49: #{tpu_custom_call.1} parent=47 // pred_check
          %p310 = pneg %p59
        $region50: #{tpu_custom_call.1} parent=47 // pred_check_branch
          %312 = sbr.rel (%p310) target = $region52
        $region51: #{tpu_custom_call.1} parent=47 // pred_region
          %313 = dma.done %s306, 128
        $region52: #{tpu_custom_call.1} parent=47 // pred_fallthru
          _
        // Predicated region
        $region53: #{tpu_custom_call.1} parent=47 // pred_check
          %p314 = pneg %p80
        $region54: #{tpu_custom_call.1} parent=47 // pred_check_branch
          %316 = sbr.rel (%p314) target = $region56
        $region55: #{tpu_custom_call.1} parent=47 // pred_region
          %317 = dma.done [#allocation9], 512
        $region56: #{tpu_custom_call.1} parent=47 // pred_fallthru
          _
        // Predicated region
        $region57: #{tpu_custom_call.1} parent=47 // pred_check
          %p318 = pneg %p122
        $region58: #{tpu_custom_call.1} parent=47 // pred_check_branch
          %320 = sbr.rel (%p318) target = $region60
        $region59: #{tpu_custom_call.1} parent=47 // pred_region
          %321 = dma.done [#allocation9], 512
        $region60: #{tpu_custom_call.1} parent=47 // pred_fallthru
          _
        // Predicated region
        $region61: #{tpu_custom_call.1} parent=47 // pred_check
          %p322 = pneg %p164
        $region62: #{tpu_custom_call.1} parent=47 // pred_check_branch
          %324 = sbr.rel (%p322) target = $region64
        $region63: #{tpu_custom_call.1} parent=47 // pred_region
          %325 = dma.done [#allocation12], 512
        $region64: #{tpu_custom_call.1} parent=47 // pred_fallthru
          _
        %s326 = sand.u32 %s46, 1
        %s327 = scalar_lea.sflag [#allocation6], %s326
        %s328 = sand.u32 %s46, 1
        %s329 = smul.addr %s328, 8
        %s330 = scalar_lea.vmem [#allocation5], %s329
        %p331 = pneg %p59
        %p332 = pneg %p56
        %p333 = pneg %p80
        %p334 = pneg %p77
        %p335 = pneg %p101
        %p336 = pneg %p98
        %p337 = pneg %p122
        %p338 = pneg %p119
        %p339 = pneg %p143
        %p340 = pneg %p140
        %p341 = pneg %p164
        %p342 = pneg %p161
        %p343 = pneg %p185
        %p344 = pneg %p182
        %p345 = pneg %p213
        %p346 = pneg %p210
        %s347 = sand.u32 %s200, 1
        %s348 = scalar_lea.sflag [#allocation7], %s347
        %s349 = sand.u32 %s200, 1
        %s350 = smul.addr %s349, 8
        %s351 = scalar_lea.vmem [#allocation13], %s350
        %p352 = scmp.eq.s32.totalorder %s31, 0
        // Predicated region
        $region65: #{tpu_custom_call.1} parent=47 // pred_check
          %p353 = pneg %p352
        $region66: #{tpu_custom_call.1} parent=47 // pred_check_branch
          %355 = sbr.rel (%p353) target = $region68
        $region67: #{tpu_custom_call.1} parent=47 // pred_region
          %v356 = vld [vmem:[%s309] sm:$0xff]
          %v357 = vld [vmem:[#allocation10] sm:$0xff]
          %v358 = vld [vmem:[#allocation10 + $0x8] sm:$0xff]
          %v359 = vld [vmem:[#allocation10 + $0x10] sm:$0xff]
          %v360 = vld [vmem:[#allocation10 + $0x18] sm:$0xff]
          %v361 = vld [vmem:[%s4] sm:$0x1]
          %v363 = vlaneseq
          %v364 = vshrl.u32 %v363, 7
          %v365 = vsub.s32 0, %v364
          %v366 = vrot.slane %v361, %v365
          %vm368 = vcmask 261120
          %v370 = vsel %vm368, %v356, 0
          %372 = vmatprep.subr.mxu0 0.0
          %373 = vmatpush1.msra.mxu0 %v357
          %374 = vmatprep.subr.mxu0 0.0
          %375 = vmatpush1.msra.mxu0 %v358
          %376 = vmatprep.subr.mxu0 0.0
          %377 = vmatpush1.msra.mxu0 %v359
          %378 = vmatprep.subr.mxu0 0.0
          %379 = vmatpush1.msra.mxu0 %v360
          %380 = vmatprep.subr.mxu0 0.0
          %381 = vmatpush1.msra.mxu0 0.0
          %382 = vmatprep.subr.mxu0 0.0
          %383 = vmatpush1.msra.mxu0 0.0
          %384 = vmatprep.subr.mxu0 0.0
          %385 = vmatpush1.msra.mxu0 0.0
          %386 = vmatprep.subr.mxu0 0.0
          %387 = vmatpush1.msra.mxu0 0.0
          %388 = vmatprep.subr.mxu0 0.0
          %389 = vmatpush1.msra.mxu0 0.0
          %390 = vmatprep.subr.mxu0 0.0
          %391 = vmatpush1.msra.mxu0 0.0
          %392 = vmatprep.subr.mxu0 0.0
          %393 = vmatpush1.msra.mxu0 0.0
          %394 = vmatprep.subr.mxu0 0.0
          %395 = vmatpush1.msra.mxu0 0.0
          %396 = vmatprep.subr.mxu0 0.0
          %397 = vmatpush1.msra.mxu0 0.0
          %398 = vmatprep.subr.mxu0 0.0
          %399 = vmatpush1.msra.mxu0 0.0
          %400 = vmatprep.subr.mxu0 0.0
          %401 = vmatpush1.msra.mxu0 0.0
          %402 = vmatprep.subr.mxu0 0.0
          %403 = vmatpush1.msra.mxu0 0.0
          %404 = vmatprep.subr.mxu0 0.0
          %405 = vmatpush1.msra.mxu0 0.0
          %406 = vmatprep.subr.mxu0 0.0
          %407 = vmatpush1.msra.mxu0 0.0
          %408 = vmatprep.subr.mxu0 0.0
          %409 = vmatpush1.msra.mxu0 0.0
          %410 = vmatprep.subr.mxu0 0.0
          %411 = vmatpush1.msra.mxu0 0.0
          %412 = vmatprep.subr.mxu0 0.0
          %413 = vmatpush1.msra.mxu0 0.0
          %414 = vmatprep.subr.mxu0 0.0
          %415 = vmatpush1.msra.mxu0 0.0
          %416 = vmatprep.subr.mxu0 0.0
          %417 = vmatpush1.msra.mxu0 0.0
          %418 = vmatprep.subr.mxu0 0.0
          %419 = vmatpush1.msra.mxu0 0.0
          %420 = vmatprep.subr.mxu0 0.0
          %421 = vmatpush1.msra.mxu0 0.0
          %422 = vmatprep.subr.mxu0 0.0
          %423 = vmatpush1.msra.mxu0 0.0
          %424 = vmatprep.subr.mxu0 0.0
          %425 = vmatpush1.msra.mxu0 0.0
          %426 = vmatprep.subr.mxu0 0.0
          %427 = vmatpush1.msra.mxu0 0.0
          %428 = vmatprep.subr.mxu0 0.0
          %429 = vmatpush1.msra.mxu0 0.0
          %430 = vmatprep.subr.mxu0 0.0
          %431 = vmatpush1.msra.mxu0 0.0
          %432 = vmatprep.subr.mxu0 0.0
          %433 = vmatpush1.msra.mxu0 0.0
          %434 = vmatprep.subr.mxu0 0.0
          %435 = vmatpush1.msra.mxu0 0.0
          %436 = vmatprep.mubr.f32.mxu0 0.0
          %437 = vmatmul.mubr.f32.gmra.mrb[0].mxu0 %v370
          %v438 = vpop.f32.mrb[0].mxu0
          %v439 = vadd.f32 %v366, %v438
          %v440 = vpop.f32.mrb[0].mxu0
          %441 = vdwg.mxu0
          %vm442 = vcmask 523264
          %443 = vst.msk [vmem:[#allocation2] sm:$0xff] %vm442, %v439
        $region68: #{tpu_custom_call.1} parent=47 // pred_fallthru
          _
        %s444 = smul.u32 %s31, 8
        %s445 = scalar_lea.vmem %s309, %s444 [#allocation5]
        %v446 = vld [vmem:[%s445] sm:$0xff]
        %v447 = vld [vmem:[#allocation8] sm:$0xff]
        %v448 = vld [vmem:[#allocation8 + $0x8] sm:$0xff]
        %v449 = vld [vmem:[#allocation8 + $0x10] sm:$0xff]
        %v450 = vld [vmem:[#allocation8 + $0x18] sm:$0xff]
        %v451 = vld [vmem:[%s2] sm:$0x1]
        %v453 = vlaneseq
        %v454 = vshrl.u32 %v453, 7
        %v455 = vsub.s32 0, %v454
        %v456 = vrot.slane %v451, %v455
        %vm458 = vcmask 261120
        %v460 = vsel %vm458, %v446, 0
        %462 = vmatprep.subr.mxu0 0.0
        %463 = vmatpush1.msra.mxu0 %v447
        %464 = vmatprep.subr.mxu0 0.0
        %465 = vmatpush1.msra.mxu0 %v448
        %466 = vmatprep.subr.mxu0 0.0
        %467 = vmatpush1.msra.mxu0 %v449
        %468 = vmatprep.subr.mxu0 0.0
        %469 = vmatpush1.msra.mxu0 %v450
        %470 = vmatprep.subr.mxu0 0.0
        %471 = vmatpush1.msra.mxu0 0.0
        %472 = vmatprep.subr.mxu0 0.0
        %473 = vmatpush1.msra.mxu0 0.0
        %474 = vmatprep.subr.mxu0 0.0
        %475 = vmatpush1.msra.mxu0 0.0
        %476 = vmatprep.subr.mxu0 0.0
        %477 = vmatpush1.msra.mxu0 0.0
        %478 = vmatprep.subr.mxu0 0.0
        %479 = vmatpush1.msra.mxu0 0.0
        %480 = vmatprep.subr.mxu0 0.0
        %481 = vmatpush1.msra.mxu0 0.0
        %482 = vmatprep.subr.mxu0 0.0
        %483 = vmatpush1.msra.mxu0 0.0
        %484 = vmatprep.subr.mxu0 0.0
        %485 = vmatpush1.msra.mxu0 0.0
        %486 = vmatprep.subr.mxu0 0.0
        %487 = vmatpush1.msra.mxu0 0.0
        %488 = vmatprep.subr.mxu0 0.0
        %489 = vmatpush1.msra.mxu0 0.0
        %490 = vmatprep.subr.mxu0 0.0
        %491 = vmatpush1.msra.mxu0 0.0
        %492 = vmatprep.subr.mxu0 0.0
        %493 = vmatpush1.msra.mxu0 0.0
        %494 = vmatprep.subr.mxu0 0.0
        %495 = vmatpush1.msra.mxu0 0.0
        %496 = vmatprep.subr.mxu0 0.0
        %497 = vmatpush1.msra.mxu0 0.0
        %498 = vmatprep.subr.mxu0 0.0
        %499 = vmatpush1.msra.mxu0 0.0
        %500 = vmatprep.subr.mxu0 0.0
        %501 = vmatpush1.msra.mxu0 0.0
        %502 = vmatprep.subr.mxu0 0.0
        %503 = vmatpush1.msra.mxu0 0.0
        %504 = vmatprep.subr.mxu0 0.0
        %505 = vmatpush1.msra.mxu0 0.0
        %506 = vmatprep.subr.mxu0 0.0
        %507 = vmatpush1.msra.mxu0 0.0
        %508 = vmatprep.subr.mxu0 0.0
        %509 = vmatpush1.msra.mxu0 0.0
        %510 = vmatprep.subr.mxu0 0.0
        %511 = vmatpush1.msra.mxu0 0.0
        %512 = vmatprep.subr.mxu0 0.0
        %513 = vmatpush1.msra.mxu0 0.0
        %514 = vmatprep.subr.mxu0 0.0
        %515 = vmatpush1.msra.mxu0 0.0
        %516 = vmatprep.subr.mxu0 0.0
        %517 = vmatpush1.msra.mxu0 0.0
        %518 = vmatprep.subr.mxu0 0.0
        %519 = vmatpush1.msra.mxu0 0.0
        %520 = vmatprep.subr.mxu0 0.0
        %521 = vmatpush1.msra.mxu0 0.0
        %522 = vmatprep.subr.mxu0 0.0
        %523 = vmatpush1.msra.mxu0 0.0
        %524 = vmatprep.subr.mxu0 0.0
        %525 = vmatpush1.msra.mxu0 0.0
        %526 = vmatprep.mubr.f32.mxu0 0.0
        %527 = vmatmul.mubr.f32.gmra.mrb[0].mxu0 %v460
        %v528 = vpop.f32.mrb[0].mxu0
        %v529 = vadd.f32 %v456, %v528
        %v530 = vpop.f32.mrb[0].mxu0
        %531 = vdwg.mxu0
        %532 = vst.msk [vmem:[#allocation3] sm:$0xff] %vm458, %v529
        %v533 = vld [vmem:[#allocation3] sm:$0xff]
        %v534 = vld [vmem:[#allocation2] sm:$0xff]
        %vm535 = vcmask 64512
        %v537 = vsel %vm535, %v533, 0
        %v540 = vsel %vm535, %v534, 0
        %542 = vmatprep.subr.mxu0 0.0
        %543 = vmatpush1.xpose.msra.mxu0 %v540
        %544 = vmatprep.subr.mxu0 0.0
        %545 = vmatpush1.xpose.msra.mxu0 0.0
        %546 = vmatprep.subr.mxu0 0.0
        %547 = vmatpush1.xpose.msra.mxu0 0.0
        %548 = vmatprep.subr.mxu0 0.0
        %549 = vmatpush1.xpose.msra.mxu0 0.0
        %550 = vmatprep.subr.mxu0 0.0
        %551 = vmatpush1.xpose.msra.mxu0 0.0
        %552 = vmatprep.subr.mxu0 0.0
        %553 = vmatpush1.xpose.msra.mxu0 0.0
        %554 = vmatprep.subr.mxu0 0.0
        %555 = vmatpush1.xpose.msra.mxu0 0.0
        %556 = vmatprep.subr.mxu0 0.0
        %557 = vmatpush1.xpose.msra.mxu0 0.0
        %558 = vmatprep.subr.mxu0 0.0
        %559 = vmatpush1.xpose.msra.mxu0 0.0
        %560 = vmatprep.subr.mxu0 0.0
        %561 = vmatpush1.xpose.msra.mxu0 0.0
        %562 = vmatprep.subr.mxu0 0.0
        %563 = vmatpush1.xpose.msra.mxu0 0.0
        %564 = vmatprep.subr.mxu0 0.0
        %565 = vmatpush1.xpose.msra.mxu0 0.0
        %566 = vmatprep.subr.mxu0 0.0
        %567 = vmatpush1.xpose.msra.mxu0 0.0
        %568 = vmatprep.subr.mxu0 0.0
        %569 = vmatpush1.xpose.msra.mxu0 0.0
        %570 = vmatprep.subr.mxu0 0.0
        %571 = vmatpush1.xpose.msra.mxu0 0.0
        %572 = vmatprep.subr.mxu0 0.0
        %573 = vmatpush1.xpose.msra.mxu0 0.0
        %574 = vmatprep.subr.mxu0 0.0
        %575 = vmatpush1.xpose.msra.mxu0 0.0
        %576 = vmatprep.subr.mxu0 0.0
        %577 = vmatpush1.xpose.msra.mxu0 0.0
        %578 = vmatprep.subr.mxu0 0.0
        %579 = vmatpush1.xpose.msra.mxu0 0.0
        %580 = vmatprep.subr.mxu0 0.0
        %581 = vmatpush1.xpose.msra.mxu0 0.0
        %582 = vmatprep.subr.mxu0 0.0
        %583 = vmatpush1.xpose.msra.mxu0 0.0
        %584 = vmatprep.subr.mxu0 0.0
        %585 = vmatpush1.xpose.msra.mxu0 0.0
        %586 = vmatprep.subr.mxu0 0.0
        %587 = vmatpush1.xpose.msra.mxu0 0.0
        %588 = vmatprep.subr.mxu0 0.0
        %589 = vmatpush1.xpose.msra.mxu0 0.0
        %590 = vmatprep.subr.mxu0 0.0
        %591 = vmatpush1.xpose.msra.mxu0 0.0
        %592 = vmatprep.subr.mxu0 0.0
        %593 = vmatpush1.xpose.msra.mxu0 0.0
        %594 = vmatprep.subr.mxu0 0.0
        %595 = vmatpush1.xpose.msra.mxu0 0.0
        %596 = vmatprep.subr.mxu0 0.0
        %597 = vmatpush1.xpose.msra.mxu0 0.0
        %598 = vmatprep.subr.mxu0 0.0
        %599 = vmatpush1.xpose.msra.mxu0 0.0
        %600 = vmatprep.subr.mxu0 0.0
        %601 = vmatpush1.xpose.msra.mxu0 0.0
        %602 = vmatprep.subr.mxu0 0.0
        %603 = vmatpush1.xpose.msra.mxu0 0.0
        %604 = vmatprep.subr.mxu0 0.0
        %605 = vmatpush1.xpose.msra.mxu0 0.0
        %606 = vmatprep.mubr.f32.mxu0 0.0
        %607 = vmatmul.mubr.f32.gmra.mrb[0].mxu0 %v537
        %v608 = vpop.f32.mrb[0].mxu0
        %v609 = vadd.f32 0.0, %v608
        %v610 = vpop.f32.mrb[0].mxu0
        %611 = vdwg.mxu0
        %v612 = vmul.f32 %v609, 0.35355338
        %v613 = vsel %vm535, %v612, -inf
        %614 = vmax.xlane.f32.xlu0 %v613
        %v615 = vpop.xlane.xlu0 %614
        %v616 = vsub.f32 -inf, %v615
        %v617 = vmul.f32 %v616, 1.442695
        %v618 = vpow.pop %v617
        %v619 = vsub.f32 %v612, %v615
        %v620 = vmul.f32 %v619, 1.442695
        %v621 = vpow.pop %v620
        %v622 = vmul.f32 %v618, 0.0
        %v623 = vsel %vm535, %v621, 0.0
        %624 = vadd.xlane.f32.xlu0 %v623
        %v625 = vpop.xlane.xlu0 %624
        %v626 = vadd.f32 %v622, %v625
        %627 = vrot.lane.b32.xlu0 %v534, 96
        %v628 = vpop.permute.xlu0 %627
        %v631 = vsel %vm535, %v621, 0
        %633 = vmatprep.subr.mxu0 0.0
        %634 = vmatpush1.msra.mxu0 %v628
        %635 = vmatprep.subr.mxu0 0.0
        %636 = vmatpush1.msra.mxu0 0.0
        %637 = vmatprep.subr.mxu0 0.0
        %638 = vmatpush1.msra.mxu0 0.0
        %639 = vmatprep.subr.mxu0 0.0
        %640 = vmatpush1.msra.mxu0 0.0
        %641 = vmatprep.subr.mxu0 0.0
        %642 = vmatpush1.msra.mxu0 0.0
        %643 = vmatprep.subr.mxu0 0.0
        %644 = vmatpush1.msra.mxu0 0.0
        %645 = vmatprep.subr.mxu0 0.0
        %646 = vmatpush1.msra.mxu0 0.0
        %647 = vmatprep.subr.mxu0 0.0
        %648 = vmatpush1.msra.mxu0 0.0
        %649 = vmatprep.subr.mxu0 0.0
        %650 = vmatpush1.msra.mxu0 0.0
        %651 = vmatprep.subr.mxu0 0.0
        %652 = vmatpush1.msra.mxu0 0.0
        %653 = vmatprep.subr.mxu0 0.0
        %654 = vmatpush1.msra.mxu0 0.0
        %655 = vmatprep.subr.mxu0 0.0
        %656 = vmatpush1.msra.mxu0 0.0
        %657 = vmatprep.subr.mxu0 0.0
        %658 = vmatpush1.msra.mxu0 0.0
        %659 = vmatprep.subr.mxu0 0.0
        %660 = vmatpush1.msra.mxu0 0.0
        %661 = vmatprep.subr.mxu0 0.0
        %662 = vmatpush1.msra.mxu0 0.0
        %663 = vmatprep.subr.mxu0 0.0
        %664 = vmatpush1.msra.mxu0 0.0
        %665 = vmatprep.subr.mxu0 0.0
        %666 = vmatpush1.msra.mxu0 0.0
        %667 = vmatprep.subr.mxu0 0.0
        %668 = vmatpush1.msra.mxu0 0.0
        %669 = vmatprep.subr.mxu0 0.0
        %670 = vmatpush1.msra.mxu0 0.0
        %671 = vmatprep.subr.mxu0 0.0
        %672 = vmatpush1.msra.mxu0 0.0
        %673 = vmatprep.subr.mxu0 0.0
        %674 = vmatpush1.msra.mxu0 0.0
        %675 = vmatprep.subr.mxu0 0.0
        %676 = vmatpush1.msra.mxu0 0.0
        %677 = vmatprep.subr.mxu0 0.0
        %678 = vmatpush1.msra.mxu0 0.0
        %679 = vmatprep.subr.mxu0 0.0
        %680 = vmatpush1.msra.mxu0 0.0
        %681 = vmatprep.subr.mxu0 0.0
        %682 = vmatpush1.msra.mxu0 0.0
        %683 = vmatprep.subr.mxu0 0.0
        %684 = vmatpush1.msra.mxu0 0.0
        %685 = vmatprep.subr.mxu0 0.0
        %686 = vmatpush1.msra.mxu0 0.0
        %687 = vmatprep.subr.mxu0 0.0
        %688 = vmatpush1.msra.mxu0 0.0
        %689 = vmatprep.subr.mxu0 0.0
        %690 = vmatpush1.msra.mxu0 0.0
        %691 = vmatprep.subr.mxu0 0.0
        %692 = vmatpush1.msra.mxu0 0.0
        %693 = vmatprep.subr.mxu0 0.0
        %694 = vmatpush1.msra.mxu0 0.0
        %695 = vmatprep.subr.mxu0 0.0
        %696 = vmatpush1.msra.mxu0 0.0
        %697 = vmatprep.mubr.f32.mxu0 0.0
        %698 = vmatmul.mubr.f32.gmra.mrb[0].mxu0 %v631
        %v699 = vpop.f32.mrb[0].mxu0
        %v700 = vadd.f32 0.0, %v699
        %v701 = vpop.f32.mrb[0].mxu0
        %702 = vdwg.mxu0
        %v703 = vadd.f32 %v622, %v700
        %v704 = vrcp.pop %v626
        %v705 = vmul.f32 %v703, %v704
        %706 = vst.msk [vmem:[#allocation4] sm:$0xff] %vm535, %v705
        %v707 = vld [vmem:[#allocation3] sm:$0xff]
        %v708 = vld [vmem:[#allocation2] sm:$0xff]
        %710 = vrot.lane.b32.xlu0 %v707, 120
        %v711 = vpop.permute.xlu0 %710
        %713 = vrot.lane.b32.xlu0 %v708, 120
        %v714 = vpop.permute.xlu0 %713
        %v715 = vsel %vm535, %v711, 0
        %v717 = vsel %vm535, %v714, 0
        %719 = vmatprep.subr.mxu0 0.0
        %720 = vmatpush1.xpose.msra.mxu0 %v717
        %721 = vmatprep.subr.mxu0 0.0
        %722 = vmatpush1.xpose.msra.mxu0 0.0
        %723 = vmatprep.subr.mxu0 0.0
        %724 = vmatpush1.xpose.msra.mxu0 0.0
        %725 = vmatprep.subr.mxu0 0.0
        %726 = vmatpush1.xpose.msra.mxu0 0.0
        %727 = vmatprep.subr.mxu0 0.0
        %728 = vmatpush1.xpose.msra.mxu0 0.0
        %729 = vmatprep.subr.mxu0 0.0
        %730 = vmatpush1.xpose.msra.mxu0 0.0
        %731 = vmatprep.subr.mxu0 0.0
        %732 = vmatpush1.xpose.msra.mxu0 0.0
        %733 = vmatprep.subr.mxu0 0.0
        %734 = vmatpush1.xpose.msra.mxu0 0.0
        %735 = vmatprep.subr.mxu0 0.0
        %736 = vmatpush1.xpose.msra.mxu0 0.0
        %737 = vmatprep.subr.mxu0 0.0
        %738 = vmatpush1.xpose.msra.mxu0 0.0
        %739 = vmatprep.subr.mxu0 0.0
        %740 = vmatpush1.xpose.msra.mxu0 0.0
        %741 = vmatprep.subr.mxu0 0.0
        %742 = vmatpush1.xpose.msra.mxu0 0.0
        %743 = vmatprep.subr.mxu0 0.0
        %744 = vmatpush1.xpose.msra.mxu0 0.0
        %745 = vmatprep.subr.mxu0 0.0
        %746 = vmatpush1.xpose.msra.mxu0 0.0
        %747 = vmatprep.subr.mxu0 0.0
        %748 = vmatpush1.xpose.msra.mxu0 0.0
        %749 = vmatprep.subr.mxu0 0.0
        %750 = vmatpush1.xpose.msra.mxu0 0.0
        %751 = vmatprep.subr.mxu0 0.0
        %752 = vmatpush1.xpose.msra.mxu0 0.0
        %753 = vmatprep.subr.mxu0 0.0
        %754 = vmatpush1.xpose.msra.mxu0 0.0
        %755 = vmatprep.subr.mxu0 0.0
        %756 = vmatpush1.xpose.msra.mxu0 0.0
        %757 = vmatprep.subr.mxu0 0.0
        %758 = vmatpush1.xpose.msra.mxu0 0.0
        %759 = vmatprep.subr.mxu0 0.0
        %760 = vmatpush1.xpose.msra.mxu0 0.0
        %761 = vmatprep.subr.mxu0 0.0
        %762 = vmatpush1.xpose.msra.mxu0 0.0
        %763 = vmatprep.subr.mxu0 0.0
        %764 = vmatpush1.xpose.msra.mxu0 0.0
        %765 = vmatprep.subr.mxu0 0.0
        %766 = vmatpush1.xpose.msra.mxu0 0.0
        %767 = vmatprep.subr.mxu0 0.0
        %768 = vmatpush1.xpose.msra.mxu0 0.0
        %769 = vmatprep.subr.mxu0 0.0
        %770 = vmatpush1.xpose.msra.mxu0 0.0
        %771 = vmatprep.subr.mxu0 0.0
        %772 = vmatpush1.xpose.msra.mxu0 0.0
        %773 = vmatprep.subr.mxu0 0.0
        %774 = vmatpush1.xpose.msra.mxu0 0.0
        %775 = vmatprep.subr.mxu0 0.0
        %776 = vmatpush1.xpose.msra.mxu0 0.0
        %777 = vmatprep.subr.mxu0 0.0
        %778 = vmatpush1.xpose.msra.mxu0 0.0
        %779 = vmatprep.subr.mxu0 0.0
        %780 = vmatpush1.xpose.msra.mxu0 0.0
        %781 = vmatprep.subr.mxu0 0.0
        %782 = vmatpush1.xpose.msra.mxu0 0.0
        %783 = vmatprep.mubr.f32.mxu0 0.0
        %784 = vmatmul.mubr.f32.gmra.mrb[0].mxu0 %v715
        %v785 = vpop.f32.mrb[0].mxu0
        %v786 = vadd.f32 0.0, %v785
        %v787 = vpop.f32.mrb[0].mxu0
        %788 = vdwg.mxu0
        %v789 = vmul.f32 %v786, 0.35355338
        %v790 = vsel %vm535, %v789, -inf
        %791 = vmax.xlane.f32.xlu0 %v790
        %v792 = vpop.xlane.xlu0 %791
        %v793 = vsub.f32 -inf, %v792
        %v794 = vmul.f32 %v793, 1.442695
        %v795 = vpow.pop %v794
        %v796 = vsub.f32 %v789, %v792
        %v797 = vmul.f32 %v796, 1.442695
        %v798 = vpow.pop %v797
        %v799 = vmul.f32 %v795, 0.0
        %v800 = vsel %vm535, %v798, 0.0
        %801 = vadd.xlane.f32.xlu0 %v800
        %v802 = vpop.xlane.xlu0 %801
        %v803 = vadd.f32 %v799, %v802
        %804 = vrot.lane.b32.xlu0 %v708, 88
        %v805 = vpop.permute.xlu0 %804
        %v808 = vsel %vm535, %v798, 0
        %810 = vmatprep.subr.mxu0 0.0
        %811 = vmatpush1.msra.mxu0 %v805
        %812 = vmatprep.subr.mxu0 0.0
        %813 = vmatpush1.msra.mxu0 0.0
        %814 = vmatprep.subr.mxu0 0.0
        %815 = vmatpush1.msra.mxu0 0.0
        %816 = vmatprep.subr.mxu0 0.0
        %817 = vmatpush1.msra.mxu0 0.0
        %818 = vmatprep.subr.mxu0 0.0
        %819 = vmatpush1.msra.mxu0 0.0
        %820 = vmatprep.subr.mxu0 0.0
        %821 = vmatpush1.msra.mxu0 0.0
        %822 = vmatprep.subr.mxu0 0.0
        %823 = vmatpush1.msra.mxu0 0.0
        %824 = vmatprep.subr.mxu0 0.0
        %825 = vmatpush1.msra.mxu0 0.0
        %826 = vmatprep.subr.mxu0 0.0
        %827 = vmatpush1.msra.mxu0 0.0
        %828 = vmatprep.subr.mxu0 0.0
        %829 = vmatpush1.msra.mxu0 0.0
        %830 = vmatprep.subr.mxu0 0.0
        %831 = vmatpush1.msra.mxu0 0.0
        %832 = vmatprep.subr.mxu0 0.0
        %833 = vmatpush1.msra.mxu0 0.0
        %834 = vmatprep.subr.mxu0 0.0
        %835 = vmatpush1.msra.mxu0 0.0
        %836 = vmatprep.subr.mxu0 0.0
        %837 = vmatpush1.msra.mxu0 0.0
        %838 = vmatprep.subr.mxu0 0.0
        %839 = vmatpush1.msra.mxu0 0.0
        %840 = vmatprep.subr.mxu0 0.0
        %841 = vmatpush1.msra.mxu0 0.0
        %842 = vmatprep.subr.mxu0 0.0
        %843 = vmatpush1.msra.mxu0 0.0
        %844 = vmatprep.subr.mxu0 0.0
        %845 = vmatpush1.msra.mxu0 0.0
        %846 = vmatprep.subr.mxu0 0.0
        %847 = vmatpush1.msra.mxu0 0.0
        %848 = vmatprep.subr.mxu0 0.0
        %849 = vmatpush1.msra.mxu0 0.0
        %850 = vmatprep.subr.mxu0 0.0
        %851 = vmatpush1.msra.mxu0 0.0
        %852 = vmatprep.subr.mxu0 0.0
        %853 = vmatpush1.msra.mxu0 0.0
        %854 = vmatprep.subr.mxu0 0.0
        %855 = vmatpush1.msra.mxu0 0.0
        %856 = vmatprep.subr.mxu0 0.0
        %857 = vmatpush1.msra.mxu0 0.0
        %858 = vmatprep.subr.mxu0 0.0
        %859 = vmatpush1.msra.mxu0 0.0
        %860 = vmatprep.subr.mxu0 0.0
        %861 = vmatpush1.msra.mxu0 0.0
        %862 = vmatprep.subr.mxu0 0.0
        %863 = vmatpush1.msra.mxu0 0.0
        %864 = vmatprep.subr.mxu0 0.0
        %865 = vmatpush1.msra.mxu0 0.0
        %866 = vmatprep.subr.mxu0 0.0
        %867 = vmatpush1.msra.mxu0 0.0
        %868 = vmatprep.subr.mxu0 0.0
        %869 = vmatpush1.msra.mxu0 0.0
        %870 = vmatprep.subr.mxu0 0.0
        %871 = vmatpush1.msra.mxu0 0.0
        %872 = vmatprep.subr.mxu0 0.0
        %873 = vmatpush1.msra.mxu0 0.0
        %874 = vmatprep.mubr.f32.mxu0 0.0
        %875 = vmatmul.mubr.f32.gmra.mrb[0].mxu0 %v808
        %v876 = vpop.f32.mrb[0].mxu0
        %v877 = vadd.f32 0.0, %v876
        %v878 = vpop.f32.mrb[0].mxu0
        %879 = vdwg.mxu0
        %v880 = vadd.f32 %v799, %v877
        %v881 = vrcp.pop %v803
        %v882 = vmul.f32 %v880, %v881
        %884 = vrot.lane.b32.xlu0 %v882, 8
        %v885 = vpop.permute.xlu0 %884
        %vm887 = vcmask 130112
        %888 = vst.msk [vmem:[#allocation4] sm:$0xff] %vm887, %v885
        %v889 = vld [vmem:[#allocation3] sm:$0xff]
        %v890 = vld [vmem:[#allocation2] sm:$0xff]
        %892 = vrot.lane.b32.xlu0 %v889, 112
        %v893 = vpop.permute.xlu0 %892
        %895 = vrot.lane.b32.xlu0 %v890, 112
        %v896 = vpop.permute.xlu0 %895
        %v897 = vsel %vm535, %v893, 0
        %v899 = vsel %vm535, %v896, 0
        %901 = vmatprep.subr.mxu0 0.0
        %902 = vmatpush1.xpose.msra.mxu0 %v899
        %903 = vmatprep.subr.mxu0 0.0
        %904 = vmatpush1.xpose.msra.mxu0 0.0
        %905 = vmatprep.subr.mxu0 0.0
        %906 = vmatpush1.xpose.msra.mxu0 0.0
        %907 = vmatprep.subr.mxu0 0.0
        %908 = vmatpush1.xpose.msra.mxu0 0.0
        %909 = vmatprep.subr.mxu0 0.0
        %910 = vmatpush1.xpose.msra.mxu0 0.0
        %911 = vmatprep.subr.mxu0 0.0
        %912 = vmatpush1.xpose.msra.mxu0 0.0
        %913 = vmatprep.subr.mxu0 0.0
        %914 = vmatpush1.xpose.msra.mxu0 0.0
        %915 = vmatprep.subr.mxu0 0.0
        %916 = vmatpush1.xpose.msra.mxu0 0.0
        %917 = vmatprep.subr.mxu0 0.0
        %918 = vmatpush1.xpose.msra.mxu0 0.0
        %919 = vmatprep.subr.mxu0 0.0
        %920 = vmatpush1.xpose.msra.mxu0 0.0
        %921 = vmatprep.subr.mxu0 0.0
        %922 = vmatpush1.xpose.msra.mxu0 0.0
        %923 = vmatprep.subr.mxu0 0.0
        %924 = vmatpush1.xpose.msra.mxu0 0.0
        %925 = vmatprep.subr.mxu0 0.0
        %926 = vmatpush1.xpose.msra.mxu0 0.0
        %927 = vmatprep.subr.mxu0 0.0
        %928 = vmatpush1.xpose.msra.mxu0 0.0
        %929 = vmatprep.subr.mxu0 0.0
        %930 = vmatpush1.xpose.msra.mxu0 0.0
        %931 = vmatprep.subr.mxu0 0.0
        %932 = vmatpush1.xpose.msra.mxu0 0.0
        %933 = vmatprep.subr.mxu0 0.0
        %934 = vmatpush1.xpose.msra.mxu0 0.0
        %935 = vmatprep.subr.mxu0 0.0
        %936 = vmatpush1.xpose.msra.mxu0 0.0
        %937 = vmatprep.subr.mxu0 0.0
        %938 = vmatpush1.xpose.msra.mxu0 0.0
        %939 = vmatprep.subr.mxu0 0.0
        %940 = vmatpush1.xpose.msra.mxu0 0.0
        %941 = vmatprep.subr.mxu0 0.0
        %942 = vmatpush1.xpose.msra.mxu0 0.0
        %943 = vmatprep.subr.mxu0 0.0
        %944 = vmatpush1.xpose.msra.mxu0 0.0
        %945 = vmatprep.subr.mxu0 0.0
        %946 = vmatpush1.xpose.msra.mxu0 0.0
        %947 = vmatprep.subr.mxu0 0.0
        %948 = vmatpush1.xpose.msra.mxu0 0.0
        %949 = vmatprep.subr.mxu0 0.0
        %950 = vmatpush1.xpose.msra.mxu0 0.0
        %951 = vmatprep.subr.mxu0 0.0
        %952 = vmatpush1.xpose.msra.mxu0 0.0
        %953 = vmatprep.subr.mxu0 0.0
        %954 = vmatpush1.xpose.msra.mxu0 0.0
        %955 = vmatprep.subr.mxu0 0.0
        %956 = vmatpush1.xpose.msra.mxu0 0.0
        %957 = vmatprep.subr.mxu0 0.0
        %958 = vmatpush1.xpose.msra.mxu0 0.0
        %959 = vmatprep.subr.mxu0 0.0
        %960 = vmatpush1.xpose.msra.mxu0 0.0
        %961 = vmatprep.subr.mxu0 0.0
        %962 = vmatpush1.xpose.msra.mxu0 0.0
        %963 = vmatprep.subr.mxu0 0.0
        %964 = vmatpush1.xpose.msra.mxu0 0.0
        %965 = vmatprep.mubr.f32.mxu0 0.0
        %966 = vmatmul.mubr.f32.gmra.mrb[0].mxu0 %v897
        %v967 = vpop.f32.mrb[0].mxu0
        %v968 = vadd.f32 0.0, %v967
        %v969 = vpop.f32.mrb[0].mxu0
        %970 = vdwg.mxu0
        %v971 = vmul.f32 %v968, 0.35355338
        %v972 = vsel %vm535, %v971, -inf
        %973 = vmax.xlane.f32.xlu0 %v972
        %v974 = vpop.xlane.xlu0 %973
        %v975 = vsub.f32 -inf, %v974
        %v976 = vmul.f32 %v975, 1.442695
        %v977 = vpow.pop %v976
        %v978 = vsub.f32 %v971, %v974
        %v979 = vmul.f32 %v978, 1.442695
        %v980 = vpow.pop %v979
        %v981 = vmul.f32 %v977, 0.0
        %v982 = vsel %vm535, %v980, 0.0
        %983 = vadd.xlane.f32.xlu0 %v982
        %v984 = vpop.xlane.xlu0 %983
        %v985 = vadd.f32 %v981, %v984
        %986 = vrot.lane.b32.xlu0 %v890, 80
        %v987 = vpop.permute.xlu0 %986
        %v990 = vsel %vm535, %v980, 0
        %992 = vmatprep.subr.mxu0 0.0
        %993 = vmatpush1.msra.mxu0 %v987
        %994 = vmatprep.subr.mxu0 0.0
        %995 = vmatpush1.msra.mxu0 0.0
        %996 = vmatprep.subr.mxu0 0.0
        %997 = vmatpush1.msra.mxu0 0.0
        %998 = vmatprep.subr.mxu0 0.0
        %999 = vmatpush1.msra.mxu0 0.0
        %1000 = vmatprep.subr.mxu0 0.0
        %1001 = vmatpush1.msra.mxu0 0.0
        %1002 = vmatprep.subr.mxu0 0.0
        %1003 = vmatpush1.msra.mxu0 0.0
        %1004 = vmatprep.subr.mxu0 0.0
        %1005 = vmatpush1.msra.mxu0 0.0
        %1006 = vmatprep.subr.mxu0 0.0
        %1007 = vmatpush1.msra.mxu0 0.0
        %1008 = vmatprep.subr.mxu0 0.0
        %1009 = vmatpush1.msra.mxu0 0.0
        %1010 = vmatprep.subr.mxu0 0.0
        %1011 = vmatpush1.msra.mxu0 0.0
        %1012 = vmatprep.subr.mxu0 0.0
        %1013 = vmatpush1.msra.mxu0 0.0
        %1014 = vmatprep.subr.mxu0 0.0
        %1015 = vmatpush1.msra.mxu0 0.0
        %1016 = vmatprep.subr.mxu0 0.0
        %1017 = vmatpush1.msra.mxu0 0.0
        %1018 = vmatprep.subr.mxu0 0.0
        %1019 = vmatpush1.msra.mxu0 0.0
        %1020 = vmatprep.subr.mxu0 0.0
        %1021 = vmatpush1.msra.mxu0 0.0
        %1022 = vmatprep.subr.mxu0 0.0
        %1023 = vmatpush1.msra.mxu0 0.0
        %1024 = vmatprep.subr.mxu0 0.0
        %1025 = vmatpush1.msra.mxu0 0.0
        %1026 = vmatprep.subr.mxu0 0.0
        %1027 = vmatpush1.msra.mxu0 0.0
        %1028 = vmatprep.subr.mxu0 0.0
        %1029 = vmatpush1.msra.mxu0 0.0
        %1030 = vmatprep.subr.mxu0 0.0
        %1031 = vmatpush1.msra.mxu0 0.0
        %1032 = vmatprep.subr.mxu0 0.0
        %1033 = vmatpush1.msra.mxu0 0.0
        %1034 = vmatprep.subr.mxu0 0.0
        %1035 = vmatpush1.msra.mxu0 0.0
        %1036 = vmatprep.subr.mxu0 0.0
        %1037 = vmatpush1.msra.mxu0 0.0
        %1038 = vmatprep.subr.mxu0 0.0
        %1039 = vmatpush1.msra.mxu0 0.0
        %1040 = vmatprep.subr.mxu0 0.0
        %1041 = vmatpush1.msra.mxu0 0.0
        %1042 = vmatprep.subr.mxu0 0.0
        %1043 = vmatpush1.msra.mxu0 0.0
        %1044 = vmatprep.subr.mxu0 0.0
        %1045 = vmatpush1.msra.mxu0 0.0
        %1046 = vmatprep.subr.mxu0 0.0
        %1047 = vmatpush1.msra.mxu0 0.0
        %1048 = vmatprep.subr.mxu0 0.0
        %1049 = vmatpush1.msra.mxu0 0.0
        %1050 = vmatprep.subr.mxu0 0.0
        %1051 = vmatpush1.msra.mxu0 0.0
        %1052 = vmatprep.subr.mxu0 0.0
        %1053 = vmatpush1.msra.mxu0 0.0
        %1054 = vmatprep.subr.mxu0 0.0
        %1055 = vmatpush1.msra.mxu0 0.0
        %1056 = vmatprep.mubr.f32.mxu0 0.0
        %1057 = vmatmul.mubr.f32.gmra.mrb[0].mxu0 %v990
        %v1058 = vpop.f32.mrb[0].mxu0
        %v1059 = vadd.f32 0.0, %v1058
        %v1060 = vpop.f32.mrb[0].mxu0
        %1061 = vdwg.mxu0
        %v1062 = vadd.f32 %v981, %v1059
        %v1063 = vrcp.pop %v985
        %v1064 = vmul.f32 %v1062, %v1063
        %1066 = vrot.lane.b32.xlu0 %v1064, 16
        %v1067 = vpop.permute.xlu0 %1066
        %vm1069 = vcmask 195712
        %1070 = vst.msk [vmem:[#allocation4] sm:$0xff] %vm1069, %v1067
        %v1071 = vld [vmem:[#allocation3] sm:$0xff]
        %v1072 = vld [vmem:[#allocation2] sm:$0xff]
        %1074 = vrot.lane.b32.xlu0 %v1071, 104
        %v1075 = vpop.permute.xlu0 %1074
        %1077 = vrot.lane.b32.xlu0 %v1072, 104
        %v1078 = vpop.permute.xlu0 %1077
        %v1079 = vsel %vm535, %v1075, 0
        %v1081 = vsel %vm535, %v1078, 0
        %1083 = vmatprep.subr.mxu0 0.0
        %1084 = vmatpush1.xpose.msra.mxu0 %v1081
        %1085 = vmatprep.subr.mxu0 0.0
        %1086 = vmatpush1.xpose.msra.mxu0 0.0
        %1087 = vmatprep.subr.mxu0 0.0
        %1088 = vmatpush1.xpose.msra.mxu0 0.0
        %1089 = vmatprep.subr.mxu0 0.0
        %1090 = vmatpush1.xpose.msra.mxu0 0.0
        %1091 = vmatprep.subr.mxu0 0.0
        %1092 = vmatpush1.xpose.msra.mxu0 0.0
        %1093 = vmatprep.subr.mxu0 0.0
        %1094 = vmatpush1.xpose.msra.mxu0 0.0
        %1095 = vmatprep.subr.mxu0 0.0
        %1096 = vmatpush1.xpose.msra.mxu0 0.0
        %1097 = vmatprep.subr.mxu0 0.0
        %1098 = vmatpush1.xpose.msra.mxu0 0.0
        %1099 = vmatprep.subr.mxu0 0.0
        %1100 = vmatpush1.xpose.msra.mxu0 0.0
        %1101 = vmatprep.subr.mxu0 0.0
        %1102 = vmatpush1.xpose.msra.mxu0 0.0
        %1103 = vmatprep.subr.mxu0 0.0
        %1104 = vmatpush1.xpose.msra.mxu0 0.0
        %1105 = vmatprep.subr.mxu0 0.0
        %1106 = vmatpush1.xpose.msra.mxu0 0.0
        %1107 = vmatprep.subr.mxu0 0.0
        %1108 = vmatpush1.xpose.msra.mxu0 0.0
        %1109 = vmatprep.subr.mxu0 0.0
        %1110 = vmatpush1.xpose.msra.mxu0 0.0
        %1111 = vmatprep.subr.mxu0 0.0
        %1112 = vmatpush1.xpose.msra.mxu0 0.0
        %1113 = vmatprep.subr.mxu0 0.0
        %1114 = vmatpush1.xpose.msra.mxu0 0.0
        %1115 = vmatprep.subr.mxu0 0.0
        %1116 = vmatpush1.xpose.msra.mxu0 0.0
        %1117 = vmatprep.subr.mxu0 0.0
        %1118 = vmatpush1.xpose.msra.mxu0 0.0
        %1119 = vmatprep.subr.mxu0 0.0
        %1120 = vmatpush1.xpose.msra.mxu0 0.0
        %1121 = vmatprep.subr.mxu0 0.0
        %1122 = vmatpush1.xpose.msra.mxu0 0.0
        %1123 = vmatprep.subr.mxu0 0.0
        %1124 = vmatpush1.xpose.msra.mxu0 0.0
        %1125 = vmatprep.subr.mxu0 0.0
        %1126 = vmatpush1.xpose.msra.mxu0 0.0
        %1127 = vmatprep.subr.mxu0 0.0
        %1128 = vmatpush1.xpose.msra.mxu0 0.0
        %1129 = vmatprep.subr.mxu0 0.0
        %1130 = vmatpush1.xpose.msra.mxu0 0.0
        %1131 = vmatprep.subr.mxu0 0.0
        %1132 = vmatpush1.xpose.msra.mxu0 0.0
        %1133 = vmatprep.subr.mxu0 0.0
        %1134 = vmatpush1.xpose.msra.mxu0 0.0
        %1135 = vmatprep.subr.mxu0 0.0
        %1136 = vmatpush1.xpose.msra.mxu0 0.0
        %1137 = vmatprep.subr.mxu0 0.0
        %1138 = vmatpush1.xpose.msra.mxu0 0.0
        %1139 = vmatprep.subr.mxu0 0.0
        %1140 = vmatpush1.xpose.msra.mxu0 0.0
        %1141 = vmatprep.subr.mxu0 0.0
        %1142 = vmatpush1.xpose.msra.mxu0 0.0
        %1143 = vmatprep.subr.mxu0 0.0
        %1144 = vmatpush1.xpose.msra.mxu0 0.0
        %1145 = vmatprep.subr.mxu0 0.0
        %1146 = vmatpush1.xpose.msra.mxu0 0.0
        %1147 = vmatprep.mubr.f32.mxu0 0.0
        %1148 = vmatmul.mubr.f32.gmra.mrb[0].mxu0 %v1079
        %v1149 = vpop.f32.mrb[0].mxu0
        %v1150 = vadd.f32 0.0, %v1149
        %v1151 = vpop.f32.mrb[0].mxu0
        %1152 = vdwg.mxu0
        %v1153 = vmul.f32 %v1150, 0.35355338
        %v1154 = vsel %vm535, %v1153, -inf
        %1155 = vmax.xlane.f32.xlu0 %v1154
        %v1156 = vpop.xlane.xlu0 %1155
        %v1157 = vsub.f32 -inf, %v1156
        %v1158 = vmul.f32 %v1157, 1.442695
        %v1159 = vpow.pop %v1158
        %v1160 = vsub.f32 %v1153, %v1156
        %v1161 = vmul.f32 %v1160, 1.442695
        %v1162 = vpow.pop %v1161
        %v1163 = vmul.f32 %v1159, 0.0
        %v1164 = vsel %vm535, %v1162, 0.0
        %1165 = vadd.xlane.f32.xlu0 %v1164
        %v1166 = vpop.xlane.xlu0 %1165
        %v1167 = vadd.f32 %v1163, %v1166
        %1168 = vrot.lane.b32.xlu0 %v1072, 72
        %v1169 = vpop.permute.xlu0 %1168
        %v1172 = vsel %vm535, %v1162, 0
        %1174 = vmatprep.subr.mxu0 0.0
        %1175 = vmatpush1.msra.mxu0 %v1169
        %1176 = vmatprep.subr.mxu0 0.0
        %1177 = vmatpush1.msra.mxu0 0.0
        %1178 = vmatprep.subr.mxu0 0.0
        %1179 = vmatpush1.msra.mxu0 0.0
        %1180 = vmatprep.subr.mxu0 0.0
        %1181 = vmatpush1.msra.mxu0 0.0
        %1182 = vmatprep.subr.mxu0 0.0
        %1183 = vmatpush1.msra.mxu0 0.0
        %1184 = vmatprep.subr.mxu0 0.0
        %1185 = vmatpush1.msra.mxu0 0.0
        %1186 = vmatprep.subr.mxu0 0.0
        %1187 = vmatpush1.msra.mxu0 0.0
        %1188 = vmatprep.subr.mxu0 0.0
        %1189 = vmatpush1.msra.mxu0 0.0
        %1190 = vmatprep.subr.mxu0 0.0
        %1191 = vmatpush1.msra.mxu0 0.0
        %1192 = vmatprep.subr.mxu0 0.0
        %1193 = vmatpush1.msra.mxu0 0.0
        %1194 = vmatprep.subr.mxu0 0.0
        %1195 = vmatpush1.msra.mxu0 0.0
        %1196 = vmatprep.subr.mxu0 0.0
        %1197 = vmatpush1.msra.mxu0 0.0
        %1198 = vmatprep.subr.mxu0 0.0
        %1199 = vmatpush1.msra.mxu0 0.0
        %1200 = vmatprep.subr.mxu0 0.0
        %1201 = vmatpush1.msra.mxu0 0.0
        %1202 = vmatprep.subr.mxu0 0.0
        %1203 = vmatpush1.msra.mxu0 0.0
        %1204 = vmatprep.subr.mxu0 0.0
        %1205 = vmatpush1.msra.mxu0 0.0
        %1206 = vmatprep.subr.mxu0 0.0
        %1207 = vmatpush1.msra.mxu0 0.0
        %1208 = vmatprep.subr.mxu0 0.0
        %1209 = vmatpush1.msra.mxu0 0.0
        %1210 = vmatprep.subr.mxu0 0.0
        %1211 = vmatpush1.msra.mxu0 0.0
        %1212 = vmatprep.subr.mxu0 0.0
        %1213 = vmatpush1.msra.mxu0 0.0
        %1214 = vmatprep.subr.mxu0 0.0
        %1215 = vmatpush1.msra.mxu0 0.0
        %1216 = vmatprep.subr.mxu0 0.0
        %1217 = vmatpush1.msra.mxu0 0.0
        %1218 = vmatprep.subr.mxu0 0.0
        %1219 = vmatpush1.msra.mxu0 0.0
        %1220 = vmatprep.subr.mxu0 0.0
        %1221 = vmatpush1.msra.mxu0 0.0
        %1222 = vmatprep.subr.mxu0 0.0
        %1223 = vmatpush1.msra.mxu0 0.0
        %1224 = vmatprep.subr.mxu0 0.0
        %1225 = vmatpush1.msra.mxu0 0.0
        %1226 = vmatprep.subr.mxu0 0.0
        %1227 = vmatpush1.msra.mxu0 0.0
        %1228 = vmatprep.subr.mxu0 0.0
        %1229 = vmatpush1.msra.mxu0 0.0
        %1230 = vmatprep.subr.mxu0 0.0
        %1231 = vmatpush1.msra.mxu0 0.0
        %1232 = vmatprep.subr.mxu0 0.0
        %1233 = vmatpush1.msra.mxu0 0.0
        %1234 = vmatprep.subr.mxu0 0.0
        %1235 = vmatpush1.msra.mxu0 0.0
        %1236 = vmatprep.subr.mxu0 0.0
        %1237 = vmatpush1.msra.mxu0 0.0
        %1238 = vmatprep.mubr.f32.mxu0 0.0
        %1239 = vmatmul.mubr.f32.gmra.mrb[0].mxu0 %v1172
        %v1240 = vpop.f32.mrb[0].mxu0
        %v1241 = vadd.f32 0.0, %v1240
        %v1242 = vpop.f32.mrb[0].mxu0
        %1243 = vdwg.mxu0
        %v1244 = vadd.f32 %v1163, %v1241
        %v1245 = vrcp.pop %v1167
        %v1246 = vmul.f32 %v1244, %v1245
        %1248 = vrot.lane.b32.xlu0 %v1246, 24
        %v1249 = vpop.permute.xlu0 %1248
        %vm1251 = vcmask 261312
        %1252 = vst.msk [vmem:[#allocation4] sm:$0xff] %vm1251, %v1249
        %v1253 = vld [vmem:[#allocation4] sm:$0xff]
        %v1254 = vld [vmem:[#allocation11] sm:$0xff]
        %v1255 = vld [vmem:[#allocation11 + $0x8] sm:$0xff]
        %v1256 = vld [vmem:[#allocation11 + $0x10] sm:$0xff]
        %v1257 = vld [vmem:[#allocation11 + $0x18] sm:$0xff]
        %v1258 = vld [vmem:[%s6] sm:$0x1]
        %v1260 = vlaneseq
        %v1261 = vshrl.u32 %v1260, 7
        %v1262 = vsub.s32 0, %v1261
        %v1263 = vrot.slane %v1258, %v1262
        %v1266 = vsel %vm458, %v1253, 0
        %1268 = vmatprep.subr.mxu0 0.0
        %1269 = vmatpush1.msra.mxu0 %v1254
        %1270 = vmatprep.subr.mxu0 0.0
        %1271 = vmatpush1.msra.mxu0 %v1255
        %1272 = vmatprep.subr.mxu0 0.0
        %1273 = vmatpush1.msra.mxu0 %v1256
        %1274 = vmatprep.subr.mxu0 0.0
        %1275 = vmatpush1.msra.mxu0 %v1257
        %1276 = vmatprep.subr.mxu0 0.0
        %1277 = vmatpush1.msra.mxu0 0.0
        %1278 = vmatprep.subr.mxu0 0.0
        %1279 = vmatpush1.msra.mxu0 0.0
        %1280 = vmatprep.subr.mxu0 0.0
        %1281 = vmatpush1.msra.mxu0 0.0
        %1282 = vmatprep.subr.mxu0 0.0
        %1283 = vmatpush1.msra.mxu0 0.0
        %1284 = vmatprep.subr.mxu0 0.0
        %1285 = vmatpush1.msra.mxu0 0.0
        %1286 = vmatprep.subr.mxu0 0.0
        %1287 = vmatpush1.msra.mxu0 0.0
        %1288 = vmatprep.subr.mxu0 0.0
        %1289 = vmatpush1.msra.mxu0 0.0
        %1290 = vmatprep.subr.mxu0 0.0
        %1291 = vmatpush1.msra.mxu0 0.0
        %1292 = vmatprep.subr.mxu0 0.0
        %1293 = vmatpush1.msra.mxu0 0.0
        %1294 = vmatprep.subr.mxu0 0.0
        %1295 = vmatpush1.msra.mxu0 0.0
        %1296 = vmatprep.subr.mxu0 0.0
        %1297 = vmatpush1.msra.mxu0 0.0
        %1298 = vmatprep.subr.mxu0 0.0
        %1299 = vmatpush1.msra.mxu0 0.0
        %1300 = vmatprep.subr.mxu0 0.0
        %1301 = vmatpush1.msra.mxu0 0.0
        %1302 = vmatprep.subr.mxu0 0.0
        %1303 = vmatpush1.msra.mxu0 0.0
        %1304 = vmatprep.subr.mxu0 0.0
        %1305 = vmatpush1.msra.mxu0 0.0
        %1306 = vmatprep.subr.mxu0 0.0
        %1307 = vmatpush1.msra.mxu0 0.0
        %1308 = vmatprep.subr.mxu0 0.0
        %1309 = vmatpush1.msra.mxu0 0.0
        %1310 = vmatprep.subr.mxu0 0.0
        %1311 = vmatpush1.msra.mxu0 0.0
        %1312 = vmatprep.subr.mxu0 0.0
        %1313 = vmatpush1.msra.mxu0 0.0
        %1314 = vmatprep.subr.mxu0 0.0
        %1315 = vmatpush1.msra.mxu0 0.0
        %1316 = vmatprep.subr.mxu0 0.0
        %1317 = vmatpush1.msra.mxu0 0.0
        %1318 = vmatprep.subr.mxu0 0.0
        %1319 = vmatpush1.msra.mxu0 0.0
        %1320 = vmatprep.subr.mxu0 0.0
        %1321 = vmatpush1.msra.mxu0 0.0
        %1322 = vmatprep.subr.mxu0 0.0
        %1323 = vmatpush1.msra.mxu0 0.0
        %1324 = vmatprep.subr.mxu0 0.0
        %1325 = vmatpush1.msra.mxu0 0.0
        %1326 = vmatprep.subr.mxu0 0.0
        %1327 = vmatpush1.msra.mxu0 0.0
        %1328 = vmatprep.subr.mxu0 0.0
        %1329 = vmatpush1.msra.mxu0 0.0
        %1330 = vmatprep.subr.mxu0 0.0
        %1331 = vmatpush1.msra.mxu0 0.0
        %1332 = vmatprep.mubr.f32.mxu0 0.0
        %1333 = vmatmul.mubr.f32.gmra.mrb[0].mxu0 %v1266
        %v1334 = vpop.f32.mrb[0].mxu0
        %v1335 = vadd.f32 %v1263, %v1334
        %v1336 = vpop.f32.mrb[0].mxu0
        %1337 = vdwg.mxu0
        %1338 = vst.msk [vmem:[%s351] sm:$0xff] %vm458, %v1335
        %s1339 = sand.u32 %s200, 1
        %s1340 = scalar_lea.sflag [#allocation7], %s1339
        %s1341 = sand.u32 %s200, 1
        %s1342 = smul.addr %s1341, 8
        %s1343 = scalar_lea.vmem [#allocation13], %s1342
        // Predicated region
        $region69: #{tpu_custom_call.1} parent=47 // pred_check
          %p1344 = pneg %p210
        $region70: #{tpu_custom_call.1} parent=47 // pred_check_branch
          %1346 = sbr.rel (%p1344) target = $region72
        $region71: #{tpu_custom_call.1} parent=47 // pred_region
          %s1348 = ssub.s32 128, 128
          %1349 = vsyncadd %s1340, %s1348
          %s1350 = sadd.s32 %s31, %s30
          %s1351 = smul.addr %s1350, 128
          %s1352 = scalar_lea.hbm %s7, %s1351
          %s1354 = sshll.u32 %s1343, 4
          %s1355 = int_to_ptr.vmem [resolvable:$true] %s1354
          %1357 = dma.vmem_to_hbm [thread:$0]  %s1355, 128, %s1352, %s1340
        $region72: #{tpu_custom_call.1} parent=47 // pred_fallthru
          _
      $region48: #{tpu_custom_call.1} parent=5 // pred_fallthru
        _
      %p1358 = scmp.le.s32.totalorder 2, %s21
      // Predicated region
      $region73: #{tpu_custom_call.1} parent=5 // pred_check
        %p1359 = pneg %p1358
      $region74: #{tpu_custom_call.1} parent=5 // pred_check_branch
        %1361 = sbr.rel (%p1359) target = $region76
      $region75: #{tpu_custom_call.1} parent=5 // pred_region
        %s1362 = ssub.s32 %s21, 2
        // Predicated region
        $region77: #{tpu_custom_call.1} parent=75 // pred_check
          %p1363 = pneg %p216
        $region78: #{tpu_custom_call.1} parent=75 // pred_check_branch
          %1365 = sbr.rel (%p1363) target = $region80
        $region79: #{tpu_custom_call.1} parent=75 // pred_region
          %s1366 = sand.u32 %s201, 1
          %s1367 = scalar_lea.sflag [#allocation7], %s1366
          %s1368 = sand.u32 %s201, 1
          %s1369 = smul.addr %s1368, 8
          %s1370 = scalar_lea.vmem [#allocation13], %s1369
          %1371 = dma.done %s1367, 128
        $region80: #{tpu_custom_call.1} parent=75 // pred_fallthru
          _
      $region76: #{tpu_custom_call.1} parent=5 // pred_fallthru
        _
    $region6: #{tpu_custom_call.1} parent=1 // loop_footer
      %s25 = sadd.s32 1, %s21
    $region7: #{tpu_custom_call.1} parent=1 // loop_footer_branch
      %20 = sbr.rel target = $region3
    $region8: #{tpu_custom_call.1} parent=1 // loop_exit
      _
    %1372 = vsyncpa [#allocation6], 1
    %s1373 = scalar_lea.sflag [#allocation6], 1
    %1374 = vsyncpa %s1373, 1
    %1375 = vsyncpa [#allocation9], 1
    %1376 = vsyncpa [#allocation12], 1
    %1377 = vsyncpa [#allocation7], 1
    %s1378 = scalar_lea.sflag [#allocation7], 1
    %1379 = vsyncpa %s1378, 1

// kernel: tpu_custom_call.1
$region0: #{tpu_custom_call.1}
  #allocation0 [shape = 'u32[]', space=smem, size = 0x4, offset = 0x4, fixed_abs, tag = 'smem constant byte address 0x4 - core index']
  #allocation1 [shape = 'u32[144,128]{1,0:T(1,128)}', space=vmem, size = 0x12000, scoped, tag = 'internal scratch']
  #allocation2 [shape = 'f32[8,64]{1,0:T(8,128)}', space=vmem, size = 0x1000, scoped, tag = 'scratch operand']
  #allocation3 [shape = 'f32[8,32]{1,0:T(8,128)}', space=vmem, size = 0x1000, scoped, tag = 'scratch operand']
  #allocation4 [shape = 'f32[8,32]{1,0:T(8,128)}', space=vmem, size = 0x1000, scoped, tag = 'scratch operand']
  %s0 = inlined_call_operand.hbm [shape: f32[2,8,32], index: 0, kind: input, shape index: {}]
  %s1 = inlined_call_operand.hbm [shape: f32[32,32], index: 1, kind: input, shape index: {}]
  %s2 = inlined_call_operand.vmem [shape: f32[1,32], index: 2, kind: input, shape index: {}]
  %s3 = inlined_call_operand.hbm [shape: f32[32,64], index: 3, kind: input, shape index: {}]
  %s4 = inlined_call_operand.vmem [shape: f32[1,64], index: 4, kind: input, shape index: {}]
  %s5 = inlined_call_operand.hbm [shape: f32[32,32], index: 5, kind: input, shape index: {}]
  %s6 = inlined_call_operand.vmem [shape: f32[1,32], index: 6, kind: input, shape index: {}]
  %s7 = inlined_call_operand.hbm [shape: f32[2,8,32], index: 7, kind: output, shape index: {}]
  %s8 = sld [smem:[#allocation0]]
  $region81: #{tpu_custom_call.1} parent=0
    _
  %s10 = ssub.s32 1, %s8
  %s11 = scalar_select 0, %s10, %s8
  $region1: #{tpu_custom_call.1} parent=0
    #allocation5 [shape = 'u8[8192]{0}', space=vmem, size = 0x2000, scoped, tag = 'input window, operand 0']
    #allocation6 [shape = 's32[2]{0}', space=sflag, size = 0x8, scoped, tag = 'scoped memory for tpu_custom_call.1']
    #allocation7 [shape = 's32[2]{0}', space=sflag, size = 0x8, scoped, tag = 'scoped memory for tpu_custom_call.1']
    #allocation8 [shape = 'u8[16384]{0}', space=vmem, size = 0x4000, scoped, tag = 'input window, operand 1, single buffered']
    #allocation9 [shape = 's32[1]{0}', space=sflag, size = 0x4, scoped, tag = 'scoped memory for tpu_custom_call.1']
    #allocation10 [shape = 'u8[16384]{0}', space=vmem, size = 0x4000, scoped, tag = 'input window, operand 3, single buffered']
    #allocation11 [shape = 'u8[16384]{0}', space=vmem, size = 0x4000, scoped, tag = 'input window, operand 5, single buffered']
    #allocation12 [shape = 's32[1]{0}', space=sflag, size = 0x4, scoped, tag = 'scoped memory for tpu_custom_call.1']
    #allocation13 [shape = 'u8[8192]{0}', space=vmem, size = 0x2000, scoped, tag = 'output window, operand 0']
    %12 = vsyncpa [#allocation6], 0
    %s13 = scalar_lea.sflag [#allocation6], 1
    %14 = vsyncpa %s13, 0
    %15 = vsyncpa [#allocation9], 0
    %16 = vsyncpa [#allocation12], 0
    %17 = vsyncpa [#allocation7], 0
    %s18 = scalar_lea.sflag [#allocation7], 1
    %19 = vsyncpa %s18, 0
    loop: start=0, step=1, limit=4
    $region2: #{tpu_custom_call.1} parent=1 // loop_pre_header
      _
    $region3: #{tpu_custom_call.1} parent=1 // loop_header
      %s21 = sphi 0, %s25
      %p22 = scmp.ge.s32.totalorder %s21, 4
      %s28 = sphi 0, %s40
      %s29 = sphi 0, %s36
      %s30 = sphi 0, %s28
      %s31 = sphi 0, %s29
      %s32 = sphi 0, %s30
      %s33 = sphi 0, %s31
      %s43 = sphi 0, %s45
      %s46 = sphi 0, %s43
      %s47 = sphi 0, %s46
      %s63 = sphi 0, %s47
      %s67 = sphi 0, %s67
      %s69 = sphi 0, %s67
      %s70 = sphi 0, %s69
      %s84 = sphi 0, %s70
      %s88 = sphi 0, %s88
      %s90 = sphi 0, %s88
      %s91 = sphi 0, %s90
      %s105 = sphi 0, %s91
      %s109 = sphi 0, %s109
      %s111 = sphi 0, %s109
      %s112 = sphi 0, %s111
      %s126 = sphi 0, %s112
      %s130 = sphi 0, %s130
      %s132 = sphi 0, %s130
      %s133 = sphi 0, %s132
      %s147 = sphi 0, %s133
      %s151 = sphi 0, %s151
      %s153 = sphi 0, %s151
      %s154 = sphi 0, %s153
      %s168 = sphi 0, %s154
      %s172 = sphi 0, %s172
      %s174 = sphi 0, %s172
      %s175 = sphi 0, %s174
      %s189 = sphi 0, %s175
      %s197 = sphi 0, %s199
      %s200 = sphi 0, %s197
      %s201 = sphi 0, %s200
      %s217 = sphi 0, %s201
    $region4: #{tpu_custom_call.1} parent=1 // loop_header_branch
      %24 = sbr.rel (%p22) target = $region8
    $region5: #{tpu_custom_call.1} parent=1 // loop_body
      %s26 = ssub.s32 %s21, 1
      %s27 = ssub.s32 %s21, 2
      %s34 = sadd.s32 1, %s29
      %p35 = scmp.ge.s32.totalorder %s34, 1
      %s36 = scalar_select %p35, 0, %s34
      %s37 = sadd.s32 1, %s28
      %s38 = scalar_select %p35, %s37, %s28
      %p39 = scmp.ge.s32.totalorder %s38, 2
      %s40 = scalar_select %p39, 0, %s38
      %s41 = ssub.s32 %s28, %s40
      %p42 = scmp.eq.s32.totalorder %s41, 0
      %s44 = sadd.s32 %s43, 1
      %s45 = scalar_select %p42, %s43, %s44
      %p48 = pneg %p42
      %p49 = scmp.eq.s32.totalorder %s21, 1
      %p50 = por %p48, %p49
      %p51 = scmp.ne.s32.totalorder %s43, %s46
      %p52 = scmp.eq.s32.totalorder %s21, 0
      %p53 = por %p51, %p52
      %p54 = scmp.ne.s32.totalorder %s43, %s46
      %p55 = scmp.eq.s32.totalorder %s26, 1
      %p56 = por %p54, %p55
      %p57 = scmp.ne.s32.totalorder %s46, %s47
      %p58 = scmp.eq.s32.totalorder %s26, 0
      %p59 = por %p57, %p58
      %p60 = scmp.ne.s32.totalorder %s46, %s47
      %p61 = scmp.eq.s32.totalorder %s27, 1
      %p62 = por %p60, %p61
      %p64 = scmp.ne.s32.totalorder %s47, %s63
      %p65 = scmp.eq.s32.totalorder %s27, 0
      %p66 = por %p64, %p65
      %s68 = sadd.s32 %s67, 1
      %p71 = scmp.eq.s32.totalorder %s21, 1
      %p72 = scmp.ne.s32.totalorder %s67, %s69
      %p73 = scmp.eq.s32.totalorder %s21, 0
      %p74 = por %p72, %p73
      %p75 = scmp.ne.s32.totalorder %s67, %s69
      %p76 = scmp.eq.s32.totalorder %s26, 1
      %p77 = por %p75, %p76
      %p78 = scmp.ne.s32.totalorder %s69, %s70
      %p79 = scmp.eq.s32.totalorder %s26, 0
      %p80 = por %p78, %p79
      %p81 = scmp.ne.s32.totalorder %s69, %s70
      %p82 = scmp.eq.s32.totalorder %s27, 1
      %p83 = por %p81, %p82
      %p85 = scmp.ne.s32.totalorder %s70, %s84
      %p86 = scmp.eq.s32.totalorder %s27, 0
      %p87 = por %p85, %p86
      %s89 = sadd.s32 %s88, 1
      %p92 = scmp.eq.s32.totalorder %s21, 1
      %p93 = scmp.ne.s32.totalorder %s88, %s90
      %p94 = scmp.eq.s32.totalorder %s21, 0
      %p95 = por %p93, %p94
      %p96 = scmp.ne.s32.totalorder %s88, %s90
      %p97 = scmp.eq.s32.totalorder %s26, 1
      %p98 = por %p96, %p97
      %p99 = scmp.ne.s32.totalorder %s90, %s91
      %p100 = scmp.eq.s32.totalorder %s26, 0
      %p101 = por %p99, %p100
      %p102 = scmp.ne.s32.totalorder %s90, %s91
      %p103 = scmp.eq.s32.totalorder %s27, 1
      %p104 = por %p102, %p103
      %p106 = scmp.ne.s32.totalorder %s91, %s105
      %p107 = scmp.eq.s32.totalorder %s27, 0
      %p108 = por %p106, %p107
      %s110 = sadd.s32 %s109, 1
      %p113 = scmp.eq.s32.totalorder %s21, 1
      %p114 = scmp.ne.s32.totalorder %s109, %s111
      %p115 = scmp.eq.s32.totalorder %s21, 0
      %p116 = por %p114, %p115
      %p117 = scmp.ne.s32.totalorder %s109, %s111
      %p118 = scmp.eq.s32.totalorder %s26, 1
      %p119 = por %p117, %p118
      %p120 = scmp.ne.s32.totalorder %s111, %s112
      %p121 = scmp.eq.s32.totalorder %s26, 0
      %p122 = por %p120, %p121
      %p123 = scmp.ne.s32.totalorder %s111, %s112
      %p124 = scmp.eq.s32.totalorder %s27, 1
      %p125 = por %p123, %p124
      %p127 = scmp.ne.s32.totalorder %s112, %s126
      %p128 = scmp.eq.s32.totalorder %s27, 0
      %p129 = por %p127, %p128
      %s131 = sadd.s32 %s130, 1
      %p134 = scmp.eq.s32.totalorder %s21, 1
      %p135 = scmp.ne.s32.totalorder %s130, %s132
      %p136 = scmp.eq.s32.totalorder %s21, 0
      %p137 = por %p135, %p136
      %p138 = scmp.ne.s32.totalorder %s130, %s132
      %p139 = scmp.eq.s32.totalorder %s26, 1
      %p140 = por %p138, %p139
      %p141 = scmp.ne.s32.totalorder %s132, %s133
      %p142 = scmp.eq.s32.totalorder %s26, 0
      %p143 = por %p141, %p142
      %p144 = scmp.ne.s32.totalorder %s132, %s133
      %p145 = scmp.eq.s32.totalorder %s27, 1
      %p146 = por %p144, %p145
      %p148 = scmp.ne.s32.totalorder %s133, %s147
      %p149 = scmp.eq.s32.totalorder %s27, 0
      %p150 = por %p148, %p149
      %s152 = sadd.s32 %s151, 1
      %p155 = scmp.eq.s32.totalorder %s21, 1
      %p156 = scmp.ne.s32.totalorder %s151, %s153
      %p157 = scmp.eq.s32.totalorder %s21, 0
      %p158 = por %p156, %p157
      %p159 = scmp.ne.s32.totalorder %s151, %s153
      %p160 = scmp.eq.s32.totalorder %s26, 1
      %p161 = por %p159, %p160
      %p162 = scmp.ne.s32.totalorder %s153, %s154
      %p163 = scmp.eq.s32.totalorder %s26, 0
      %p164 = por %p162, %p163
      %p165 = scmp.ne.s32.totalorder %s153, %s154
      %p166 = scmp.eq.s32.totalorder %s27, 1
      %p167 = por %p165, %p166
      %p169 = scmp.ne.s32.totalorder %s154, %s168
      %p170 = scmp.eq.s32.totalorder %s27, 0
      %p171 = por %p169, %p170
      %s173 = sadd.s32 %s172, 1
      %p176 = scmp.eq.s32.totalorder %s21, 1
      %p177 = scmp.ne.s32.totalorder %s172, %s174
      %p178 = scmp.eq.s32.totalorder %s21, 0
      %p179 = por %p177, %p178
      %p180 = scmp.ne.s32.totalorder %s172, %s174
      %p181 = scmp.eq.s32.totalorder %s26, 1
      %p182 = por %p180, %p181
      %p183 = scmp.ne.s32.totalorder %s174, %s175
      %p184 = scmp.eq.s32.totalorder %s26, 0
      %p185 = por %p183, %p184
      %p186 = scmp.ne.s32.totalorder %s174, %s175
      %p187 = scmp.eq.s32.totalorder %s27, 1
      %p188 = por %p186, %p187
      %p190 = scmp.ne.s32.totalorder %s175, %s189
      %p191 = scmp.eq.s32.totalorder %s27, 0
      %p192 = por %p190, %p191
      %s193 = ssub.s32 %s28, %s40
      %s194 = ssub.s32 %s29, %s36
      %s195 = sor.u32 %s193, %s194
      %p196 = scmp.eq.s32.totalorder %s195, 0
      %s198 = sadd.s32 %s197, 1
      %s199 = scalar_select %p196, %s197, %s198
      %p202 = pneg %p196
      %p203 = scmp.eq.s32.totalorder %s21, 1
      %p204 = por %p202, %p203
      %p205 = scmp.ne.s32.totalorder %s197, %s200
      %p206 = scmp.eq.s32.totalorder %s21, 0
      %p207 = por %p205, %p206
      %p208 = scmp.ne.s32.totalorder %s197, %s200
      %p209 = scmp.eq.s32.totalorder %s26, 1
      %p210 = por %p208, %p209
      %p211 = scmp.ne.s32.totalorder %s200, %s201
      %p212 = scmp.eq.s32.totalorder %s26, 0
      %p213 = por %p211, %p212
      %p214 = scmp.ne.s32.totalorder %s200, %s201
      %p215 = scmp.eq.s32.totalorder %s27, 1
      %p216 = por %p214, %p215
      %p218 = scmp.ne.s32.totalorder %s201, %s217
      %p219 = scmp.eq.s32.totalorder %s27, 0
      %p220 = por %p218, %p219
      %p221 = scmp.le.s32.totalorder 1, %s21
      %p222 = scmp.lt.s32.totalorder %s21, 3
      %p223 = pnand %p221, %p222
      %p224 = pneg %p223
      // Predicated region
      $region9: #{tpu_custom_call.1} parent=5 // pred_check
        _
      $region10: #{tpu_custom_call.1} parent=5 // pred_check_branch
        %226 = sbr.rel (%p223) target = $region12
      $region11: #{tpu_custom_call.1} parent=5 // pred_region
        %s227 = ssub.s32 %s21, 1
        // Predicated region
        $region13: #{tpu_custom_call.1} parent=11 // pred_check
          %p228 = pneg %p80
        $region14: #{tpu_custom_call.1} parent=11 // pred_check_branch
          %230 = sbr.rel (%p228) target = $region16
        $region15: #{tpu_custom_call.1} parent=11 // pred_region
          %s232 = ssub.s32 512, 512
          %233 = vsyncadd [#allocation9], %s232
          %s234 = sshll.u32 [#allocation8], 4
          %s235 = int_to_ptr.vmem [resolvable:$true] %s234
          %240 = dma.hbm_to_vmem [thread:$0]  %s1, 512, %s235, [#allocation9], 128, 128, 8
        $region16: #{tpu_custom_call.1} parent=11 // pred_fallthru
          _
        // Predicated region
        $region17: #{tpu_custom_call.1} parent=11 // pred_check
          %p241 = pneg %p101
        $region18: #{tpu_custom_call.1} parent=11 // pred_check_branch
          %243 = sbr.rel (%p241) target = $region20
        $region19: #{tpu_custom_call.1} parent=11 // pred_region
          _
        $region20: #{tpu_custom_call.1} parent=11 // pred_fallthru
          _
        // Predicated region
        $region21: #{tpu_custom_call.1} parent=11 // pred_check
          %p244 = pneg %p122
        $region22: #{tpu_custom_call.1} parent=11 // pred_check_branch
          %246 = sbr.rel (%p244) target = $region24
        $region23: #{tpu_custom_call.1} parent=11 // pred_region
          %s248 = ssub.s32 512, 512
          %249 = vsyncadd [#allocation9], %s248
          %s250 = sshll.u32 [#allocation10], 4
          %s251 = int_to_ptr.vmem [resolvable:$true] %s250
          %256 = dma.hbm_to_vmem [thread:$0]  %s3, 512, %s251, [#allocation9], 128, 128, 8
        $region24: #{tpu_custom_call.1} parent=11 // pred_fallthru
          _
        // Predicated region
        $region25: #{tpu_custom_call.1} parent=11 // pred_check
          %p257 = pneg %p143
        $region26: #{tpu_custom_call.1} parent=11 // pred_check_branch
          %259 = sbr.rel (%p257) target = $region28
        $region27: #{tpu_custom_call.1} parent=11 // pred_region
          _
        $region28: #{tpu_custom_call.1} parent=11 // pred_fallthru
          _
        // Predicated region
        $region29: #{tpu_custom_call.1} parent=11 // pred_check
          %p260 = pneg %p164
        $region30: #{tpu_custom_call.1} parent=11 // pred_check_branch
          %262 = sbr.rel (%p260) target = $region32
        $region31: #{tpu_custom_call.1} parent=11 // pred_region
          %s264 = ssub.s32 512, 512
          %265 = vsyncadd [#allocation12], %s264
          %s266 = sshll.u32 [#allocation11], 4
          %s267 = int_to_ptr.vmem [resolvable:$true] %s266
          %272 = dma.hbm_to_vmem [thread:$0]  %s5, 512, %s267, [#allocation12], 128, 128, 8
        $region32: #{tpu_custom_call.1} parent=11 // pred_fallthru
          _
        // Predicated region
        $region33: #{tpu_custom_call.1} parent=11 // pred_check
          %p273 = pneg %p185
        $region34: #{tpu_custom_call.1} parent=11 // pred_check_branch
          %275 = sbr.rel (%p273) target = $region36
        $region35: #{tpu_custom_call.1} parent=11 // pred_region
          _
        $region36: #{tpu_custom_call.1} parent=11 // pred_fallthru
          _
      $region12: #{tpu_custom_call.1} parent=5 // pred_fallthru
        _
      %p276 = scmp.lt.s32.totalorder %s21, 2
      // Predicated region
      $region37: #{tpu_custom_call.1} parent=5 // pred_check
        %p277 = pneg %p276
      $region38: #{tpu_custom_call.1} parent=5 // pred_check_branch
        %279 = sbr.rel (%p277) target = $region40
      $region39: #{tpu_custom_call.1} parent=5 // pred_region
        // Predicated region
        $region41: #{tpu_custom_call.1} parent=39 // pred_check
          %p280 = pneg %p53
        $region42: #{tpu_custom_call.1} parent=39 // pred_check_branch
          %282 = sbr.rel (%p280) target = $region44
        $region43: #{tpu_custom_call.1} parent=39 // pred_region
          %s283 = sand.u32 %s43, 1
          %s284 = scalar_lea.sflag [#allocation6], %s283
          %s285 = sand.u32 %s43, 1
          %s286 = smul.addr %s285, 8
          %s287 = scalar_lea.vmem [#allocation5], %s286
          %s289 = ssub.s32 128, 128
          %290 = vsyncadd %s284, %s289
          %s291 = smul.addr %s28, 128
          %s292 = scalar_lea.hbm %s0, %s291
          %s294 = sshll.u32 %s287, 4
          %s295 = int_to_ptr.vmem [resolvable:$true] %s294
          %297 = dma.hbm_to_vmem [thread:$0]  %s292, 128, %s295, %s284
        $region44: #{tpu_custom_call.1} parent=39 // pred_fallthru
          _
      $region40: #{tpu_custom_call.1} parent=5 // pred_fallthru
        _
      %p298 = scmp.le.s32.totalorder 1, %s21
      %p299 = scmp.lt.s32.totalorder %s21, 3
      %p300 = pnand %p298, %p299
      %p301 = pneg %p300
      // Predicated region
      $region45: #{tpu_custom_call.1} parent=5 // pred_check
        _
      $region46: #{tpu_custom_call.1} parent=5 // pred_check_branch
        %303 = sbr.rel (%p300) target = $region48
      $region47: #{tpu_custom_call.1} parent=5 // pred_region
        %s304 = ssub.s32 %s21, 1
        %s305 = sand.u32 %s46, 1
        %s306 = scalar_lea.sflag [#allocation6], %s305
        %s307 = sand.u32 %s46, 1
        %s308 = smul.addr %s307, 8
        %s309 = scalar_lea.vmem [#allocation5], %s308
        // Predicated region
        $region49: #{tpu_custom_call.1} parent=47 // pred_check
          %p310 = pneg %p59
        $region50: #{tpu_custom_call.1} parent=47 // pred_check_branch
          %312 = sbr.rel (%p310) target = $region52
        $region51: #{tpu_custom_call.1} parent=47 // pred_region
          %313 = dma.done %s306, 128
        $region52: #{tpu_custom_call.1} parent=47 // pred_fallthru
          _
        // Predicated region
        $region53: #{tpu_custom_call.1} parent=47 // pred_check
          %p314 = pneg %p80
        $region54: #{tpu_custom_call.1} parent=47 // pred_check_branch
          %316 = sbr.rel (%p314) target = $region56
        $region55: #{tpu_custom_call.1} parent=47 // pred_region
          %317 = dma.done [#allocation9], 512
        $region56: #{tpu_custom_call.1} parent=47 // pred_fallthru
          _
        // Predicated region
        $region57: #{tpu_custom_call.1} parent=47 // pred_check
          %p318 = pneg %p122
        $region58: #{tpu_custom_call.1} parent=47 // pred_check_branch
          %320 = sbr.rel (%p318) target = $region60
        $region59: #{tpu_custom_call.1} parent=47 // pred_region
          %321 = dma.done [#allocation9], 512
        $region60: #{tpu_custom_call.1} parent=47 // pred_fallthru
          _
        // Predicated region
        $region61: #{tpu_custom_call.1} parent=47 // pred_check
          %p322 = pneg %p164
        $region62: #{tpu_custom_call.1} parent=47 // pred_check_branch
          %324 = sbr.rel (%p322) target = $region64
        $region63: #{tpu_custom_call.1} parent=47 // pred_region
          %325 = dma.done [#allocation12], 512
        $region64: #{tpu_custom_call.1} parent=47 // pred_fallthru
          _
        %s326 = sand.u32 %s46, 1
        %s327 = scalar_lea.sflag [#allocation6], %s326
        %s328 = sand.u32 %s46, 1
        %s329 = smul.addr %s328, 8
        %s330 = scalar_lea.vmem [#allocation5], %s329
        %p331 = pneg %p59
        %p332 = pneg %p56
        %p333 = pneg %p80
        %p334 = pneg %p77
        %p335 = pneg %p101
        %p336 = pneg %p98
        %p337 = pneg %p122
        %p338 = pneg %p119
        %p339 = pneg %p143
        %p340 = pneg %p140
        %p341 = pneg %p164
        %p342 = pneg %p161
        %p343 = pneg %p185
        %p344 = pneg %p182
        %p345 = pneg %p213
        %p346 = pneg %p210
        %s347 = sand.u32 %s200, 1
        %s348 = scalar_lea.sflag [#allocation7], %s347
        %s349 = sand.u32 %s200, 1
        %s350 = smul.addr %s349, 8
        %s351 = scalar_lea.vmem [#allocation13], %s350
        %p352 = scmp.eq.s32.totalorder %s31, 0
        // Predicated region
        $region65: #{tpu_custom_call.1} parent=47 // pred_check
          %p353 = pneg %p352
        $region66: #{tpu_custom_call.1} parent=47 // pred_check_branch
          %355 = sbr.rel (%p353) target = $region68
        $region67: #{tpu_custom_call.1} parent=47 // pred_region
          %v356 = vld [vmem:[%s309] sm:$0xff]
          %v357 = vld [vmem:[#allocation10] sm:$0xff]
          %v358 = vld [vmem:[#allocation10 + $0x8] sm:$0xff]
          %v359 = vld [vmem:[#allocation10 + $0x10] sm:$0xff]
          %v360 = vld [vmem:[#allocation10 + $0x18] sm:$0xff]
          %v361 = vld [vmem:[%s4] sm:$0x1]
          %v363 = vlaneseq
          %v364 = vshrl.u32 %v363, 7
          %v365 = vsub.s32 0, %v364
          %v366 = vrot.slane %v361, %v365
          %vm368 = vcmask 261120
          %v370 = vsel %vm368, %v356, 0
          %372 = vmatprep.subr.mxu0 0.0
          %373 = vmatpush1.msra.mxu0 %v357
          %374 = vmatprep.subr.mxu0 0.0
          %375 = vmatpush1.msra.mxu0 %v358
          %376 = vmatprep.subr.mxu0 0.0
          %377 = vmatpush1.msra.mxu0 %v359
          %378 = vmatprep.subr.mxu0 0.0
          %379 = vmatpush1.msra.mxu0 %v360
          %380 = vmatprep.subr.mxu0 0.0
          %381 = vmatpush1.msra.mxu0 0.0
          %382 = vmatprep.subr.mxu0 0.0
          %383 = vmatpush1.msra.mxu0 0.0
          %384 = vmatprep.subr.mxu0 0.0
          %385 = vmatpush1.msra.mxu0 0.0
          %386 = vmatprep.subr.mxu0 0.0
          %387 = vmatpush1.msra.mxu0 0.0
          %388 = vmatprep.subr.mxu0 0.0
          %389 = vmatpush1.msra.mxu0 0.0
          %390 = vmatprep.subr.mxu0 0.0
          %391 = vmatpush1.msra.mxu0 0.0
          %392 = vmatprep.subr.mxu0 0.0
          %393 = vmatpush1.msra.mxu0 0.0
          %394 = vmatprep.subr.mxu0 0.0
          %395 = vmatpush1.msra.mxu0 0.0
          %396 = vmatprep.subr.mxu0 0.0
          %397 = vmatpush1.msra.mxu0 0.0
          %398 = vmatprep.subr.mxu0 0.0
          %399 = vmatpush1.msra.mxu0 0.0
          %400 = vmatprep.subr.mxu0 0.0
          %401 = vmatpush1.msra.mxu0 0.0
          %402 = vmatprep.subr.mxu0 0.0
          %403 = vmatpush1.msra.mxu0 0.0
          %404 = vmatprep.subr.mxu0 0.0
          %405 = vmatpush1.msra.mxu0 0.0
          %406 = vmatprep.subr.mxu0 0.0
          %407 = vmatpush1.msra.mxu0 0.0
          %408 = vmatprep.subr.mxu0 0.0
          %409 = vmatpush1.msra.mxu0 0.0
          %410 = vmatprep.subr.mxu0 0.0
          %411 = vmatpush1.msra.mxu0 0.0
          %412 = vmatprep.subr.mxu0 0.0
          %413 = vmatpush1.msra.mxu0 0.0
          %414 = vmatprep.subr.mxu0 0.0
          %415 = vmatpush1.msra.mxu0 0.0
          %416 = vmatprep.subr.mxu0 0.0
          %417 = vmatpush1.msra.mxu0 0.0
          %418 = vmatprep.subr.mxu0 0.0
          %419 = vmatpush1.msra.mxu0 0.0
          %420 = vmatprep.subr.mxu0 0.0
          %421 = vmatpush1.msra.mxu0 0.0
          %422 = vmatprep.subr.mxu0 0.0
          %423 = vmatpush1.msra.mxu0 0.0
          %424 = vmatprep.subr.mxu0 0.0
          %425 = vmatpush1.msra.mxu0 0.0
          %426 = vmatprep.subr.mxu0 0.0
          %427 = vmatpush1.msra.mxu0 0.0
          %428 = vmatprep.subr.mxu0 0.0
          %429 = vmatpush1.msra.mxu0 0.0
          %430 = vmatprep.subr.mxu0 0.0
          %431 = vmatpush1.msra.mxu0 0.0
          %432 = vmatprep.subr.mxu0 0.0
          %433 = vmatpush1.msra.mxu0 0.0
          %434 = vmatprep.subr.mxu0 0.0
          %435 = vmatpush1.msra.mxu0 0.0
          %436 = vmatprep.mubr.f32.mxu0 0.0
          %437 = vmatmul.mubr.f32.gmra.mrb[0].mxu0 %v370
          %v438 = vpop.f32.mrb[0].mxu0
          %v439 = vadd.f32 %v366, %v438
          %v440 = vpop.f32.mrb[0].mxu0
          %441 = vdwg.mxu0
          %vm442 = vcmask 523264
          %443 = vst.msk [vmem:[#allocation2] sm:$0xff] %vm442, %v439
        $region68: #{tpu_custom_call.1} parent=47 // pred_fallthru
          _
        %s444 = smul.u32 %s31, 8
        %s445 = scalar_lea.vmem %s309, %s444 [#allocation5]
        %v446 = vld [vmem:[%s445] sm:$0xff]
        %v447 = vld [vmem:[#allocation8] sm:$0xff]
        %v448 = vld [vmem:[#allocation8 + $0x8] sm:$0xff]
        %v449 = vld [vmem:[#allocation8 + $0x10] sm:$0xff]
        %v450 = vld [vmem:[#allocation8 + $0x18] sm:$0xff]
        %v451 = vld [vmem:[%s2] sm:$0x1]
        %v453 = vlaneseq
        %v454 = vshrl.u32 %v453, 7
        %v455 = vsub.s32 0, %v454
        %v456 = vrot.slane %v451, %v455
        %vm458 = vcmask 261120
        %v460 = vsel %vm458, %v446, 0
        %462 = vmatprep.subr.mxu0 0.0
        %463 = vmatpush1.msra.mxu0 %v447
        %464 = vmatprep.subr.mxu0 0.0
        %465 = vmatpush1.msra.mxu0 %v448
        %466 = vmatprep.subr.mxu0 0.0
        %467 = vmatpush1.msra.mxu0 %v449
        %468 = vmatprep.subr.mxu0 0.0
        %469 = vmatpush1.msra.mxu0 %v450
        %470 = vmatprep.subr.mxu0 0.0
        %471 = vmatpush1.msra.mxu0 0.0
        %472 = vmatprep.subr.mxu0 0.0
        %473 = vmatpush1.msra.mxu0 0.0
        %474 = vmatprep.subr.mxu0 0.0
        %475 = vmatpush1.msra.mxu0 0.0
        %476 = vmatprep.subr.mxu0 0.0
        %477 = vmatpush1.msra.mxu0 0.0
        %478 = vmatprep.subr.mxu0 0.0
        %479 = vmatpush1.msra.mxu0 0.0
        %480 = vmatprep.subr.mxu0 0.0
        %481 = vmatpush1.msra.mxu0 0.0
        %482 = vmatprep.subr.mxu0 0.0
        %483 = vmatpush1.msra.mxu0 0.0
        %484 = vmatprep.subr.mxu0 0.0
        %485 = vmatpush1.msra.mxu0 0.0
        %486 = vmatprep.subr.mxu0 0.0
        %487 = vmatpush1.msra.mxu0 0.0
        %488 = vmatprep.subr.mxu0 0.0
        %489 = vmatpush1.msra.mxu0 0.0
        %490 = vmatprep.subr.mxu0 0.0
        %491 = vmatpush1.msra.mxu0 0.0
        %492 = vmatprep.subr.mxu0 0.0
        %493 = vmatpush1.msra.mxu0 0.0
        %494 = vmatprep.subr.mxu0 0.0
        %495 = vmatpush1.msra.mxu0 0.0
        %496 = vmatprep.subr.mxu0 0.0
        %497 = vmatpush1.msra.mxu0 0.0
        %498 = vmatprep.subr.mxu0 0.0
        %499 = vmatpush1.msra.mxu0 0.0
        %500 = vmatprep.subr.mxu0 0.0
        %501 = vmatpush1.msra.mxu0 0.0
        %502 = vmatprep.subr.mxu0 0.0
        %503 = vmatpush1.msra.mxu0 0.0
        %504 = vmatprep.subr.mxu0 0.0
        %505 = vmatpush1.msra.mxu0 0.0
        %506 = vmatprep.subr.mxu0 0.0
        %507 = vmatpush1.msra.mxu0 0.0
        %508 = vmatprep.subr.mxu0 0.0
        %509 = vmatpush1.msra.mxu0 0.0
        %510 = vmatprep.subr.mxu0 0.0
        %511 = vmatpush1.msra.mxu0 0.0
        %512 = vmatprep.subr.mxu0 0.0
        %513 = vmatpush1.msra.mxu0 0.0
        %514 = vmatprep.subr.mxu0 0.0
        %515 = vmatpush1.msra.mxu0 0.0
        %516 = vmatprep.subr.mxu0 0.0
        %517 = vmatpush1.msra.mxu0 0.0
        %518 = vmatprep.subr.mxu0 0.0
        %519 = vmatpush1.msra.mxu0 0.0
        %520 = vmatprep.subr.mxu0 0.0
        %521 = vmatpush1.msra.mxu0 0.0
        %522 = vmatprep.subr.mxu0 0.0
        %523 = vmatpush1.msra.mxu0 0.0
        %524 = vmatprep.subr.mxu0 0.0
        %525 = vmatpush1.msra.mxu0 0.0
        %526 = vmatprep.mubr.f32.mxu0 0.0
        %527 = vmatmul.mubr.f32.gmra.mrb[0].mxu0 %v460
        %v528 = vpop.f32.mrb[0].mxu0
        %v529 = vadd.f32 %v456, %v528
        %v530 = vpop.f32.mrb[0].mxu0
        %531 = vdwg.mxu0
        %532 = vst.msk [vmem:[#allocation3] sm:$0xff] %vm458, %v529
        %v533 = vld [vmem:[#allocation3] sm:$0xff]
        %v534 = vld [vmem:[#allocation2] sm:$0xff]
        %vm535 = vcmask 64512
        %v537 = vsel %vm535, %v533, 0
        %v540 = vsel %vm535, %v534, 0
        %542 = vmatprep.subr.mxu0 0.0
        %543 = vmatpush1.xpose.msra.mxu0 %v540
        %544 = vmatprep.subr.mxu0 0.0
        %545 = vmatpush1.xpose.msra.mxu0 0.0
        %546 = vmatprep.subr.mxu0 0.0
        %547 = vmatpush1.xpose.msra.mxu0 0.0
        %548 = vmatprep.subr.mxu0 0.0
        %549 = vmatpush1.xpose.msra.mxu0 0.0
        %550 = vmatprep.subr.mxu0 0.0
        %551 = vmatpush1.xpose.msra.mxu0 0.0
        %552 = vmatprep.subr.mxu0 0.0
        %553 = vmatpush1.xpose.msra.mxu0 0.0
        %554 = vmatprep.subr.mxu0 0.0
        %555 = vmatpush1.xpose.msra.mxu0 0.0
        %556 = vmatprep.subr.mxu0 0.0
        %557 = vmatpush1.xpose.msra.mxu0 0.0
        %558 = vmatprep.subr.mxu0 0.0
        %559 = vmatpush1.xpose.msra.mxu0 0.0
        %560 = vmatprep.subr.mxu0 0.0
        %561 = vmatpush1.xpose.msra.mxu0 0.0
        %562 = vmatprep.subr.mxu0 0.0
        %563 = vmatpush1.xpose.msra.mxu0 0.0
        %564 = vmatprep.subr.mxu0 0.0
        %565 = vmatpush1.xpose.msra.mxu0 0.0
        %566 = vmatprep.subr.mxu0 0.0
        %567 = vmatpush1.xpose.msra.mxu0 0.0
        %568 = vmatprep.subr.mxu0 0.0
        %569 = vmatpush1.xpose.msra.mxu0 0.0
        %570 = vmatprep.subr.mxu0 0.0
        %571 = vmatpush1.xpose.msra.mxu0 0.0
        %572 = vmatprep.subr.mxu0 0.0
        %573 = vmatpush1.xpose.msra.mxu0 0.0
        %574 = vmatprep.subr.mxu0 0.0
        %575 = vmatpush1.xpose.msra.mxu0 0.0
        %576 = vmatprep.subr.mxu0 0.0
        %577 = vmatpush1.xpose.msra.mxu0 0.0
        %578 = vmatprep.subr.mxu0 0.0
        %579 = vmatpush1.xpose.msra.mxu0 0.0
        %580 = vmatprep.subr.mxu0 0.0
        %581 = vmatpush1.xpose.msra.mxu0 0.0
        %582 = vmatprep.subr.mxu0 0.0
        %583 = vmatpush1.xpose.msra.mxu0 0.0
        %584 = vmatprep.subr.mxu0 0.0
        %585 = vmatpush1.xpose.msra.mxu0 0.0
        %586 = vmatprep.subr.mxu0 0.0
        %587 = vmatpush1.xpose.msra.mxu0 0.0
        %588 = vmatprep.subr.mxu0 0.0
        %589 = vmatpush1.xpose.msra.mxu0 0.0
        %590 = vmatprep.subr.mxu0 0.0
        %591 = vmatpush1.xpose.msra.mxu0 0.0
        %592 = vmatprep.subr.mxu0 0.0
        %593 = vmatpush1.xpose.msra.mxu0 0.0
        %594 = vmatprep.subr.mxu0 0.0
        %595 = vmatpush1.xpose.msra.mxu0 0.0
        %596 = vmatprep.subr.mxu0 0.0
        %597 = vmatpush1.xpose.msra.mxu0 0.0
        %598 = vmatprep.subr.mxu0 0.0
        %599 = vmatpush1.xpose.msra.mxu0 0.0
        %600 = vmatprep.subr.mxu0 0.0
        %601 = vmatpush1.xpose.msra.mxu0 0.0
        %602 = vmatprep.subr.mxu0 0.0
        %603 = vmatpush1.xpose.msra.mxu0 0.0
        %604 = vmatprep.subr.mxu0 0.0
        %605 = vmatpush1.xpose.msra.mxu0 0.0
        %606 = vmatprep.mubr.f32.mxu0 0.0
        %607 = vmatmul.mubr.f32.gmra.mrb[0].mxu0 %v537
        %v608 = vpop.f32.mrb[0].mxu0
        %v609 = vadd.f32 0.0, %v608
        %v610 = vpop.f32.mrb[0].mxu0
        %611 = vdwg.mxu0
        %v612 = vmul.f32 %v609, 0.35355338
        %v613 = vsel %vm535, %v612, -inf
        %614 = vmax.xlane.f32.xlu0 %v613
        %v615 = vpop.xlane.xlu0 %614
        %v616 = vsub.f32 -inf, %v615
        %v617 = vmul.f32 %v616, 1.442695
        %v618 = vpow.pop %v617
        %v619 = vsub.f32 %v612, %v615
        %v620 = vmul.f32 %v619, 1.442695
        %v621 = vpow.pop %v620
        %v622 = vmul.f32 %v618, 0.0
        %v623 = vsel %vm535, %v621, 0.0
        %624 = vadd.xlane.f32.xlu0 %v623
        %v625 = vpop.xlane.xlu0 %624
        %v626 = vadd.f32 %v622, %v625
        %627 = vrot.lane.b32.xlu0 %v534, 96
        %v628 = vpop.permute.xlu0 %627
        %v631 = vsel %vm535, %v621, 0
        %633 = vmatprep.subr.mxu0 0.0
        %634 = vmatpush1.msra.mxu0 %v628
        %635 = vmatprep.subr.mxu0 0.0
        %636 = vmatpush1.msra.mxu0 0.0
        %637 = vmatprep.subr.mxu0 0.0
        %638 = vmatpush1.msra.mxu0 0.0
        %639 = vmatprep.subr.mxu0 0.0
        %640 = vmatpush1.msra.mxu0 0.0
        %641 = vmatprep.subr.mxu0 0.0
        %642 = vmatpush1.msra.mxu0 0.0
        %643 = vmatprep.subr.mxu0 0.0
        %644 = vmatpush1.msra.mxu0 0.0
        %645 = vmatprep.subr.mxu0 0.0
        %646 = vmatpush1.msra.mxu0 0.0
        %647 = vmatprep.subr.mxu0 0.0
        %648 = vmatpush1.msra.mxu0 0.0
        %649 = vmatprep.subr.mxu0 0.0
        %650 = vmatpush1.msra.mxu0 0.0
        %651 = vmatprep.subr.mxu0 0.0
        %652 = vmatpush1.msra.mxu0 0.0
        %653 = vmatprep.subr.mxu0 0.0
        %654 = vmatpush1.msra.mxu0 0.0
        %655 = vmatprep.subr.mxu0 0.0
        %656 = vmatpush1.msra.mxu0 0.0
        %657 = vmatprep.subr.mxu0 0.0
        %658 = vmatpush1.msra.mxu0 0.0
        %659 = vmatprep.subr.mxu0 0.0
        %660 = vmatpush1.msra.mxu0 0.0
        %661 = vmatprep.subr.mxu0 0.0
        %662 = vmatpush1.msra.mxu0 0.0
        %663 = vmatprep.subr.mxu0 0.0
        %664 = vmatpush1.msra.mxu0 0.0
        %665 = vmatprep.subr.mxu0 0.0
        %666 = vmatpush1.msra.mxu0 0.0
        %667 = vmatprep.subr.mxu0 0.0
        %668 = vmatpush1.msra.mxu0 0.0
        %669 = vmatprep.subr.mxu0 0.0
        %670 = vmatpush1.msra.mxu0 0.0
        %671 = vmatprep.subr.mxu0 0.0
        %672 = vmatpush1.msra.mxu0 0.0
        %673 = vmatprep.subr.mxu0 0.0
        %674 = vmatpush1.msra.mxu0 0.0
        %675 = vmatprep.subr.mxu0 0.0
        %676 = vmatpush1.msra.mxu0 0.0
        %677 = vmatprep.subr.mxu0 0.0
        %678 = vmatpush1.msra.mxu0 0.0
        %679 = vmatprep.subr.mxu0 0.0
        %680 = vmatpush1.msra.mxu0 0.0
        %681 = vmatprep.subr.mxu0 0.0
        %682 = vmatpush1.msra.mxu0 0.0
        %683 = vmatprep.subr.mxu0 0.0
        %684 = vmatpush1.msra.mxu0 0.0
        %685 = vmatprep.subr.mxu0 0.0
        %686 = vmatpush1.msra.mxu0 0.0
        %687 = vmatprep.subr.mxu0 0.0
        %688 = vmatpush1.msra.mxu0 0.0
        %689 = vmatprep.subr.mxu0 0.0
        %690 = vmatpush1.msra.mxu0 0.0
        %691 = vmatprep.subr.mxu0 0.0
        %692 = vmatpush1.msra.mxu0 0.0
        %693 = vmatprep.subr.mxu0 0.0
        %694 = vmatpush1.msra.mxu0 0.0
        %695 = vmatprep.subr.mxu0 0.0
        %696 = vmatpush1.msra.mxu0 0.0
        %697 = vmatprep.mubr.f32.mxu0 0.0
        %698 = vmatmul.mubr.f32.gmra.mrb[0].mxu0 %v631
        %v699 = vpop.f32.mrb[0].mxu0
        %v700 = vadd.f32 0.0, %v699
        %v701 = vpop.f32.mrb[0].mxu0
        %702 = vdwg.mxu0
        %v703 = vadd.f32 %v622, %v700
        %v704 = vrcp.pop %v626
        %v705 = vmul.f32 %v703, %v704
        %706 = vst.msk [vmem:[#allocation4] sm:$0xff] %vm535, %v705
        %v707 = vld [vmem:[#allocation3] sm:$0xff]
        %v708 = vld [vmem:[#allocation2] sm:$0xff]
        %710 = vrot.lane.b32.xlu0 %v707, 120
        %v711 = vpop.permute.xlu0 %710
        %713 = vrot.lane.b32.xlu0 %v708, 120
        %v714 = vpop.permute.xlu0 %713
        %v715 = vsel %vm535, %v711, 0
        %v717 = vsel %vm535, %v714, 0
        %719 = vmatprep.subr.mxu0 0.0
        %720 = vmatpush1.xpose.msra.mxu0 %v717
        %721 = vmatprep.subr.mxu0 0.0
        %722 = vmatpush1.xpose.msra.mxu0 0.0
        %723 = vmatprep.subr.mxu0 0.0
        %724 = vmatpush1.xpose.msra.mxu0 0.0
        %725 = vmatprep.subr.mxu0 0.0
        %726 = vmatpush1.xpose.msra.mxu0 0.0
        %727 = vmatprep.subr.mxu0 0.0
        %728 = vmatpush1.xpose.msra.mxu0 0.0
        %729 = vmatprep.subr.mxu0 0.0
        %730 = vmatpush1.xpose.msra.mxu0 0.0
        %731 = vmatprep.subr.mxu0 0.0
        %732 = vmatpush1.xpose.msra.mxu0 0.0
        %733 = vmatprep.subr.mxu0 0.0
        %734 = vmatpush1.xpose.msra.mxu0 0.0
        %735 = vmatprep.subr.mxu0 0.0
        %736 = vmatpush1.xpose.msra.mxu0 0.0
        %737 = vmatprep.subr.mxu0 0.0
        %738 = vmatpush1.xpose.msra.mxu0 0.0
        %739 = vmatprep.subr.mxu0 0.0
        %740 = vmatpush1.xpose.msra.mxu0 0.0
        %741 = vmatprep.subr.mxu0 0.0
        %742 = vmatpush1.xpose.msra.mxu0 0.0
        %743 = vmatprep.subr.mxu0 0.0
        %744 = vmatpush1.xpose.msra.mxu0 0.0
        %745 = vmatprep.subr.mxu0 0.0
        %746 = vmatpush1.xpose.msra.mxu0 0.0
        %747 = vmatprep.subr.mxu0 0.0
        %748 = vmatpush1.xpose.msra.mxu0 0.0
        %749 = vmatprep.subr.mxu0 0.0
        %750 = vmatpush1.xpose.msra.mxu0 0.0
        %751 = vmatprep.subr.mxu0 0.0
        %752 = vmatpush1.xpose.msra.mxu0 0.0
        %753 = vmatprep.subr.mxu0 0.0
        %754 = vmatpush1.xpose.msra.mxu0 0.0
        %755 = vmatprep.subr.mxu0 0.0
        %756 = vmatpush1.xpose.msra.mxu0 0.0
        %757 = vmatprep.subr.mxu0 0.0
        %758 = vmatpush1.xpose.msra.mxu0 0.0
        %759 = vmatprep.subr.mxu0 0.0
        %760 = vmatpush1.xpose.msra.mxu0 0.0
        %761 = vmatprep.subr.mxu0 0.0
        %762 = vmatpush1.xpose.msra.mxu0 0.0
        %763 = vmatprep.subr.mxu0 0.0
        %764 = vmatpush1.xpose.msra.mxu0 0.0
        %765 = vmatprep.subr.mxu0 0.0
        %766 = vmatpush1.xpose.msra.mxu0 0.0
        %767 = vmatprep.subr.mxu0 0.0
        %768 = vmatpush1.xpose.msra.mxu0 0.0
        %769 = vmatprep.subr.mxu0 0.0
        %770 = vmatpush1.xpose.msra.mxu0 0.0
        %771 = vmatprep.subr.mxu0 0.0
        %772 = vmatpush1.xpose.msra.mxu0 0.0
        %773 = vmatprep.subr.mxu0 0.0
        %774 = vmatpush1.xpose.msra.mxu0 0.0
        %775 = vmatprep.subr.mxu0 0.0
        %776 = vmatpush1.xpose.msra.mxu0 0.0
        %777 = vmatprep.subr.mxu0 0.0
        %778 = vmatpush1.xpose.msra.mxu0 0.0
        %779 = vmatprep.subr.mxu0 0.0
        %780 = vmatpush1.xpose.msra.mxu0 0.0
        %781 = vmatprep.subr.mxu0 0.0
        %782 = vmatpush1.xpose.msra.mxu0 0.0
        %783 = vmatprep.mubr.f32.mxu0 0.0
        %784 = vmatmul.mubr.f32.gmra.mrb[0].mxu0 %v715
        %v785 = vpop.f32.mrb[0].mxu0
        %v786 = vadd.f32 0.0, %v785
        %v787 = vpop.f32.mrb[0].mxu0
        %788 = vdwg.mxu0
        %v789 = vmul.f32 %v786, 0.35355338
        %v790 = vsel %vm535, %v789, -inf
        %791 = vmax.xlane.f32.xlu0 %v790
        %v792 = vpop.xlane.xlu0 %791
        %v793 = vsub.f32 -inf, %v792
        %v794 = vmul.f32 %v793, 1.442695
        %v795 = vpow.pop %v794
        %v796 = vsub.f32 %v789, %v792
        %v797 = vmul.f32 %v796, 1.442695
        %v798 = vpow.pop %v797
        %v799 = vmul.f32 %v795, 0.0
        %v800 = vsel %vm535, %v798, 0.0
        %801 = vadd.xlane.f32.xlu0 %v800
        %v802 = vpop.xlane.xlu0 %801
        %v803 = vadd.f32 %v799, %v802
        %804 = vrot.lane.b32.xlu0 %v708, 88
        %v805 = vpop.permute.xlu0 %804
        %v808 = vsel %vm535, %v798, 0
        %810 = vmatprep.subr.mxu0 0.0
        %811 = vmatpush1.msra.mxu0 %v805
        %812 = vmatprep.subr.mxu0 0.0
        %813 = vmatpush1.msra.mxu0 0.0
        %814 = vmatprep.subr.mxu0 0.0
        %815 = vmatpush1.msra.mxu0 0.0
        %816 = vmatprep.subr.mxu0 0.0
        %817 = vmatpush1.msra.mxu0 0.0
        %818 = vmatprep.subr.mxu0 0.0
        %819 = vmatpush1.msra.mxu0 0.0
        %820 = vmatprep.subr.mxu0 0.0
        %821 = vmatpush1.msra.mxu0 0.0
        %822 = vmatprep.subr.mxu0 0.0
        %823 = vmatpush1.msra.mxu0 0.0
        %824 = vmatprep.subr.mxu0 0.0
        %825 = vmatpush1.msra.mxu0 0.0
        %826 = vmatprep.subr.mxu0 0.0
        %827 = vmatpush1.msra.mxu0 0.0
        %828 = vmatprep.subr.mxu0 0.0
        %829 = vmatpush1.msra.mxu0 0.0
        %830 = vmatprep.subr.mxu0 0.0
        %831 = vmatpush1.msra.mxu0 0.0
        %832 = vmatprep.subr.mxu0 0.0
        %833 = vmatpush1.msra.mxu0 0.0
        %834 = vmatprep.subr.mxu0 0.0
        %835 = vmatpush1.msra.mxu0 0.0
        %836 = vmatprep.subr.mxu0 0.0
        %837 = vmatpush1.msra.mxu0 0.0
        %838 = vmatprep.subr.mxu0 0.0
        %839 = vmatpush1.msra.mxu0 0.0
        %840 = vmatprep.subr.mxu0 0.0
        %841 = vmatpush1.msra.mxu0 0.0
        %842 = vmatprep.subr.mxu0 0.0
        %843 = vmatpush1.msra.mxu0 0.0
        %844 = vmatprep.subr.mxu0 0.0
        %845 = vmatpush1.msra.mxu0 0.0
        %846 = vmatprep.subr.mxu0 0.0
        %847 = vmatpush1.msra.mxu0 0.0
        %848 = vmatprep.subr.mxu0 0.0
        %849 = vmatpush1.msra.mxu0 0.0
        %850 = vmatprep.subr.mxu0 0.0
        %851 = vmatpush1.msra.mxu0 0.0
        %852 = vmatprep.subr.mxu0 0.0
        %853 = vmatpush1.msra.mxu0 0.0
        %854 = vmatprep.subr.mxu0 0.0
        %855 = vmatpush1.msra.mxu0 0.0
        %856 = vmatprep.subr.mxu0 0.0
        %857 = vmatpush1.msra.mxu0 0.0
        %858 = vmatprep.subr.mxu0 0.0
        %859 = vmatpush1.msra.mxu0 0.0
        %860 = vmatprep.subr.mxu0 0.0
        %861 = vmatpush1.msra.mxu0 0.0
        %862 = vmatprep.subr.mxu0 0.0
        %863 = vmatpush1.msra.mxu0 0.0
        %864 = vmatprep.subr.mxu0 0.0
        %865 = vmatpush1.msra.mxu0 0.0
        %866 = vmatprep.subr.mxu0 0.0
        %867 = vmatpush1.msra.mxu0 0.0
        %868 = vmatprep.subr.mxu0 0.0
        %869 = vmatpush1.msra.mxu0 0.0
        %870 = vmatprep.subr.mxu0 0.0
        %871 = vmatpush1.msra.mxu0 0.0
        %872 = vmatprep.subr.mxu0 0.0
        %873 = vmatpush1.msra.mxu0 0.0
        %874 = vmatprep.mubr.f32.mxu0 0.0
        %875 = vmatmul.mubr.f32.gmra.mrb[0].mxu0 %v808
        %v876 = vpop.f32.mrb[0].mxu0
        %v877 = vadd.f32 0.0, %v876
        %v878 = vpop.f32.mrb[0].mxu0
        %879 = vdwg.mxu0
        %v880 = vadd.f32 %v799, %v877
        %v881 = vrcp.pop %v803
        %v882 = vmul.f32 %v880, %v881
        %884 = vrot.lane.b32.xlu0 %v882, 8
        %v885 = vpop.permute.xlu0 %884
        %vm887 = vcmask 130112
        %888 = vst.msk [vmem:[#allocation4] sm:$0xff] %vm887, %v885
        %v889 = vld [vmem:[#allocation3] sm:$0xff]
        %v890 = vld [vmem:[#allocation2] sm:$0xff]
        %892 = vrot.lane.b32.xlu0 %v889, 112
        %v893 = vpop.permute.xlu0 %892
        %895 = vrot.lane.b32.xlu0 %v890, 112
        %v896 = vpop.permute.xlu0 %895
        %v897 = vsel %vm535, %v893, 0
        %v899 = vsel %vm535, %v896, 0
        %901 = vmatprep.subr.mxu0 0.0
        %902 = vmatpush1.xpose.msra.mxu0 %v899
        %903 = vmatprep.subr.mxu0 0.0
        %904 = vmatpush1.xpose.msra.mxu0 0.0
        %905 = vmatprep.subr.mxu0 0.0
        %906 = vmatpush1.xpose.msra.mxu0 0.0
        %907 = vmatprep.subr.mxu0 0.0
        %908 = vmatpush1.xpose.msra.mxu0 0.0
        %909 = vmatprep.subr.mxu0 0.0
        %910 = vmatpush1.xpose.msra.mxu0 0.0
        %911 = vmatprep.subr.mxu0 0.0
        %912 = vmatpush1.xpose.msra.mxu0 0.0
        %913 = vmatprep.subr.mxu0 0.0
        %914 = vmatpush1.xpose.msra.mxu0 0.0
        %915 = vmatprep.subr.mxu0 0.0
        %916 = vmatpush1.xpose.msra.mxu0 0.0
        %917 = vmatprep.subr.mxu0 0.0
        %918 = vmatpush1.xpose.msra.mxu0 0.0
        %919 = vmatprep.subr.mxu0 0.0
        %920 = vmatpush1.xpose.msra.mxu0 0.0
        %921 = vmatprep.subr.mxu0 0.0
        %922 = vmatpush1.xpose.msra.mxu0 0.0
        %923 = vmatprep.subr.mxu0 0.0
        %924 = vmatpush1.xpose.msra.mxu0 0.0
        %925 = vmatprep.subr.mxu0 0.0
        %926 = vmatpush1.xpose.msra.mxu0 0.0
        %927 = vmatprep.subr.mxu0 0.0
        %928 = vmatpush1.xpose.msra.mxu0 0.0
        %929 = vmatprep.subr.mxu0 0.0
        %930 = vmatpush1.xpose.msra.mxu0 0.0
        %931 = vmatprep.subr.mxu0 0.0
        %932 = vmatpush1.xpose.msra.mxu0 0.0
        %933 = vmatprep.subr.mxu0 0.0
        %934 = vmatpush1.xpose.msra.mxu0 0.0
        %935 = vmatprep.subr.mxu0 0.0
        %936 = vmatpush1.xpose.msra.mxu0 0.0
        %937 = vmatprep.subr.mxu0 0.0
        %938 = vmatpush1.xpose.msra.mxu0 0.0
        %939 = vmatprep.subr.mxu0 0.0
        %940 = vmatpush1.xpose.msra.mxu0 0.0
        %941 = vmatprep.subr.mxu0 0.0
        %942 = vmatpush1.xpose.msra.mxu0 0.0
        %943 = vmatprep.subr.mxu0 0.0
        %944 = vmatpush1.xpose.msra.mxu0 0.0
        %945 = vmatprep.subr.mxu0 0.0
        %946 = vmatpush1.xpose.msra.mxu0 0.0
        %947 = vmatprep.subr.mxu0 0.0
        %948 = vmatpush1.xpose.msra.mxu0 0.0
        %949 = vmatprep.subr.mxu0 0.0
        %950 = vmatpush1.xpose.msra.mxu0 0.0
        %951 = vmatprep.subr.mxu0 0.0
        %952 = vmatpush1.xpose.msra.mxu0 0.0
        %953 = vmatprep.subr.mxu0 0.0
        %954 = vmatpush1.xpose.msra.mxu0 0.0
        %955 = vmatprep.subr.mxu0 0.0
        %956 = vmatpush1.xpose.msra.mxu0 0.0
        %957 = vmatprep.subr.mxu0 0.0
        %958 = vmatpush1.xpose.msra.mxu0 0.0
        %959 = vmatprep.subr.mxu0 0.0
        %960 = vmatpush1.xpose.msra.mxu0 0.0
        %961 = vmatprep.subr.mxu0 0.0
        %962 = vmatpush1.xpose.msra.mxu0 0.0
        %963 = vmatprep.subr.mxu0 0.0
        %964 = vmatpush1.xpose.msra.mxu0 0.0
        %965 = vmatprep.mubr.f32.mxu0 0.0
        %966 = vmatmul.mubr.f32.gmra.mrb[0].mxu0 %v897
        %v967 = vpop.f32.mrb[0].mxu0
        %v968 = vadd.f32 0.0, %v967
        %v969 = vpop.f32.mrb[0].mxu0
        %970 = vdwg.mxu0
        %v971 = vmul.f32 %v968, 0.35355338
        %v972 = vsel %vm535, %v971, -inf
        %973 = vmax.xlane.f32.xlu0 %v972
        %v974 = vpop.xlane.xlu0 %973
        %v975 = vsub.f32 -inf, %v974
        %v976 = vmul.f32 %v975, 1.442695
        %v977 = vpow.pop %v976
        %v978 = vsub.f32 %v971, %v974
        %v979 = vmul.f32 %v978, 1.442695
        %v980 = vpow.pop %v979
        %v981 = vmul.f32 %v977, 0.0
        %v982 = vsel %vm535, %v980, 0.0
        %983 = vadd.xlane.f32.xlu0 %v982
        %v984 = vpop.xlane.xlu0 %983
        %v985 = vadd.f32 %v981, %v984
        %986 = vrot.lane.b32.xlu0 %v890, 80
        %v987 = vpop.permute.xlu0 %986
        %v990 = vsel %vm535, %v980, 0
        %992 = vmatprep.subr.mxu0 0.0
        %993 = vmatpush1.msra.mxu0 %v987
        %994 = vmatprep.subr.mxu0 0.0
        %995 = vmatpush1.msra.mxu0 0.0
        %996 = vmatprep.subr.mxu0 0.0
        %997 = vmatpush1.msra.mxu0 0.0
        %998 = vmatprep.subr.mxu0 0.0
        %999 = vmatpush1.msra.mxu0 0.0
        %1000 = vmatprep.subr.mxu0 0.0
        %1001 = vmatpush1.msra.mxu0 0.0
        %1002 = vmatprep.subr.mxu0 0.0
        %1003 = vmatpush1.msra.mxu0 0.0
        %1004 = vmatprep.subr.mxu0 0.0
        %1005 = vmatpush1.msra.mxu0 0.0
        %1006 = vmatprep.subr.mxu0 0.0
        %1007 = vmatpush1.msra.mxu0 0.0
        %1008 = vmatprep.subr.mxu0 0.0
        %1009 = vmatpush1.msra.mxu0 0.0
        %1010 = vmatprep.subr.mxu0 0.0
        %1011 = vmatpush1.msra.mxu0 0.0
        %1012 = vmatprep.subr.mxu0 0.0
        %1013 = vmatpush1.msra.mxu0 0.0
        %1014 = vmatprep.subr.mxu0 0.0
        %1015 = vmatpush1.msra.mxu0 0.0
        %1016 = vmatprep.subr.mxu0 0.0
        %1017 = vmatpush1.msra.mxu0 0.0
        %1018 = vmatprep.subr.mxu0 0.0
        %1019 = vmatpush1.msra.mxu0 0.0
        %1020 = vmatprep.subr.mxu0 0.0
        %1021 = vmatpush1.msra.mxu0 0.0
        %1022 = vmatprep.subr.mxu0 0.0
        %1023 = vmatpush1.msra.mxu0 0.0
        %1024 = vmatprep.subr.mxu0 0.0
        %1025 = vmatpush1.msra.mxu0 0.0
        %1026 = vmatprep.subr.mxu0 0.0
        %1027 = vmatpush1.msra.mxu0 0.0
        %1028 = vmatprep.subr.mxu0 0.0
        %1029 = vmatpush1.msra.mxu0 0.0
        %1030 = vmatprep.subr.mxu0 0.0
        %1031 = vmatpush1.msra.mxu0 0.0
        %1032 = vmatprep.subr.mxu0 0.0
        %1033 = vmatpush1.msra.mxu0 0.0
        %1034 = vmatprep.subr.mxu0 0.0
        %1035 = vmatpush1.msra.mxu0 0.0
        %1036 = vmatprep.subr.mxu0 0.0
        %1037 = vmatpush1.msra.mxu0 0.0
        %1038 = vmatprep.subr.mxu0 0.0
        %1039 = vmatpush1.msra.mxu0 0.0
        %1040 = vmatprep.subr.mxu0 0.0
        %1041 = vmatpush1.msra.mxu0 0.0
        %1042 = vmatprep.subr.mxu0 0.0
        %1043 = vmatpush1.msra.mxu0 0.0
        %1044 = vmatprep.subr.mxu0 0.0
        %1045 = vmatpush1.msra.mxu0 0.0
        %1046 = vmatprep.subr.mxu0 0.0
        %1047 = vmatpush1.msra.mxu0 0.0
        %1048 = vmatprep.subr.mxu0 0.0
        %1049 = vmatpush1.msra.mxu0 0.0
        %1050 = vmatprep.subr.mxu0 0.0
        %1051 = vmatpush1.msra.mxu0 0.0
        %1052 = vmatprep.subr.mxu0 0.0
        %1053 = vmatpush1.msra.mxu0 0.0
        %1054 = vmatprep.subr.mxu0 0.0
        %1055 = vmatpush1.msra.mxu0 0.0
        %1056 = vmatprep.mubr.f32.mxu0 0.0
        %1057 = vmatmul.mubr.f32.gmra.mrb[0].mxu0 %v990
        %v1058 = vpop.f32.mrb[0].mxu0
        %v1059 = vadd.f32 0.0, %v1058
        %v1060 = vpop.f32.mrb[0].mxu0
        %1061 = vdwg.mxu0
        %v1062 = vadd.f32 %v981, %v1059
        %v1063 = vrcp.pop %v985
        %v1064 = vmul.f32 %v1062, %v1063
        %1066 = vrot.lane.b32.xlu0 %v1064, 16
        %v1067 = vpop.permute.xlu0 %1066
        %vm1069 = vcmask 195712
        %1070 = vst.msk [vmem:[#allocation4] sm:$0xff] %vm1069, %v1067
        %v1071 = vld [vmem:[#allocation3] sm:$0xff]
        %v1072 = vld [vmem:[#allocation2] sm:$0xff]
        %1074 = vrot.lane.b32.xlu0 %v1071, 104
        %v1075 = vpop.permute.xlu0 %1074
        %1077 = vrot.lane.b32.xlu0 %v1072, 104
        %v1078 = vpop.permute.xlu0 %1077
        %v1079 = vsel %vm535, %v1075, 0
        %v1081 = vsel %vm535, %v1078, 0
        %1083 = vmatprep.subr.mxu0 0.0
        %1084 = vmatpush1.xpose.msra.mxu0 %v1081
        %1085 = vmatprep.subr.mxu0 0.0
        %1086 = vmatpush1.xpose.msra.mxu0 0.0
        %1087 = vmatprep.subr.mxu0 0.0
        %1088 = vmatpush1.xpose.msra.mxu0 0.0
        %1089 = vmatprep.subr.mxu0 0.0
        %1090 = vmatpush1.xpose.msra.mxu0 0.0
        %1091 = vmatprep.subr.mxu0 0.0
        %1092 = vmatpush1.xpose.msra.mxu0 0.0
        %1093 = vmatprep.subr.mxu0 0.0
        %1094 = vmatpush1.xpose.msra.mxu0 0.0
        %1095 = vmatprep.subr.mxu0 0.0
        %1096 = vmatpush1.xpose.msra.mxu0 0.0
        %1097 = vmatprep.subr.mxu0 0.0
        %1098 = vmatpush1.xpose.msra.mxu0 0.0
        %1099 = vmatprep.subr.mxu0 0.0
        %1100 = vmatpush1.xpose.msra.mxu0 0.0
        %1101 = vmatprep.subr.mxu0 0.0
        %1102 = vmatpush1.xpose.msra.mxu0 0.0
        %1103 = vmatprep.subr.mxu0 0.0
        %1104 = vmatpush1.xpose.msra.mxu0 0.0
        %1105 = vmatprep.subr.mxu0 0.0
        %1106 = vmatpush1.xpose.msra.mxu0 0.0
        %1107 = vmatprep.subr.mxu0 0.0
        %1108 = vmatpush1.xpose.msra.mxu0 0.0
        %1109 = vmatprep.subr.mxu0 0.0
        %1110 = vmatpush1.xpose.msra.mxu0 0.0
        %1111 = vmatprep.subr.mxu0 0.0
        %1112 = vmatpush1.xpose.msra.mxu0 0.0
        %1113 = vmatprep.subr.mxu0 0.0
        %1114 = vmatpush1.xpose.msra.mxu0 0.0
        %1115 = vmatprep.subr.mxu0 0.0
        %1116 = vmatpush1.xpose.msra.mxu0 0.0
        %1117 = vmatprep.subr.mxu0 0.0
        %1118 = vmatpush1.xpose.msra.mxu0 0.0
        %1119 = vmatprep.subr.mxu0 0.0
        %1120 = vmatpush1.xpose.msra.mxu0 0.0
        %1121 = vmatprep.subr.mxu0 0.0
        %1122 = vmatpush1.xpose.msra.mxu0 0.0
        %1123 = vmatprep.subr.mxu0 0.0
        %1124 = vmatpush1.xpose.msra.mxu0 0.0
        %1125 = vmatprep.subr.mxu0 0.0
        %1126 = vmatpush1.xpose.msra.mxu0 0.0
        %1127 = vmatprep.subr.mxu0 0.0
        %1128 = vmatpush1.xpose.msra.mxu0 0.0
        %1129 = vmatprep.subr.mxu0 0.0
        %1130 = vmatpush1.xpose.msra.mxu0 0.0
        %1131 = vmatprep.subr.mxu0 0.0
        %1132 = vmatpush1.xpose.msra.mxu0 0.0
        %1133 = vmatprep.subr.mxu0 0.0
        %1134 = vmatpush1.xpose.msra.mxu0 0.0
        %1135 = vmatprep.subr.mxu0 0.0
        %1136 = vmatpush1.xpose.msra.mxu0 0.0
        %1137 = vmatprep.subr.mxu0 0.0
        %1138 = vmatpush1.xpose.msra.mxu0 0.0
        %1139 = vmatprep.subr.mxu0 0.0
        %1140 = vmatpush1.xpose.msra.mxu0 0.0
        %1141 = vmatprep.subr.mxu0 0.0
        %1142 = vmatpush1.xpose.msra.mxu0 0.0
        %1143 = vmatprep.subr.mxu0 0.0
        %1144 = vmatpush1.xpose.msra.mxu0 0.0
        %1145 = vmatprep.subr.mxu0 0.0
        %1146 = vmatpush1.xpose.msra.mxu0 0.0
        %1147 = vmatprep.mubr.f32.mxu0 0.0
        %1148 = vmatmul.mubr.f32.gmra.mrb[0].mxu0 %v1079
        %v1149 = vpop.f32.mrb[0].mxu0
        %v1150 = vadd.f32 0.0, %v1149
        %v1151 = vpop.f32.mrb[0].mxu0
        %1152 = vdwg.mxu0
        %v1153 = vmul.f32 %v1150, 0.35355338
        %v1154 = vsel %vm535, %v1153, -inf
        %1155 = vmax.xlane.f32.xlu0 %v1154
        %v1156 = vpop.xlane.xlu0 %1155
        %v1157 = vsub.f32 -inf, %v1156
        %v1158 = vmul.f32 %v1157, 1.442695
        %v1159 = vpow.pop %v1158
        %v1160 = vsub.f32 %v1153, %v1156
        %v1161 = vmul.f32 %v1160, 1.442695
        %v1162 = vpow.pop %v1161
        %v1163 = vmul.f32 %v1159, 0.0
        %v1164 = vsel %vm535, %v1162, 0.0
        %1165 = vadd.xlane.f32.xlu0 %v1164
        %v1166 = vpop.xlane.xlu0 %1165
        %v1167 = vadd.f32 %v1163, %v1166
        %1168 = vrot.lane.b32.xlu0 %v1072, 72
        %v1169 = vpop.permute.xlu0 %1168
        %v1172 = vsel %vm535, %v1162, 0
        %1174 = vmatprep.subr.mxu0 0.0
        %1175 = vmatpush1.msra.mxu0 %v1169
        %1176 = vmatprep.subr.mxu0 0.0
        %1177 = vmatpush1.msra.mxu0 0.0
        %1178 = vmatprep.subr.mxu0 0.0
        %1179 = vmatpush1.msra.mxu0 0.0
        %1180 = vmatprep.subr.mxu0 0.0
        %1181 = vmatpush1.msra.mxu0 0.0
        %1182 = vmatprep.subr.mxu0 0.0
        %1183 = vmatpush1.msra.mxu0 0.0
        %1184 = vmatprep.subr.mxu0 0.0
        %1185 = vmatpush1.msra.mxu0 0.0
        %1186 = vmatprep.subr.mxu0 0.0
        %1187 = vmatpush1.msra.mxu0 0.0
        %1188 = vmatprep.subr.mxu0 0.0
        %1189 = vmatpush1.msra.mxu0 0.0
        %1190 = vmatprep.subr.mxu0 0.0
        %1191 = vmatpush1.msra.mxu0 0.0
        %1192 = vmatprep.subr.mxu0 0.0
        %1193 = vmatpush1.msra.mxu0 0.0
        %1194 = vmatprep.subr.mxu0 0.0
        %1195 = vmatpush1.msra.mxu0 0.0
        %1196 = vmatprep.subr.mxu0 0.0
        %1197 = vmatpush1.msra.mxu0 0.0
        %1198 = vmatprep.subr.mxu0 0.0
        %1199 = vmatpush1.msra.mxu0 0.0
        %1200 = vmatprep.subr.mxu0 0.0
        %1201 = vmatpush1.msra.mxu0 0.0
        %1202 = vmatprep.subr.mxu0 0.0
        %1203 = vmatpush1.msra.mxu0 0.0
        %1204 = vmatprep.subr.mxu0 0.0
        %1205 = vmatpush1.msra.mxu0 0.0
        %1206 = vmatprep.subr.mxu0 0.0
        %1207 = vmatpush1.msra.mxu0 0.0
        %1208 = vmatprep.subr.mxu0 0.0
        %1209 = vmatpush1.msra.mxu0 0.0
        %1210 = vmatprep.subr.mxu0 0.0
        %1211 = vmatpush1.msra.mxu0 0.0
        %1212 = vmatprep.subr.mxu0 0.0
        %1213 = vmatpush1.msra.mxu0 0.0
        %1214 = vmatprep.subr.mxu0 0.0
        %1215 = vmatpush1.msra.mxu0 0.0
        %1216 = vmatprep.subr.mxu0 0.0
        %1217 = vmatpush1.msra.mxu0 0.0
        %1218 = vmatprep.subr.mxu0 0.0
        %1219 = vmatpush1.msra.mxu0 0.0
        %1220 = vmatprep.subr.mxu0 0.0
        %1221 = vmatpush1.msra.mxu0 0.0
        %1222 = vmatprep.subr.mxu0 0.0
        %1223 = vmatpush1.msra.mxu0 0.0
        %1224 = vmatprep.subr.mxu0 0.0
        %1225 = vmatpush1.msra.mxu0 0.0
        %1226 = vmatprep.subr.mxu0 0.0
        %1227 = vmatpush1.msra.mxu0 0.0
        %1228 = vmatprep.subr.mxu0 0.0
        %1229 = vmatpush1.msra.mxu0 0.0
        %1230 = vmatprep.subr.mxu0 0.0
        %1231 = vmatpush1.msra.mxu0 0.0
        %1232 = vmatprep.subr.mxu0 0.0
        %1233 = vmatpush1.msra.mxu0 0.0
        %1234 = vmatprep.subr.mxu0 0.0
        %1235 = vmatpush1.msra.mxu0 0.0
        %1236 = vmatprep.subr.mxu0 0.0
        %1237 = vmatpush1.msra.mxu0 0.0
        %1238 = vmatprep.mubr.f32.mxu0 0.0
        %1239 = vmatmul.mubr.f32.gmra.mrb[0].mxu0 %v1172
        %v1240 = vpop.f32.mrb[0].mxu0
        %v1241 = vadd.f32 0.0, %v1240
        %v1242 = vpop.f32.mrb[0].mxu0
        %1243 = vdwg.mxu0
        %v1244 = vadd.f32 %v1163, %v1241
        %v1245 = vrcp.pop %v1167
        %v1246 = vmul.f32 %v1244, %v1245
        %1248 = vrot.lane.b32.xlu0 %v1246, 24
        %v1249 = vpop.permute.xlu0 %1248
        %vm1251 = vcmask 261312
        %1252 = vst.msk [vmem:[#allocation4] sm:$0xff] %vm1251, %v1249
        %v1253 = vld [vmem:[#allocation4] sm:$0xff]
        %v1254 = vld [vmem:[#allocation11] sm:$0xff]
        %v1255 = vld [vmem:[#allocation11 + $0x8] sm:$0xff]
        %v1256 = vld [vmem:[#allocation11 + $0x10] sm:$0xff]
        %v1257 = vld [vmem:[#allocation11 + $0x18] sm:$0xff]
        %v1258 = vld [vmem:[%s6] sm:$0x1]
        %v1260 = vlaneseq
        %v1261 = vshrl.u32 %v1260, 7
        %v1262 = vsub.s32 0, %v1261
        %v1263 = vrot.slane %v1258, %v1262
        %v1266 = vsel %vm458, %v1253, 0
        %1268 = vmatprep.subr.mxu0 0.0
        %1269 = vmatpush1.msra.mxu0 %v1254
        %1270 = vmatprep.subr.mxu0 0.0
        %1271 = vmatpush1.msra.mxu0 %v1255
        %1272 = vmatprep.subr.mxu0 0.0
        %1273 = vmatpush1.msra.mxu0 %v1256
        %1274 = vmatprep.subr.mxu0 0.0
        %1275 = vmatpush1.msra.mxu0 %v1257
        %1276 = vmatprep.subr.mxu0 0.0
        %1277 = vmatpush1.msra.mxu0 0.0
        %1278 = vmatprep.subr.mxu0 0.0
        %1279 = vmatpush1.msra.mxu0 0.0
        %1280 = vmatprep.subr.mxu0 0.0
        %1281 = vmatpush1.msra.mxu0 0.0
        %1282 = vmatprep.subr.mxu0 0.0
        %1283 = vmatpush1.msra.mxu0 0.0
        %1284 = vmatprep.subr.mxu0 0.0
        %1285 = vmatpush1.msra.mxu0 0.0
        %1286 = vmatprep.subr.mxu0 0.0
        %1287 = vmatpush1.msra.mxu0 0.0
        %1288 = vmatprep.subr.mxu0 0.0
        %1289 = vmatpush1.msra.mxu0 0.0
        %1290 = vmatprep.subr.mxu0 0.0
        %1291 = vmatpush1.msra.mxu0 0.0
        %1292 = vmatprep.subr.mxu0 0.0
        %1293 = vmatpush1.msra.mxu0 0.0
        %1294 = vmatprep.subr.mxu0 0.0
        %1295 = vmatpush1.msra.mxu0 0.0
        %1296 = vmatprep.subr.mxu0 0.0
        %1297 = vmatpush1.msra.mxu0 0.0
        %1298 = vmatprep.subr.mxu0 0.0
        %1299 = vmatpush1.msra.mxu0 0.0
        %1300 = vmatprep.subr.mxu0 0.0
        %1301 = vmatpush1.msra.mxu0 0.0
        %1302 = vmatprep.subr.mxu0 0.0
        %1303 = vmatpush1.msra.mxu0 0.0
        %1304 = vmatprep.subr.mxu0 0.0
        %1305 = vmatpush1.msra.mxu0 0.0
        %1306 = vmatprep.subr.mxu0 0.0
        %1307 = vmatpush1.msra.mxu0 0.0
        %1308 = vmatprep.subr.mxu0 0.0
        %1309 = vmatpush1.msra.mxu0 0.0
        %1310 = vmatprep.subr.mxu0 0.0
        %1311 = vmatpush1.msra.mxu0 0.0
        %1312 = vmatprep.subr.mxu0 0.0
        %1313 = vmatpush1.msra.mxu0 0.0
        %1314 = vmatprep.subr.mxu0 0.0
        %1315 = vmatpush1.msra.mxu0 0.0
        %1316 = vmatprep.subr.mxu0 0.0
        %1317 = vmatpush1.msra.mxu0 0.0
        %1318 = vmatprep.subr.mxu0 0.0
        %1319 = vmatpush1.msra.mxu0 0.0
        %1320 = vmatprep.subr.mxu0 0.0
        %1321 = vmatpush1.msra.mxu0 0.0
        %1322 = vmatprep.subr.mxu0 0.0
        %1323 = vmatpush1.msra.mxu0 0.0
        %1324 = vmatprep.subr.mxu0 0.0
        %1325 = vmatpush1.msra.mxu0 0.0
        %1326 = vmatprep.subr.mxu0 0.0
        %1327 = vmatpush1.msra.mxu0 0.0
        %1328 = vmatprep.subr.mxu0 0.0
        %1329 = vmatpush1.msra.mxu0 0.0
        %1330 = vmatprep.subr.mxu0 0.0
        %1331 = vmatpush1.msra.mxu0 0.0
        %1332 = vmatprep.mubr.f32.mxu0 0.0
        %1333 = vmatmul.mubr.f32.gmra.mrb[0].mxu0 %v1266
        %v1334 = vpop.f32.mrb[0].mxu0
        %v1335 = vadd.f32 %v1263, %v1334
        %v1336 = vpop.f32.mrb[0].mxu0
        %1337 = vdwg.mxu0
        %1338 = vst.msk [vmem:[%s351] sm:$0xff] %vm458, %v1335
        %s1339 = sand.u32 %s200, 1
        %s1340 = scalar_lea.sflag [#allocation7], %s1339
        %s1341 = sand.u32 %s200, 1
        %s1342 = smul.addr %s1341, 8
        %s1343 = scalar_lea.vmem [#allocation13], %s1342
        // Predicated region
        $region69: #{tpu_custom_call.1} parent=47 // pred_check
          %p1344 = pneg %p210
        $region70: #{tpu_custom_call.1} parent=47 // pred_check_branch
          %1346 = sbr.rel (%p1344) target = $region72
        $region71: #{tpu_custom_call.1} parent=47 // pred_region
          %s1348 = ssub.s32 128, 128
          %1349 = vsyncadd %s1340, %s1348
          %s1350 = sadd.s32 %s31, %s30
          %s1351 = smul.addr %s1350, 128
          %s1352 = scalar_lea.hbm %s7, %s1351
          %s1354 = sshll.u32 %s1343, 4
          %s1355 = int_to_ptr.vmem [resolvable:$true] %s1354
          %1357 = dma.vmem_to_hbm [thread:$0]  %s1355, 128, %s1352, %s1340
        $region72: #{tpu_custom_call.1} parent=47 // pred_fallthru
          _
      $region48: #{tpu_custom_call.1} parent=5 // pred_fallthru
        _
      %p1358 = scmp.le.s32.totalorder 2, %s21
      // Predicated region
      $region73: #{tpu_custom_call.1} parent=5 // pred_check
        %p1359 = pneg %p1358
      $region74: #{tpu_custom_call.1} parent=5 // pred_check_branch
        %1361 = sbr.rel (%p1359) target = $region76
      $region75: #{tpu_custom_call.1} parent=5 // pred_region
        %s1362 = ssub.s32 %s21, 2
        // Predicated region
        $region77: #{tpu_custom_call.1} parent=75 // pred_check
          %p1363 = pneg %p216
        $region78: #{tpu_custom_call.1} parent=75 // pred_check_branch
          %1365 = sbr.rel (%p1363) target = $region80
        $region79: #{tpu_custom_call.1} parent=75 // pred_region
          %s1366 = sand.u32 %s201, 1
          %s1367 = scalar_lea.sflag [#allocation7], %s1366
          %s1368 = sand.u32 %s201, 1
          %s1369 = smul.addr %s1368, 8
          %s1370 = scalar_lea.vmem [#allocation13], %s1369
          %1371 = dma.done %s1367, 128
        $region80: #{tpu_custom_call.1} parent=75 // pred_fallthru
          _
      $region76: #{tpu_custom_call.1} parent=5 // pred_fallthru
        _
    $region6: #{tpu_custom_call.1} parent=1 // loop_footer
      %s25 = sadd.s32 1, %s21
    $region7: #{tpu_custom_call.1} parent=1 // loop_footer_branch
      %20 = sbr.rel target = $region3
    $region8: #{tpu_custom_call.1} parent=1 // loop_exit
      _
    %1372 = vsyncpa [#allocation6], 1
    %s1373 = scalar_lea.sflag [#allocation6], 1
    %1374 = vsyncpa %s1373, 1
    %1375 = vsyncpa [#allocation9], 1
    %1376 = vsyncpa [#allocation12], 1
    %1377 = vsyncpa [#allocation7], 1
    %s1378 = scalar_lea.sflag [#allocation7], 1
    %1379 = vsyncpa %s1378, 1

</llo_original>
